<compile_context>
chip_gen: v7x
topology: tpu7x:2x2x1
jax: 0.10.0
libtpu: 0.0.40
codegen_flags: <defaults>
</compile_context>

<pallas_src>
import jax
import jax.numpy as jnp
from jax.experimental import pallas as pl
from jax.experimental.pallas import tpu as pltpu

BN_EPS = 1e-5


def fuse_bn(gamma, beta, running_mean, running_var, eps=BN_EPS):
    scale = gamma / jnp.sqrt(running_var + eps)
    shift = beta - running_mean * scale
    return scale, shift


def _pack_banded_weights(w_torch, scale, W, compute_dtype):
    """torch (Co, Ci, 3, 3, 3) conv weight + fused-BN scale -> 9 banded (W*Ci, W*Co) blocks.

    B[kd*3+kh, wp*Ci + ci, w*Co + co] = scale[co] * w[co, ci, kd, kh, kw]  with wp = w + kw - 1,
    zero where wp falls outside [0, W).  The zero rows encode the conv's zero padding along W,
    so the kernel never materializes a W halo and every activation slab is a lane-aligned,
    lane-dense slice.  BN scale is folded in f32 BEFORE the compute-dtype cast.
    """
    wt = jnp.transpose(w_torch, (2, 3, 4, 1, 0)).astype(jnp.float32) * scale  # (kd,kh,kw,ci,co)
    kD, kH, kW, Ci, Co = wt.shape
    # masks[kw, wp, w] = 1 iff wp == w + kw - 1 (valid, in-range source position along W)
    masks = jnp.stack([jnp.eye(W, k=1 - kw, dtype=jnp.float32) for kw in range(kW)])
    b = jnp.einsum("kpw,dekio->depiwo", masks, wt)            # (kd, kh, wp, ci, w, co)
    return b.reshape(kD * kH, W * Ci, W * Co).astype(compute_dtype)


def _make_fused_block_kernel(D, H, W, C, compute_dtype):
    """One batch element: conv3x3x3 -> bn -> relu -> conv3x3x3 -> bn -> +residual -> relu."""
    DH, WC = D * H, W * C

    def zero_halo(pad_ref):
        # Only the thin halo shells; the interior is fully overwritten every grid step.
        pad_ref[0:1, :, :] = jnp.zeros((1, H + 2, WC), compute_dtype)
        pad_ref[D + 1:D + 2, :, :] = jnp.zeros((1, H + 2, WC), compute_dtype)
        pad_ref[:, 0:1, :] = jnp.zeros((D + 2, 1, WC), compute_dtype)
        pad_ref[:, H + 1:H + 2, :] = jnp.zeros((D + 2, 1, WC), compute_dtype)

    def conv3x3(pad_ref, b_ref):
        # 9 (kd, kh) tap-plane matmuls; the kw taps and W zero-padding live in the banded
        # weight blocks, so each operand slab is a lane-dense (DH, WC) slice.  f32 accumulate.
        acc = None
        for kd in range(3):
            for kh in range(3):
                a = pad_ref[kd:kd + D, kh:kh + H, :].reshape(DH, WC)
                p = jnp.dot(a, b_ref[kd * 3 + kh], preferred_element_type=jnp.float32)
                acc = p if acc is None else acc + p
        return acc

    def kernel(x_ref, b1_ref, b2_ref, t1_ref, t2_ref, o_ref, xpad_ref, hpad_ref):
        zero_halo(xpad_ref)
        zero_halo(hpad_ref)

        x = x_ref[0]                                              # (DH, WC) f32, reused as residual
        xpad_ref[1:D + 1, 1:H + 1, :] = x.reshape(D, H, WC).astype(compute_dtype)  # single cast

        # conv1 (BN1 scale pre-folded into b1) -> +shift -> ReLU      (all 256-lane dense)
        h = jnp.maximum(conv3x3(xpad_ref, b1_ref) + t1_ref[...], 0.0)
        # TODO(synk): Dropout3d is the eval-mode identity; training-mode channel dropout is
        # not implemented.

        # keep h resident in VMEM with its own zero halo for conv2
        hpad_ref[1:D + 1, 1:H + 1, :] = h.reshape(D, H, WC).astype(compute_dtype)

        # conv2 (BN2 scale pre-folded) -> +shift -> +residual -> ReLU -> lane-dense store
        out = conv3x3(hpad_ref, b2_ref) + t2_ref[...]
        out = jnp.maximum(out + x, 0.0)
        o_ref[0] = out.astype(o_ref.dtype)

    return kernel


def wbasic_block_ndhwc(x, params, compute_dtype=jnp.bfloat16):
    """Fused wBasicBlock forward, channels-last (N, D, H, W, C).  Use this directly when
    stacking blocks to avoid per-block NCDHW<->NDHWC transposes."""
    N, D, H, W, C = x.shape
    DH, WC = D * H, W * C

    w1, w2 = params["w1"], params["w2"]
    assert w1.shape[0] == C and w1.shape[1] == C and w2.shape[0] == C, \
        "residual add requires inplanes == planes"

    s1, b1 = fuse_bn(params["g1"], params["b1"], params["m1"], params["v1"])
    s2, b2 = fuse_bn(params["g2"], params["b2"], params["m2"], params["v2"])

    # Banded conv+BN-scale weights and lane-tiled BN shifts.  (In a real network these would be
    # precomputed once, not per call.)
    B1 = _pack_banded_weights(w1, s1, W, compute_dtype)
    B2 = _pack_banded_weights(w2, s2, W, compute_dtype)
    t1 = jnp.tile(b1, W).reshape(1, WC).astype(jnp.float32)
    t2 = jnp.tile(b2, W).reshape(1, WC).astype(jnp.float32)

    x2 = x.reshape(N, DH, WC)        # free row-major reshape into the lane-dense kernel layout

    kernel = _make_fused_block_kernel(D, H, W, C, compute_dtype)
    out = pl.pallas_call(
        kernel,
        out_shape=jax.ShapeDtypeStruct((N, DH, WC), x.dtype),
        grid=(N,),                   # keep extent >= 2 so both v7x TensorCores are used
        in_specs=[
            pl.BlockSpec((1, DH, WC), lambda n: (n, 0, 0)),     # x (conv1 input + residual)
            pl.BlockSpec((9, WC, WC), lambda n: (0, 0, 0)),     # banded conv1 (+bn1 scale) weights
            pl.BlockSpec((9, WC, WC), lambda n: (0, 0, 0)),     # banded conv2 (+bn2 scale) weights
            pl.BlockSpec((1, WC), lambda n: (0, 0)),            # bn1 shift, lane-tiled
            pl.BlockSpec((1, WC), lambda n: (0, 0)),            # bn2 shift, lane-tiled
        ],
        out_specs=pl.BlockSpec((1, DH, WC), lambda n: (n, 0, 0)),
        scratch_shapes=[
            pltpu.VMEM((D + 2, H + 2, WC), compute_dtype),      # padded conv1 input (D/H halo)
            pltpu.VMEM((D + 2, H + 2, WC), compute_dtype),      # padded conv2 input (h, D/H halo)
        ],
        compiler_params=pltpu.CompilerParams(dimension_semantics=("parallel",)),
    )(x2, B1, B2, t1, t2)

    return out.reshape(N, D, H, W, C)


def wbasic_block(x_ncdhw, params, compute_dtype=jnp.bfloat16):
    """Forward pass of wBasicBlock (eval mode), PyTorch NCDHW layout in/out.

    compute_dtype controls the MXU operand dtype (bf16 recommended on all TPU generations);
    accumulation and the BN/residual/ReLU epilogue are always f32.
    """
    x = jnp.transpose(x_ncdhw, (0, 2, 3, 4, 1))          # NCDHW -> NDHWC
    out = wbasic_block_ndhwc(x, params, compute_dtype)
    return jnp.transpose(out, (0, 4, 1, 2, 3))           # NDHWC -> NCDHW


def _reference_block(x_ncdhw, params):
    """Pure-JAX reference (XLA conv) for correctness check."""
    x = jnp.transpose(x_ncdhw, (0, 2, 3, 4, 1))
    w1 = jnp.transpose(params["w1"], (2, 3, 4, 1, 0))
    w2 = jnp.transpose(params["w2"], (2, 3, 4, 1, 0))
    s1, b1 = fuse_bn(params["g1"], params["b1"], params["m1"], params["v1"])
    s2, b2 = fuse_bn(params["g2"], params["b2"], params["m2"], params["v2"])

    dn = jax.lax.conv_dimension_numbers(x.shape, w1.shape, ("NDHWC", "DHWIO", "NDHWC"))

    def conv(a, w):
        return jax.lax.conv_general_dilated(
            a, w, window_strides=(1, 1, 1), padding=[(1, 1)] * 3, dimension_numbers=dn
        )

    h = jnp.maximum(conv(x, w1) * s1 + b1, 0.0)
    o = jnp.maximum(conv(h, w2) * s2 + b2 + x, 0.0)
    return jnp.transpose(o, (0, 4, 1, 2, 3))


if __name__ == "__main__":
    N, C, D, H, W = 2, 32, 8, 8, 8  # inplanes = planes = 32 (module default)
    key = jax.random.PRNGKey(0)
    keys = jax.random.split(key, 11)

    x = jax.random.normal(keys[0], (N, C, D, H, W), jnp.float32)

    fan_scale = 1.0 / (27.0 * C) ** 0.5
    params = {
        "w1": jax.random.normal(keys[1], (C, C, 3, 3, 3), jnp.float32) * fan_scale,
        "w2": jax.random.normal(keys[2], (C, C, 3, 3, 3), jnp.float32) * fan_scale,
        "g1": 1.0 + 0.1 * jax.random.normal(keys[3], (C,), jnp.float32),
        "b1": 0.1 * jax.random.normal(keys[4], (C,), jnp.float32),
        "m1": 0.1 * jax.random.normal(keys[5], (C,), jnp.float32),
        "v1": 0.5 + jnp.abs(jax.random.normal(keys[6], (C,), jnp.float32)),
        "g2": 1.0 + 0.1 * jax.random.normal(keys[7], (C,), jnp.float32),
        "b2": 0.1 * jax.random.normal(keys[8], (C,), jnp.float32),
        "m2": 0.1 * jax.random.normal(keys[9], (C,), jnp.float32),
        "v2": 0.5 + jnp.abs(jax.random.normal(keys[10], (C,), jnp.float32)),
    }

    ref = jax.block_until_ready(_reference_block(x, params))

    # f32 MXU operands: near-exact path, strict check.
    fwd_f32 = jax.jit(lambda xx, pp: wbasic_block(xx, pp, compute_dtype=jnp.float32))
    out_f32 = jax.block_until_ready(fwd_f32(x, params))
    assert out_f32.shape == (N, C, D, H, W)
    err_f32 = float(jnp.max(jnp.abs(out_f32 - ref)))
    assert err_f32 < 5e-4, f"f32 path mismatch vs reference: {err_f32}"

    # bf16 MXU operands (default / perf config on all generations), f32 accumulation + epilogue.
    fwd_bf16 = jax.jit(lambda xx, pp: wbasic_block(xx, pp, compute_dtype=jnp.bfloat16))
    out_bf16 = jax.block_until_ready(fwd_bf16(x, params))
    err_bf16 = float(jnp.max(jnp.abs(out_bf16 - ref)))
    assert err_bf16 < 5e-2, f"bf16 path mismatch vs reference: {err_bf16}"

    print("KERNEL_OK")
</pallas_src>

<mosaic_0001>
module attributes {stable_mosaic.version = 11 : i64} {
  func.func @kernel(%arg0: i32, %arg1: memref<1x64x256xf32, #tpu.memory_space<vmem>>, %arg2: memref<9x256x256xf32, #tpu.memory_space<vmem>>, %arg3: memref<9x256x256xf32, #tpu.memory_space<vmem>>, %arg4: memref<1x256xf32, #tpu.memory_space<vmem>>, %arg5: memref<1x256xf32, #tpu.memory_space<vmem>>, %arg6: memref<1x64x256xf32, #tpu.memory_space<vmem>>, %arg7: memref<10x10x256xf32, #tpu.memory_space<vmem>>, %arg8: memref<10x10x256xf32, #tpu.memory_space<vmem>>) attributes {dimension_semantics = [#tpu.dimension_semantics<parallel>], iteration_bounds = array<i64: 2>, scalar_prefetch = 0 : i64, scratch_operands = 2 : i64, tpu.core_type = #tpu.core_type<tc>, window_params = [{transform_indices = @transform_0, window_bounds = array<i64: 1, 64, 256>}, {pipeline_mode = #tpu.pipeline_mode<synchronous>, transform_indices = @transform_1, window_bounds = array<i64: 9, 256, 256>}, {pipeline_mode = #tpu.pipeline_mode<synchronous>, transform_indices = @transform_2, window_bounds = array<i64: 9, 256, 256>}, {pipeline_mode = #tpu.pipeline_mode<synchronous>, transform_indices = @transform_3, window_bounds = array<i64: 1, 256>}, {pipeline_mode = #tpu.pipeline_mode<synchronous>, transform_indices = @transform_4, window_bounds = array<i64: 1, 256>}, {transform_indices = @transform_5, window_bounds = array<i64: 1, 64, 256>}]} {
    %cst = arith.constant 0.000000e+00 : f32
    %0 = vector.broadcast %cst : f32 to vector<1x10x256xf32>
    %c0 = arith.constant 0 : index
    %c0_0 = arith.constant 0 : index
    %c0_1 = arith.constant 0 : index
    %1 = vector.load %arg7[%c0, %c0_0, %c0_1] : memref<10x10x256xf32, #tpu.memory_space<vmem>>, vector<1x10x256xf32>
    tpu.vector_store %arg7[%c0, %c0_0, %c0_1], %0 {strides = array<i32>} : memref<10x10x256xf32, #tpu.memory_space<vmem>>, vector<1x10x256xf32>,
    %cst_2 = arith.constant 0.000000e+00 : f32
    %2 = vector.broadcast %cst_2 : f32 to vector<1x10x256xf32>
    %c9 = arith.constant 9 : index
    %c0_3 = arith.constant 0 : index
    %c0_4 = arith.constant 0 : index
    %3 = vector.load %arg7[%c9, %c0_3, %c0_4] : memref<10x10x256xf32, #tpu.memory_space<vmem>>, vector<1x10x256xf32>
    tpu.vector_store %arg7[%c9, %c0_3, %c0_4], %2 {strides = array<i32>} : memref<10x10x256xf32, #tpu.memory_space<vmem>>, vector<1x10x256xf32>,
    %cst_5 = arith.constant 0.000000e+00 : f32
    %4 = vector.broadcast %cst_5 : f32 to vector<10x1x256xf32>
    %c0_6 = arith.constant 0 : index
    %c0_7 = arith.constant 0 : index
    %c0_8 = arith.constant 0 : index
    %5 = vector.load %arg7[%c0_6, %c0_7, %c0_8] : memref<10x10x256xf32, #tpu.memory_space<vmem>>, vector<10x1x256xf32>
    tpu.vector_store %arg7[%c0_6, %c0_7, %c0_8], %4 {strides = array<i32>} : memref<10x10x256xf32, #tpu.memory_space<vmem>>, vector<10x1x256xf32>,
    %cst_9 = arith.constant 0.000000e+00 : f32
    %6 = vector.broadcast %cst_9 : f32 to vector<10x1x256xf32>
    %c0_10 = arith.constant 0 : index
    %c9_11 = arith.constant 9 : index
    %c0_12 = arith.constant 0 : index
    %7 = vector.load %arg7[%c0_10, %c9_11, %c0_12] : memref<10x10x256xf32, #tpu.memory_space<vmem>>, vector<10x1x256xf32>
    tpu.vector_store %arg7[%c0_10, %c9_11, %c0_12], %6 {strides = array<i32>} : memref<10x10x256xf32, #tpu.memory_space<vmem>>, vector<10x1x256xf32>,
    %cst_13 = arith.constant 0.000000e+00 : f32
    %8 = vector.broadcast %cst_13 : f32 to vector<1x10x256xf32>
    %c0_14 = arith.constant 0 : index
    %c0_15 = arith.constant 0 : index
    %c0_16 = arith.constant 0 : index
    %9 = vector.load %arg8[%c0_14, %c0_15, %c0_16] : memref<10x10x256xf32, #tpu.memory_space<vmem>>, vector<1x10x256xf32>
    tpu.vector_store %arg8[%c0_14, %c0_15, %c0_16], %8 {strides = array<i32>} : memref<10x10x256xf32, #tpu.memory_space<vmem>>, vector<1x10x256xf32>,
    %cst_17 = arith.constant 0.000000e+00 : f32
    %10 = vector.broadcast %cst_17 : f32 to vector<1x10x256xf32>
    %c9_18 = arith.constant 9 : index
    %c0_19 = arith.constant 0 : index
    %c0_20 = arith.constant 0 : index
    %11 = vector.load %arg8[%c9_18, %c0_19, %c0_20] : memref<10x10x256xf32, #tpu.memory_space<vmem>>, vector<1x10x256xf32>
    tpu.vector_store %arg8[%c9_18, %c0_19, %c0_20], %10 {strides = array<i32>} : memref<10x10x256xf32, #tpu.memory_space<vmem>>, vector<1x10x256xf32>,
    %cst_21 = arith.constant 0.000000e+00 : f32
    %12 = vector.broadcast %cst_21 : f32 to vector<10x1x256xf32>
    %c0_22 = arith.constant 0 : index
    %c0_23 = arith.constant 0 : index
    %c0_24 = arith.constant 0 : index
    %13 = vector.load %arg8[%c0_22, %c0_23, %c0_24] : memref<10x10x256xf32, #tpu.memory_space<vmem>>, vector<10x1x256xf32>
    tpu.vector_store %arg8[%c0_22, %c0_23, %c0_24], %12 {strides = array<i32>} : memref<10x10x256xf32, #tpu.memory_space<vmem>>, vector<10x1x256xf32>,
    %cst_25 = arith.constant 0.000000e+00 : f32
    %14 = vector.broadcast %cst_25 : f32 to vector<10x1x256xf32>
    %c0_26 = arith.constant 0 : index
    %c9_27 = arith.constant 9 : index
    %c0_28 = arith.constant 0 : index
    %15 = vector.load %arg8[%c0_26, %c9_27, %c0_28] : memref<10x10x256xf32, #tpu.memory_space<vmem>>, vector<10x1x256xf32>
    tpu.vector_store %arg8[%c0_26, %c9_27, %c0_28], %14 {strides = array<i32>} : memref<10x10x256xf32, #tpu.memory_space<vmem>>, vector<10x1x256xf32>,
    %c0_29 = arith.constant 0 : index
    %c0_30 = arith.constant 0 : index
    %c0_31 = arith.constant 0 : index
    %16 = vector.load %arg1[%c0_29, %c0_30, %c0_31] : memref<1x64x256xf32, #tpu.memory_space<vmem>>, vector<1x64x256xf32>
    %17 = vector.shape_cast %16 : vector<1x64x256xf32> to vector<64x256xf32>
    %18 = vector.shape_cast %17 : vector<64x256xf32> to vector<8x8x256xf32>
    %c1 = arith.constant 1 : index
    %c1_32 = arith.constant 1 : index
    %c0_33 = arith.constant 0 : index
    %19 = vector.load %arg7[%c1, %c1_32, %c0_33] : memref<10x10x256xf32, #tpu.memory_space<vmem>>, vector<8x8x256xf32>
    tpu.vector_store %arg7[%c1, %c1_32, %c0_33], %18 {strides = array<i32>} : memref<10x10x256xf32, #tpu.memory_space<vmem>>, vector<8x8x256xf32>,
    %c0_34 = arith.constant 0 : index
    %c0_35 = arith.constant 0 : index
    %c0_36 = arith.constant 0 : index
    %20 = vector.load %arg7[%c0_34, %c0_35, %c0_36] : memref<10x10x256xf32, #tpu.memory_space<vmem>>, vector<8x8x256xf32>
    %21 = vector.shape_cast %20 : vector<8x8x256xf32> to vector<64x256xf32>
    %c0_37 = arith.constant 0 : index
    %c0_38 = arith.constant 0 : index
    %c0_39 = arith.constant 0 : index
    %22 = vector.load %arg2[%c0_37, %c0_38, %c0_39] : memref<9x256x256xf32, #tpu.memory_space<vmem>>, vector<1x256x256xf32>
    %23 = vector.shape_cast %22 : vector<1x256x256xf32> to vector<256x256xf32>
    %cst_40 = arith.constant dense<0.000000e+00> : vector<64x256xf32>
    %24 = tpu.matmul %21, %23, %cst_40 {dimension_numbers = #tpu.dot_dimension_numbers<[1], [0], [0], [1], [0, 0, 1, 1], [], []>} : vector<64x256xf32>, vector<256x256xf32>, vector<64x256xf32> -> vector<64x256xf32>
    %c0_41 = arith.constant 0 : index
    %c1_42 = arith.constant 1 : index
    %c0_43 = arith.constant 0 : index
    %25 = vector.load %arg7[%c0_41, %c1_42, %c0_43] : memref<10x10x256xf32, #tpu.memory_space<vmem>>, vector<8x8x256xf32>
    %26 = vector.shape_cast %25 : vector<8x8x256xf32> to vector<64x256xf32>
    %c1_44 = arith.constant 1 : index
    %c0_45 = arith.constant 0 : index
    %c0_46 = arith.constant 0 : index
    %27 = vector.load %arg2[%c1_44, %c0_45, %c0_46] : memref<9x256x256xf32, #tpu.memory_space<vmem>>, vector<1x256x256xf32>
    %28 = vector.shape_cast %27 : vector<1x256x256xf32> to vector<256x256xf32>
    %cst_47 = arith.constant dense<0.000000e+00> : vector<64x256xf32>
    %29 = tpu.matmul %26, %28, %cst_47 {dimension_numbers = #tpu.dot_dimension_numbers<[1], [0], [0], [1], [0, 0, 1, 1], [], []>} : vector<64x256xf32>, vector<256x256xf32>, vector<64x256xf32> -> vector<64x256xf32>
    %30 = arith.addf %24, %29 : vector<64x256xf32>
    %c0_48 = arith.constant 0 : index
    %c2 = arith.constant 2 : index
    %c0_49 = arith.constant 0 : index
    %31 = vector.load %arg7[%c0_48, %c2, %c0_49] : memref<10x10x256xf32, #tpu.memory_space<vmem>>, vector<8x8x256xf32>
    %32 = vector.shape_cast %31 : vector<8x8x256xf32> to vector<64x256xf32>
    %c2_50 = arith.constant 2 : index
    %c0_51 = arith.constant 0 : index
    %c0_52 = arith.constant 0 : index
    %33 = vector.load %arg2[%c2_50, %c0_51, %c0_52] : memref<9x256x256xf32, #tpu.memory_space<vmem>>, vector<1x256x256xf32>
    %34 = vector.shape_cast %33 : vector<1x256x256xf32> to vector<256x256xf32>
    %cst_53 = arith.constant dense<0.000000e+00> : vector<64x256xf32>
    %35 = tpu.matmul %32, %34, %cst_53 {dimension_numbers = #tpu.dot_dimension_numbers<[1], [0], [0], [1], [0, 0, 1, 1], [], []>} : vector<64x256xf32>, vector<256x256xf32>, vector<64x256xf32> -> vector<64x256xf32>
    %36 = arith.addf %30, %35 : vector<64x256xf32>
    %c1_54 = arith.constant 1 : index
    %c0_55 = arith.constant 0 : index
    %c0_56 = arith.constant 0 : index
    %37 = vector.load %arg7[%c1_54, %c0_55, %c0_56] : memref<10x10x256xf32, #tpu.memory_space<vmem>>, vector<8x8x256xf32>
    %38 = vector.shape_cast %37 : vector<8x8x256xf32> to vector<64x256xf32>
    %c3 = arith.constant 3 : index
    %c0_57 = arith.constant 0 : index
    %c0_58 = arith.constant 0 : index
    %39 = vector.load %arg2[%c3, %c0_57, %c0_58] : memref<9x256x256xf32, #tpu.memory_space<vmem>>, vector<1x256x256xf32>
    %40 = vector.shape_cast %39 : vector<1x256x256xf32> to vector<256x256xf32>
    %cst_59 = arith.constant dense<0.000000e+00> : vector<64x256xf32>
    %41 = tpu.matmul %38, %40, %cst_59 {dimension_numbers = #tpu.dot_dimension_numbers<[1], [0], [0], [1], [0, 0, 1, 1], [], []>} : vector<64x256xf32>, vector<256x256xf32>, vector<64x256xf32> -> vector<64x256xf32>
    %42 = arith.addf %36, %41 : vector<64x256xf32>
    %c1_60 = arith.constant 1 : index
    %c1_61 = arith.constant 1 : index
    %c0_62 = arith.constant 0 : index
    %43 = vector.load %arg7[%c1_60, %c1_61, %c0_62] : memref<10x10x256xf32, #tpu.memory_space<vmem>>, vector<8x8x256xf32>
    %44 = vector.shape_cast %43 : vector<8x8x256xf32> to vector<64x256xf32>
    %c4 = arith.constant 4 : index
    %c0_63 = arith.constant 0 : index
    %c0_64 = arith.constant 0 : index
    %45 = vector.load %arg2[%c4, %c0_63, %c0_64] : memref<9x256x256xf32, #tpu.memory_space<vmem>>, vector<1x256x256xf32>
    %46 = vector.shape_cast %45 : vector<1x256x256xf32> to vector<256x256xf32>
    %cst_65 = arith.constant dense<0.000000e+00> : vector<64x256xf32>
    %47 = tpu.matmul %44, %46, %cst_65 {dimension_numbers = #tpu.dot_dimension_numbers<[1], [0], [0], [1], [0, 0, 1, 1], [], []>} : vector<64x256xf32>, vector<256x256xf32>, vector<64x256xf32> -> vector<64x256xf32>
    %48 = arith.addf %42, %47 : vector<64x256xf32>
    %c1_66 = arith.constant 1 : index
    %c2_67 = arith.constant 2 : index
    %c0_68 = arith.constant 0 : index
    %49 = vector.load %arg7[%c1_66, %c2_67, %c0_68] : memref<10x10x256xf32, #tpu.memory_space<vmem>>, vector<8x8x256xf32>
    %50 = vector.shape_cast %49 : vector<8x8x256xf32> to vector<64x256xf32>
    %c5 = arith.constant 5 : index
    %c0_69 = arith.constant 0 : index
    %c0_70 = arith.constant 0 : index
    %51 = vector.load %arg2[%c5, %c0_69, %c0_70] : memref<9x256x256xf32, #tpu.memory_space<vmem>>, vector<1x256x256xf32>
    %52 = vector.shape_cast %51 : vector<1x256x256xf32> to vector<256x256xf32>
    %cst_71 = arith.constant dense<0.000000e+00> : vector<64x256xf32>
    %53 = tpu.matmul %50, %52, %cst_71 {dimension_numbers = #tpu.dot_dimension_numbers<[1], [0], [0], [1], [0, 0, 1, 1], [], []>} : vector<64x256xf32>, vector<256x256xf32>, vector<64x256xf32> -> vector<64x256xf32>
    %54 = arith.addf %48, %53 : vector<64x256xf32>
    %c2_72 = arith.constant 2 : index
    %c0_73 = arith.constant 0 : index
    %c0_74 = arith.constant 0 : index
    %55 = vector.load %arg7[%c2_72, %c0_73, %c0_74] : memref<10x10x256xf32, #tpu.memory_space<vmem>>, vector<8x8x256xf32>
    %56 = vector.shape_cast %55 : vector<8x8x256xf32> to vector<64x256xf32>
    %c6 = arith.constant 6 : index
    %c0_75 = arith.constant 0 : index
    %c0_76 = arith.constant 0 : index
    %57 = vector.load %arg2[%c6, %c0_75, %c0_76] : memref<9x256x256xf32, #tpu.memory_space<vmem>>, vector<1x256x256xf32>
    %58 = vector.shape_cast %57 : vector<1x256x256xf32> to vector<256x256xf32>
    %cst_77 = arith.constant dense<0.000000e+00> : vector<64x256xf32>
    %59 = tpu.matmul %56, %58, %cst_77 {dimension_numbers = #tpu.dot_dimension_numbers<[1], [0], [0], [1], [0, 0, 1, 1], [], []>} : vector<64x256xf32>, vector<256x256xf32>, vector<64x256xf32> -> vector<64x256xf32>
    %60 = arith.addf %54, %59 : vector<64x256xf32>
    %c2_78 = arith.constant 2 : index
    %c1_79 = arith.constant 1 : index
    %c0_80 = arith.constant 0 : index
    %61 = vector.load %arg7[%c2_78, %c1_79, %c0_80] : memref<10x10x256xf32, #tpu.memory_space<vmem>>, vector<8x8x256xf32>
    %62 = vector.shape_cast %61 : vector<8x8x256xf32> to vector<64x256xf32>
    %c7 = arith.constant 7 : index
    %c0_81 = arith.constant 0 : index
    %c0_82 = arith.constant 0 : index
    %63 = vector.load %arg2[%c7, %c0_81, %c0_82] : memref<9x256x256xf32, #tpu.memory_space<vmem>>, vector<1x256x256xf32>
    %64 = vector.shape_cast %63 : vector<1x256x256xf32> to vector<256x256xf32>
    %cst_83 = arith.constant dense<0.000000e+00> : vector<64x256xf32>
    %65 = tpu.matmul %62, %64, %cst_83 {dimension_numbers = #tpu.dot_dimension_numbers<[1], [0], [0], [1], [0, 0, 1, 1], [], []>} : vector<64x256xf32>, vector<256x256xf32>, vector<64x256xf32> -> vector<64x256xf32>
    %66 = arith.addf %60, %65 : vector<64x256xf32>
    %c2_84 = arith.constant 2 : index
    %c2_85 = arith.constant 2 : index
    %c0_86 = arith.constant 0 : index
    %67 = vector.load %arg7[%c2_84, %c2_85, %c0_86] : memref<10x10x256xf32, #tpu.memory_space<vmem>>, vector<8x8x256xf32>
    %68 = vector.shape_cast %67 : vector<8x8x256xf32> to vector<64x256xf32>
    %c8 = arith.constant 8 : index
    %c0_87 = arith.constant 0 : index
    %c0_88 = arith.constant 0 : index
    %69 = vector.load %arg2[%c8, %c0_87, %c0_88] : memref<9x256x256xf32, #tpu.memory_space<vmem>>, vector<1x256x256xf32>
    %70 = vector.shape_cast %69 : vector<1x256x256xf32> to vector<256x256xf32>
    %cst_89 = arith.constant dense<0.000000e+00> : vector<64x256xf32>
    %71 = tpu.matmul %68, %70, %cst_89 {dimension_numbers = #tpu.dot_dimension_numbers<[1], [0], [0], [1], [0, 0, 1, 1], [], []>} : vector<64x256xf32>, vector<256x256xf32>, vector<64x256xf32> -> vector<64x256xf32>
    %72 = arith.addf %66, %71 : vector<64x256xf32>
    %c0_90 = arith.constant 0 : index
    %c0_91 = arith.constant 0 : index
    %73 = vector.load %arg4[%c0_90, %c0_91] : memref<1x256xf32, #tpu.memory_space<vmem>>, vector<1x256xf32>
    %74 = vector.broadcast %73 : vector<1x256xf32> to vector<64x256xf32>
    %75 = arith.addf %72, %74 : vector<64x256xf32>
    %cst_92 = arith.constant 0.000000e+00 : f32
    %76 = vector.broadcast %cst_92 : f32 to vector<64x256xf32>
    %77 = arith.maximumf %75, %76 : vector<64x256xf32>
    %78 = vector.shape_cast %77 : vector<64x256xf32> to vector<8x8x256xf32>
    %c1_93 = arith.constant 1 : index
    %c1_94 = arith.constant 1 : index
    %c0_95 = arith.constant 0 : index
    %79 = vector.load %arg8[%c1_93, %c1_94, %c0_95] : memref<10x10x256xf32, #tpu.memory_space<vmem>>, vector<8x8x256xf32>
    tpu.vector_store %arg8[%c1_93, %c1_94, %c0_95], %78 {strides = array<i32>} : memref<10x10x256xf32, #tpu.memory_space<vmem>>, vector<8x8x256xf32>,
    %c0_96 = arith.constant 0 : index
    %c0_97 = arith.constant 0 : index
    %c0_98 = arith.constant 0 : index
    %80 = vector.load %arg8[%c0_96, %c0_97, %c0_98] : memref<10x10x256xf32, #tpu.memory_space<vmem>>, vector<8x8x256xf32>
    %81 = vector.shape_cast %80 : vector<8x8x256xf32> to vector<64x256xf32>
    %c0_99 = arith.constant 0 : index
    %c0_100 = arith.constant 0 : index
    %c0_101 = arith.constant 0 : index
    %82 = vector.load %arg3[%c0_99, %c0_100, %c0_101] : memref<9x256x256xf32, #tpu.memory_space<vmem>>, vector<1x256x256xf32>
    %83 = vector.shape_cast %82 : vector<1x256x256xf32> to vector<256x256xf32>
    %cst_102 = arith.constant dense<0.000000e+00> : vector<64x256xf32>
    %84 = tpu.matmul %81, %83, %cst_102 {dimension_numbers = #tpu.dot_dimension_numbers<[1], [0], [0], [1], [0, 0, 1, 1], [], []>} : vector<64x256xf32>, vector<256x256xf32>, vector<64x256xf32> -> vector<64x256xf32>
    %c0_103 = arith.constant 0 : index
    %c1_104 = arith.constant 1 : index
    %c0_105 = arith.constant 0 : index
    %85 = vector.load %arg8[%c0_103, %c1_104, %c0_105] : memref<10x10x256xf32, #tpu.memory_space<vmem>>, vector<8x8x256xf32>
    %86 = vector.shape_cast %85 : vector<8x8x256xf32> to vector<64x256xf32>
    %c1_106 = arith.constant 1 : index
    %c0_107 = arith.constant 0 : index
    %c0_108 = arith.constant 0 : index
    %87 = vector.load %arg3[%c1_106, %c0_107, %c0_108] : memref<9x256x256xf32, #tpu.memory_space<vmem>>, vector<1x256x256xf32>
    %88 = vector.shape_cast %87 : vector<1x256x256xf32> to vector<256x256xf32>
    %cst_109 = arith.constant dense<0.000000e+00> : vector<64x256xf32>
    %89 = tpu.matmul %86, %88, %cst_109 {dimension_numbers = #tpu.dot_dimension_numbers<[1], [0], [0], [1], [0, 0, 1, 1], [], []>} : vector<64x256xf32>, vector<256x256xf32>, vector<64x256xf32> -> vector<64x256xf32>
    %90 = arith.addf %84, %89 : vector<64x256xf32>
    %c0_110 = arith.constant 0 : index
    %c2_111 = arith.constant 2 : index
    %c0_112 = arith.constant 0 : index
    %91 = vector.load %arg8[%c0_110, %c2_111, %c0_112] : memref<10x10x256xf32, #tpu.memory_space<vmem>>, vector<8x8x256xf32>
    %92 = vector.shape_cast %91 : vector<8x8x256xf32> to vector<64x256xf32>
    %c2_113 = arith.constant 2 : index
    %c0_114 = arith.constant 0 : index
    %c0_115 = arith.constant 0 : index
    %93 = vector.load %arg3[%c2_113, %c0_114, %c0_115] : memref<9x256x256xf32, #tpu.memory_space<vmem>>, vector<1x256x256xf32>
    %94 = vector.shape_cast %93 : vector<1x256x256xf32> to vector<256x256xf32>
    %cst_116 = arith.constant dense<0.000000e+00> : vector<64x256xf32>
    %95 = tpu.matmul %92, %94, %cst_116 {dimension_numbers = #tpu.dot_dimension_numbers<[1], [0], [0], [1], [0, 0, 1, 1], [], []>} : vector<64x256xf32>, vector<256x256xf32>, vector<64x256xf32> -> vector<64x256xf32>
    %96 = arith.addf %90, %95 : vector<64x256xf32>
    %c1_117 = arith.constant 1 : index
    %c0_118 = arith.constant 0 : index
    %c0_119 = arith.constant 0 : index
    %97 = vector.load %arg8[%c1_117, %c0_118, %c0_119] : memref<10x10x256xf32, #tpu.memory_space<vmem>>, vector<8x8x256xf32>
    %98 = vector.shape_cast %97 : vector<8x8x256xf32> to vector<64x256xf32>
    %c3_120 = arith.constant 3 : index
    %c0_121 = arith.constant 0 : index
    %c0_122 = arith.constant 0 : index
    %99 = vector.load %arg3[%c3_120, %c0_121, %c0_122] : memref<9x256x256xf32, #tpu.memory_space<vmem>>, vector<1x256x256xf32>
    %100 = vector.shape_cast %99 : vector<1x256x256xf32> to vector<256x256xf32>
    %cst_123 = arith.constant dense<0.000000e+00> : vector<64x256xf32>
    %101 = tpu.matmul %98, %100, %cst_123 {dimension_numbers = #tpu.dot_dimension_numbers<[1], [0], [0], [1], [0, 0, 1, 1], [], []>} : vector<64x256xf32>, vector<256x256xf32>, vector<64x256xf32> -> vector<64x256xf32>
    %102 = arith.addf %96, %101 : vector<64x256xf32>
    %c1_124 = arith.constant 1 : index
    %c1_125 = arith.constant 1 : index
    %c0_126 = arith.constant 0 : index
    %103 = vector.load %arg8[%c1_124, %c1_125, %c0_126] : memref<10x10x256xf32, #tpu.memory_space<vmem>>, vector<8x8x256xf32>
    %104 = vector.shape_cast %103 : vector<8x8x256xf32> to vector<64x256xf32>
    %c4_127 = arith.constant 4 : index
    %c0_128 = arith.constant 0 : index
    %c0_129 = arith.constant 0 : index
    %105 = vector.load %arg3[%c4_127, %c0_128, %c0_129] : memref<9x256x256xf32, #tpu.memory_space<vmem>>, vector<1x256x256xf32>
    %106 = vector.shape_cast %105 : vector<1x256x256xf32> to vector<256x256xf32>
    %cst_130 = arith.constant dense<0.000000e+00> : vector<64x256xf32>
    %107 = tpu.matmul %104, %106, %cst_130 {dimension_numbers = #tpu.dot_dimension_numbers<[1], [0], [0], [1], [0, 0, 1, 1], [], []>} : vector<64x256xf32>, vector<256x256xf32>, vector<64x256xf32> -> vector<64x256xf32>
    %108 = arith.addf %102, %107 : vector<64x256xf32>
    %c1_131 = arith.constant 1 : index
    %c2_132 = arith.constant 2 : index
    %c0_133 = arith.constant 0 : index
    %109 = vector.load %arg8[%c1_131, %c2_132, %c0_133] : memref<10x10x256xf32, #tpu.memory_space<vmem>>, vector<8x8x256xf32>
    %110 = vector.shape_cast %109 : vector<8x8x256xf32> to vector<64x256xf32>
    %c5_134 = arith.constant 5 : index
    %c0_135 = arith.constant 0 : index
    %c0_136 = arith.constant 0 : index
    %111 = vector.load %arg3[%c5_134, %c0_135, %c0_136] : memref<9x256x256xf32, #tpu.memory_space<vmem>>, vector<1x256x256xf32>
    %112 = vector.shape_cast %111 : vector<1x256x256xf32> to vector<256x256xf32>
    %cst_137 = arith.constant dense<0.000000e+00> : vector<64x256xf32>
    %113 = tpu.matmul %110, %112, %cst_137 {dimension_numbers = #tpu.dot_dimension_numbers<[1], [0], [0], [1], [0, 0, 1, 1], [], []>} : vector<64x256xf32>, vector<256x256xf32>, vector<64x256xf32> -> vector<64x256xf32>
    %114 = arith.addf %108, %113 : vector<64x256xf32>
    %c2_138 = arith.constant 2 : index
    %c0_139 = arith.constant 0 : index
    %c0_140 = arith.constant 0 : index
    %115 = vector.load %arg8[%c2_138, %c0_139, %c0_140] : memref<10x10x256xf32, #tpu.memory_space<vmem>>, vector<8x8x256xf32>
    %116 = vector.shape_cast %115 : vector<8x8x256xf32> to vector<64x256xf32>
    %c6_141 = arith.constant 6 : index
    %c0_142 = arith.constant 0 : index
    %c0_143 = arith.constant 0 : index
    %117 = vector.load %arg3[%c6_141, %c0_142, %c0_143] : memref<9x256x256xf32, #tpu.memory_space<vmem>>, vector<1x256x256xf32>
    %118 = vector.shape_cast %117 : vector<1x256x256xf32> to vector<256x256xf32>
    %cst_144 = arith.constant dense<0.000000e+00> : vector<64x256xf32>
    %119 = tpu.matmul %116, %118, %cst_144 {dimension_numbers = #tpu.dot_dimension_numbers<[1], [0], [0], [1], [0, 0, 1, 1], [], []>} : vector<64x256xf32>, vector<256x256xf32>, vector<64x256xf32> -> vector<64x256xf32>
    %120 = arith.addf %114, %119 : vector<64x256xf32>
    %c2_145 = arith.constant 2 : index
    %c1_146 = arith.constant 1 : index
    %c0_147 = arith.constant 0 : index
    %121 = vector.load %arg8[%c2_145, %c1_146, %c0_147] : memref<10x10x256xf32, #tpu.memory_space<vmem>>, vector<8x8x256xf32>
    %122 = vector.shape_cast %121 : vector<8x8x256xf32> to vector<64x256xf32>
    %c7_148 = arith.constant 7 : index
    %c0_149 = arith.constant 0 : index
    %c0_150 = arith.constant 0 : index
    %123 = vector.load %arg3[%c7_148, %c0_149, %c0_150] : memref<9x256x256xf32, #tpu.memory_space<vmem>>, vector<1x256x256xf32>
    %124 = vector.shape_cast %123 : vector<1x256x256xf32> to vector<256x256xf32>
    %cst_151 = arith.constant dense<0.000000e+00> : vector<64x256xf32>
    %125 = tpu.matmul %122, %124, %cst_151 {dimension_numbers = #tpu.dot_dimension_numbers<[1], [0], [0], [1], [0, 0, 1, 1], [], []>} : vector<64x256xf32>, vector<256x256xf32>, vector<64x256xf32> -> vector<64x256xf32>
    %126 = arith.addf %120, %125 : vector<64x256xf32>
    %c2_152 = arith.constant 2 : index
    %c2_153 = arith.constant 2 : index
    %c0_154 = arith.constant 0 : index
    %127 = vector.load %arg8[%c2_152, %c2_153, %c0_154] : memref<10x10x256xf32, #tpu.memory_space<vmem>>, vector<8x8x256xf32>
    %128 = vector.shape_cast %127 : vector<8x8x256xf32> to vector<64x256xf32>
    %c8_155 = arith.constant 8 : index
    %c0_156 = arith.constant 0 : index
    %c0_157 = arith.constant 0 : index
    %129 = vector.load %arg3[%c8_155, %c0_156, %c0_157] : memref<9x256x256xf32, #tpu.memory_space<vmem>>, vector<1x256x256xf32>
    %130 = vector.shape_cast %129 : vector<1x256x256xf32> to vector<256x256xf32>
    %cst_158 = arith.constant dense<0.000000e+00> : vector<64x256xf32>
    %131 = tpu.matmul %128, %130, %cst_158 {dimension_numbers = #tpu.dot_dimension_numbers<[1], [0], [0], [1], [0, 0, 1, 1], [], []>} : vector<64x256xf32>, vector<256x256xf32>, vector<64x256xf32> -> vector<64x256xf32>
    %132 = arith.addf %126, %131 : vector<64x256xf32>
    %c0_159 = arith.constant 0 : index
    %c0_160 = arith.constant 0 : index
    %133 = vector.load %arg5[%c0_159, %c0_160] : memref<1x256xf32, #tpu.memory_space<vmem>>, vector<1x256xf32>
    %134 = vector.broadcast %133 : vector<1x256xf32> to vector<64x256xf32>
    %135 = arith.addf %132, %134 : vector<64x256xf32>
    %136 = arith.addf %135, %17 : vector<64x256xf32>
    %cst_161 = arith.constant 0.000000e+00 : f32
    %137 = vector.broadcast %cst_161 : f32 to vector<64x256xf32>
    %138 = arith.maximumf %136, %137 : vector<64x256xf32>
    %c0_162 = arith.constant 0 : index
    %c0_163 = arith.constant 0 : index
    %c0_164 = arith.constant 0 : index
    %139 = vector.load %arg6[%c0_162, %c0_163, %c0_164] : memref<1x64x256xf32, #tpu.memory_space<vmem>>, vector<1x64x256xf32>
    %140 = vector.shape_cast %139 : vector<1x64x256xf32> to vector<64x256xf32>
    %141 = vector.shape_cast %138 : vector<64x256xf32> to vector<1x64x256xf32>
    tpu.vector_store %arg6[%c0_162, %c0_163, %c0_164], %141 {strides = array<i32>} : memref<1x64x256xf32, #tpu.memory_space<vmem>>, vector<1x64x256xf32>,
    return
  }
  func.func @transform_0(%arg0: i32) -> (i32, i32, i32) {
    %c0_i32 = arith.constant 0 : i32
    %c0_i32_0 = arith.constant 0 : i32
    %c0_i32_1 = arith.constant 0 : i32
    return %arg0, %c0_i32, %c0_i32_0 : i32, i32, i32
  }
  func.func @transform_1(%arg0: i32) -> (i32, i32, i32) {
    %c0_i32 = arith.constant 0 : i32
    %c0_i32_0 = arith.constant 0 : i32
    %c0_i32_1 = arith.constant 0 : i32
    %c0_i32_2 = arith.constant 0 : i32
    return %c0_i32, %c0_i32_0, %c0_i32_1 : i32, i32, i32
  }
  func.func @transform_2(%arg0: i32) -> (i32, i32, i32) {
    %c0_i32 = arith.constant 0 : i32
    %c0_i32_0 = arith.constant 0 : i32
    %c0_i32_1 = arith.constant 0 : i32
    %c0_i32_2 = arith.constant 0 : i32
    return %c0_i32, %c0_i32_0, %c0_i32_1 : i32, i32, i32
  }
  func.func @transform_3(%arg0: i32) -> (i32, i32) {
    %c0_i32 = arith.constant 0 : i32
    %c0_i32_0 = arith.constant 0 : i32
    %c0_i32_1 = arith.constant 0 : i32
    return %c0_i32, %c0_i32_0 : i32, i32
  }
  func.func @transform_4(%arg0: i32) -> (i32, i32) {
    %c0_i32 = arith.constant 0 : i32
    %c0_i32_0 = arith.constant 0 : i32
    %c0_i32_1 = arith.constant 0 : i32
    return %c0_i32, %c0_i32_0 : i32, i32
  }
  func.func @transform_5(%arg0: i32) -> (i32, i32, i32) {
    %c0_i32 = arith.constant 0 : i32
    %c0_i32_0 = arith.constant 0 : i32
    %c0_i32_1 = arith.constant 0 : i32
    return %arg0, %c0_i32, %c0_i32_0 : i32, i32, i32
  }
}

</mosaic_0001>

<llo_original>
// kernel: tile.13
$region0: #{tile.13}
  #allocation0 [shape = 's32[1]{0}', space=sflag, size = 0x4, scoped, tag = 'scoped memory for tile.13']
  %s0 = inlined_call_operand.vmem [shape: f32[32], index: 0, kind: input, shape index: {}]
  %s1 = inlined_call_operand.vmem [shape: f32[8,32], index: 1, kind: output, shape index: {}]
  // Predicated region
  $region2: #{tile.13} parent=0 // pred_check
    _
  $region3: #{tile.13} parent=0 // pred_check_branch
    %3 = sbr.rel (0) target = $region5
  $region4: #{tile.13} parent=0 // pred_region
    _
  $region5: #{tile.13} parent=0 // pred_fallthru
    _
  %v4 = vld [vmem:[%s0] ss:$0 sm:$0xff]
  %5 = vst [vmem:[%s1] sm:$0xff] %v4

// kernel: tile.14
$region0: #{tile.14}
  %s0 = inlined_call_operand.vmem [shape: f32[8,32], index: 0, kind: input, shape index: {}]
  %s1 = inlined_call_operand.vmem [shape: f32[1,256], index: 1, kind: output, shape index: {}]
  $region1: #{tile.14} parent=0
    #allocation0 [shape = 'u8[8192]{0}', space=vmem, size = 0x2000, scoped, tag = 'scoped mem for output reshape']
    %s2 = smov 3
    %v3 = vld [vmem:[%s0] ss:$4 sm:%s2]
    %vm4 = vcmask 261120
    %5 = vst.msk [vmem:[#allocation0] ss:$8 sm:$0x3] %vm4, %v3
    %s6 = scalar_lea.vmem %s0, 3
    %s7 = smov 3
    %v8 = vld [vmem:[%s6] ss:$4 sm:%s7]
    %9 = vrot.lane.b32.xlu0 %v8, 96
    %v10 = vpop.permute.xlu0 %9
    %vm11 = vcmask 1048320
    %12 = vst.msk [vmem:[#allocation0] ss:$8 sm:$0x3] %vm11, %v10
    %s13 = scalar_lea.vmem %s0, 2
    %s14 = smov 3
    %v15 = vld [vmem:[%s13] ss:$4 sm:%s14]
    %16 = vrot.lane.b32.xlu0 %v15, 64
    %v17 = vpop.permute.xlu0 %16
    %vm18 = vcmask 785920
    %19 = vst.msk [vmem:[#allocation0] ss:$8 sm:$0x3] %vm18, %v17
    %s20 = scalar_lea.vmem %s0, 1
    %s21 = smov 3
    %v22 = vld [vmem:[%s20] ss:$4 sm:%s21]
    %23 = vrot.lane.b32.xlu0 %v22, 32
    %v24 = vpop.permute.xlu0 %23
    %vm25 = vcmask 523520
    %26 = vst.msk [vmem:[#allocation0] ss:$8 sm:$0x3] %vm25, %v24
    %s28 = sshllo.u32 0, 1
    %v30 = vld [vmem:[#allocation0] sm:%s28]
    %s31 = sshllo.u32 0, 1
    %32 = vst [vmem:[%s1] sm:%s31] %v30
    %s33 = scalar_lea.vmem [#allocation0], 8
    %v34 = vld [vmem:[%s33] sm:%s28]
    %s35 = sshllo.u32 0, 1
    %s36 = scalar_lea.vmem %s1, 1
    %37 = vst [vmem:[%s36] sm:%s35] %v34

// kernel: _lambda_.1
$region0: #{_lambda_.1}
  #allocation0 [shape = 'u32[]', space=smem, size = 0x4, offset = 0x4, fixed_abs, tag = 'smem constant byte address 0x4 - core index']
  #allocation1 [shape = 'u32[144,128]{1,0:T(1,128)}', space=vmem, size = 0x12000, scoped, tag = 'internal scratch']
  #allocation2 [shape = 'f32[10,10,256]{2,1,0:T(8,128)}', space=vmem, size = 0x28000, scoped, tag = 'scratch operand']
  #allocation3 [shape = 'f32[10,10,256]{2,1,0:T(8,128)}', space=vmem, size = 0x28000, scoped, tag = 'scratch operand']
  %s0 = inlined_call_operand.vmem [shape: f32[2,64,256], index: 0, kind: input, shape index: {}]
  %s1 = inlined_call_operand.vmem [shape: f32[9,256,256], index: 1, kind: input, shape index: {}]
  %s2 = inlined_call_operand.vmem [shape: f32[9,256,256], index: 2, kind: input, shape index: {}]
  %s3 = inlined_call_operand.vmem [shape: f32[1,256], index: 3, kind: input, shape index: {}]
  %s4 = inlined_call_operand.vmem [shape: f32[1,256], index: 4, kind: input, shape index: {}]
  %s5 = inlined_call_operand.vmem [shape: f32[2,64,256], index: 5, kind: output, shape index: {}]
  %s6 = sld [smem:[#allocation0]]
  $region53: #{_lambda_.1} parent=0
    _
  %s8 = ssub.s32 1, %s6
  %s9 = scalar_select 0, %s8, %s6
  loop: start=0, step=1, limit=4
  $region2: #{_lambda_.1} parent=0 // loop_pre_header
    _
  $region3: #{_lambda_.1} parent=0 // loop_header
    %s11 = sphi 0, %s15
    %p12 = scmp.ge.s32.totalorder %s11, 4
    %s21 = sphi 0, %s23
    %s24 = sphi 0, %s21
    %s25 = sphi 0, %s24
    %s41 = sphi 0, %s25
    %s45 = sphi 0, %s45
    %s47 = sphi 0, %s45
    %s48 = sphi 0, %s47
    %s62 = sphi 0, %s48
    %s66 = sphi 0, %s66
    %s68 = sphi 0, %s66
    %s69 = sphi 0, %s68
    %s83 = sphi 0, %s69
    %s87 = sphi 0, %s87
    %s89 = sphi 0, %s87
    %s90 = sphi 0, %s89
    %s104 = sphi 0, %s90
    %s108 = sphi 0, %s108
    %s110 = sphi 0, %s108
    %s111 = sphi 0, %s110
    %s125 = sphi 0, %s111
    %s131 = sphi 0, %s133
    %s134 = sphi 0, %s131
    %s135 = sphi 0, %s134
    %s151 = sphi 0, %s135
  $region4: #{_lambda_.1} parent=0 // loop_header_branch
    %14 = sbr.rel (%p12) target = $region8
  $region5: #{_lambda_.1} parent=0 // loop_body
    %s16 = ssub.s32 %s11, 1
    %s17 = ssub.s32 %s11, 2
    %s18 = sadd.s32 %s11, 1
    %s19 = ssub.s32 %s11, %s18
    %p20 = scmp.eq.s32.totalorder %s19, 0
    %s22 = sadd.s32 %s21, 1
    %s23 = scalar_select %p20, %s21, %s22
    %p26 = pneg %p20
    %p27 = scmp.eq.s32.totalorder %s11, 1
    %p28 = por %p26, %p27
    %p29 = scmp.ne.s32.totalorder %s21, %s24
    %p30 = scmp.eq.s32.totalorder %s11, 0
    %p31 = por %p29, %p30
    %p32 = scmp.ne.s32.totalorder %s21, %s24
    %p33 = scmp.eq.s32.totalorder %s16, 1
    %p34 = por %p32, %p33
    %p35 = scmp.ne.s32.totalorder %s24, %s25
    %p36 = scmp.eq.s32.totalorder %s16, 0
    %p37 = por %p35, %p36
    %p38 = scmp.ne.s32.totalorder %s24, %s25
    %p39 = scmp.eq.s32.totalorder %s17, 1
    %p40 = por %p38, %p39
    %p42 = scmp.ne.s32.totalorder %s25, %s41
    %p43 = scmp.eq.s32.totalorder %s17, 0
    %p44 = por %p42, %p43
    %s46 = sadd.s32 %s45, 1
    %p49 = scmp.eq.s32.totalorder %s11, 1
    %p50 = scmp.ne.s32.totalorder %s45, %s47
    %p51 = scmp.eq.s32.totalorder %s11, 0
    %p52 = por %p50, %p51
    %p53 = scmp.ne.s32.totalorder %s45, %s47
    %p54 = scmp.eq.s32.totalorder %s16, 1
    %p55 = por %p53, %p54
    %p56 = scmp.ne.s32.totalorder %s47, %s48
    %p57 = scmp.eq.s32.totalorder %s16, 0
    %p58 = por %p56, %p57
    %p59 = scmp.ne.s32.totalorder %s47, %s48
    %p60 = scmp.eq.s32.totalorder %s17, 1
    %p61 = por %p59, %p60
    %p63 = scmp.ne.s32.totalorder %s48, %s62
    %p64 = scmp.eq.s32.totalorder %s17, 0
    %p65 = por %p63, %p64
    %s67 = sadd.s32 %s66, 1
    %p70 = scmp.eq.s32.totalorder %s11, 1
    %p71 = scmp.ne.s32.totalorder %s66, %s68
    %p72 = scmp.eq.s32.totalorder %s11, 0
    %p73 = por %p71, %p72
    %p74 = scmp.ne.s32.totalorder %s66, %s68
    %p75 = scmp.eq.s32.totalorder %s16, 1
    %p76 = por %p74, %p75
    %p77 = scmp.ne.s32.totalorder %s68, %s69
    %p78 = scmp.eq.s32.totalorder %s16, 0
    %p79 = por %p77, %p78
    %p80 = scmp.ne.s32.totalorder %s68, %s69
    %p81 = scmp.eq.s32.totalorder %s17, 1
    %p82 = por %p80, %p81
    %p84 = scmp.ne.s32.totalorder %s69, %s83
    %p85 = scmp.eq.s32.totalorder %s17, 0
    %p86 = por %p84, %p85
    %s88 = sadd.s32 %s87, 1
    %p91 = scmp.eq.s32.totalorder %s11, 1
    %p92 = scmp.ne.s32.totalorder %s87, %s89
    %p93 = scmp.eq.s32.totalorder %s11, 0
    %p94 = por %p92, %p93
    %p95 = scmp.ne.s32.totalorder %s87, %s89
    %p96 = scmp.eq.s32.totalorder %s16, 1
    %p97 = por %p95, %p96
    %p98 = scmp.ne.s32.totalorder %s89, %s90
    %p99 = scmp.eq.s32.totalorder %s16, 0
    %p100 = por %p98, %p99
    %p101 = scmp.ne.s32.totalorder %s89, %s90
    %p102 = scmp.eq.s32.totalorder %s17, 1
    %p103 = por %p101, %p102
    %p105 = scmp.ne.s32.totalorder %s90, %s104
    %p106 = scmp.eq.s32.totalorder %s17, 0
    %p107 = por %p105, %p106
    %s109 = sadd.s32 %s108, 1
    %p112 = scmp.eq.s32.totalorder %s11, 1
    %p113 = scmp.ne.s32.totalorder %s108, %s110
    %p114 = scmp.eq.s32.totalorder %s11, 0
    %p115 = por %p113, %p114
    %p116 = scmp.ne.s32.totalorder %s108, %s110
    %p117 = scmp.eq.s32.totalorder %s16, 1
    %p118 = por %p116, %p117
    %p119 = scmp.ne.s32.totalorder %s110, %s111
    %p120 = scmp.eq.s32.totalorder %s16, 0
    %p121 = por %p119, %p120
    %p122 = scmp.ne.s32.totalorder %s110, %s111
    %p123 = scmp.eq.s32.totalorder %s17, 1
    %p124 = por %p122, %p123
    %p126 = scmp.ne.s32.totalorder %s111, %s125
    %p127 = scmp.eq.s32.totalorder %s17, 0
    %p128 = por %p126, %p127
    %s129 = ssub.s32 %s11, %s18
    %p130 = scmp.eq.s32.totalorder %s129, 0
    %s132 = sadd.s32 %s131, 1
    %s133 = scalar_select %p130, %s131, %s132
    %p136 = pneg %p130
    %p137 = scmp.eq.s32.totalorder %s11, 1
    %p138 = por %p136, %p137
    %p139 = scmp.ne.s32.totalorder %s131, %s134
    %p140 = scmp.eq.s32.totalorder %s11, 0
    %p141 = por %p139, %p140
    %p142 = scmp.ne.s32.totalorder %s131, %s134
    %p143 = scmp.eq.s32.totalorder %s16, 1
    %p144 = por %p142, %p143
    %p145 = scmp.ne.s32.totalorder %s134, %s135
    %p146 = scmp.eq.s32.totalorder %s16, 0
    %p147 = por %p145, %p146
    %p148 = scmp.ne.s32.totalorder %s134, %s135
    %p149 = scmp.eq.s32.totalorder %s17, 1
    %p150 = por %p148, %p149
    %p152 = scmp.ne.s32.totalorder %s135, %s151
    %p153 = scmp.eq.s32.totalorder %s17, 0
    %p154 = por %p152, %p153
    %p155 = scmp.le.s32.totalorder 1, %s11
    %p156 = scmp.lt.s32.totalorder %s11, 3
    %p157 = pnand %p155, %p156
    %p158 = pneg %p157
    // Predicated region
    $region9: #{_lambda_.1} parent=5 // pred_check
      _
    $region10: #{_lambda_.1} parent=5 // pred_check_branch
      %160 = sbr.rel (%p157) target = $region12
    $region11: #{_lambda_.1} parent=5 // pred_region
      %s161 = ssub.s32 %s11, 1
      // Predicated region
      $region13: #{_lambda_.1} parent=11 // pred_check
        %p162 = pneg %p58
      $region14: #{_lambda_.1} parent=11 // pred_check_branch
        %164 = sbr.rel (%p162) target = $region16
      $region15: #{_lambda_.1} parent=11 // pred_region
        _
      $region16: #{_lambda_.1} parent=11 // pred_fallthru
        _
      // Predicated region
      $region17: #{_lambda_.1} parent=11 // pred_check
        %p165 = pneg %p79
      $region18: #{_lambda_.1} parent=11 // pred_check_branch
        %167 = sbr.rel (%p165) target = $region20
      $region19: #{_lambda_.1} parent=11 // pred_region
        _
      $region20: #{_lambda_.1} parent=11 // pred_fallthru
        _
      // Predicated region
      $region21: #{_lambda_.1} parent=11 // pred_check
        %p168 = pneg %p100
      $region22: #{_lambda_.1} parent=11 // pred_check_branch
        %170 = sbr.rel (%p168) target = $region24
      $region23: #{_lambda_.1} parent=11 // pred_region
        _
      $region24: #{_lambda_.1} parent=11 // pred_fallthru
        _
      // Predicated region
      $region25: #{_lambda_.1} parent=11 // pred_check
        %p171 = pneg %p121
      $region26: #{_lambda_.1} parent=11 // pred_check_branch
        %173 = sbr.rel (%p171) target = $region28
      $region27: #{_lambda_.1} parent=11 // pred_region
        _
      $region28: #{_lambda_.1} parent=11 // pred_fallthru
        _
    $region12: #{_lambda_.1} parent=5 // pred_fallthru
      _
    %p174 = scmp.lt.s32.totalorder %s11, 2
    // Predicated region
    $region29: #{_lambda_.1} parent=5 // pred_check
      %p175 = pneg %p174
    $region30: #{_lambda_.1} parent=5 // pred_check_branch
      %177 = sbr.rel (%p175) target = $region32
    $region31: #{_lambda_.1} parent=5 // pred_region
      // Predicated region
      $region33: #{_lambda_.1} parent=31 // pred_check
        %p178 = pneg %p31
      $region34: #{_lambda_.1} parent=31 // pred_check_branch
        %180 = sbr.rel (%p178) target = $region36
      $region35: #{_lambda_.1} parent=31 // pred_region
        %p181 = scmp.lt.s32.totalorder %s11, 1
        %s182 = scalar_select %p181, %s11, 1
        %s183 = smul.addr %s182, 16
        %s184 = smul.addr %s183, 8
        %s185 = scalar_lea.vmem %s0, %s184
      $region36: #{_lambda_.1} parent=31 // pred_fallthru
        _
    $region32: #{_lambda_.1} parent=5 // pred_fallthru
      _
    %p186 = scmp.le.s32.totalorder 1, %s11
    %p187 = scmp.lt.s32.totalorder %s11, 3
    %p188 = pnand %p186, %p187
    %p189 = pneg %p188
    // Predicated region
    $region37: #{_lambda_.1} parent=5 // pred_check
      _
    $region38: #{_lambda_.1} parent=5 // pred_check_branch
      %191 = sbr.rel (%p188) target = $region40
    $region39: #{_lambda_.1} parent=5 // pred_region
      %s192 = ssub.s32 %s11, 1
      %p193 = scmp.lt.s32.totalorder %s16, 1
      %s194 = scalar_select %p193, %s16, 1
      %s195 = smul.addr %s194, 16
      %s196 = smul.addr %s195, 8
      %s197 = scalar_lea.vmem %s0, %s196
      %p198 = pneg %p37
      %p199 = pneg %p34
      %p200 = pneg %p58
      %p201 = pneg %p55
      %p202 = pneg %p79
      %p203 = pneg %p76
      %p204 = pneg %p100
      %p205 = pneg %p97
      %p206 = pneg %p121
      %p207 = pneg %p118
      %p208 = pneg %p147
      %p209 = pneg %p144
      %p210 = scmp.lt.s32.totalorder %s16, 1
      %s211 = scalar_select %p210, %s16, 1
      %s212 = smul.addr %s211, 16
      %s213 = smul.addr %s212, 8
      %s214 = scalar_lea.vmem %s5, %s213
      %p215 = scmp.lt.s32.totalorder %s16, 1
      %s216 = scalar_select %p215, %s16, 1
      %s217 = smul.addr %s216, 16
      %s218 = smul.addr %s217, 8
      %s219 = scalar_lea.vmem %s0, %s218
      %p220 = scmp.lt.s32.totalorder %s16, 1
      %s221 = scalar_select %p220, %s16, 1
      %s222 = smul.addr %s221, 16
      %s223 = smul.addr %s222, 8
      %s224 = scalar_lea.vmem %s5, %s223
      %225 = vst [vmem:[#allocation2] sm:$0xff] 0.0
      %226 = vst [vmem:[#allocation2 + $0x8] sm:$0xff] 0.0
      %227 = vst [vmem:[#allocation2 + $0x10] sm:$0x3] 0.0
      %228 = vst [vmem:[#allocation2 + $0x18] sm:$0x3] 0.0
      %s229 = scalar_lea.vmem [#allocation2], 288
      %230 = vst [vmem:[%s229] sm:$0xff] 0.0
      %231 = vst [vmem:[%s229 + $0x8] sm:$0xff] 0.0
      %232 = vst [vmem:[%s229 + $0x10] sm:$0x3] 0.0
      %233 = vst [vmem:[%s229 + $0x18] sm:$0x3] 0.0
      %v234 = vlaneseq
      %vm235 = vcmp.ge.s32.totalorder %v234, 0
      %vm236 = vcmp.lt.s32.totalorder %v234, 256
      %vm237 = vmand %vm235, %vm236
      %238 = vst.msk [vmem:[#allocation2] ss:$8 sm:$0x3] %vm237, 0.0
      %239 = vst.msk [vmem:[#allocation2] ss:$8 sm:$0x0] %vm237, 0.0
      %s240 = scalar_lea.vmem [#allocation2], 32
      %241 = vst.msk [vmem:[%s240] ss:$8 sm:$0x3] %vm237, 0.0
      %242 = vst.msk [vmem:[%s240] ss:$8 sm:$0x0] %vm237, 0.0
      %s243 = scalar_lea.vmem [#allocation2], 64
      %244 = vst.msk [vmem:[%s243] ss:$8 sm:$0x3] %vm237, 0.0
      %245 = vst.msk [vmem:[%s243] ss:$8 sm:$0x0] %vm237, 0.0
      %s246 = scalar_lea.vmem [#allocation2], 96
      %247 = vst.msk [vmem:[%s246] ss:$8 sm:$0x3] %vm237, 0.0
      %248 = vst.msk [vmem:[%s246] ss:$8 sm:$0x0] %vm237, 0.0
      %s249 = scalar_lea.vmem [#allocation2], 128
      %250 = vst.msk [vmem:[%s249] ss:$8 sm:$0x3] %vm237, 0.0
      %251 = vst.msk [vmem:[%s249] ss:$8 sm:$0x0] %vm237, 0.0
      %s252 = scalar_lea.vmem [#allocation2], 160
      %253 = vst.msk [vmem:[%s252] ss:$8 sm:$0x3] %vm237, 0.0
      %254 = vst.msk [vmem:[%s252] ss:$8 sm:$0x0] %vm237, 0.0
      %s255 = scalar_lea.vmem [#allocation2], 192
      %256 = vst.msk [vmem:[%s255] ss:$8 sm:$0x3] %vm237, 0.0
      %257 = vst.msk [vmem:[%s255] ss:$8 sm:$0x0] %vm237, 0.0
      %s258 = scalar_lea.vmem [#allocation2], 224
      %259 = vst.msk [vmem:[%s258] ss:$8 sm:$0x3] %vm237, 0.0
      %260 = vst.msk [vmem:[%s258] ss:$8 sm:$0x0] %vm237, 0.0
      %s261 = scalar_lea.vmem [#allocation2], 256
      %262 = vst.msk [vmem:[%s261] ss:$8 sm:$0x3] %vm237, 0.0
      %263 = vst.msk [vmem:[%s261] ss:$8 sm:$0x0] %vm237, 0.0
      %s264 = scalar_lea.vmem [#allocation2], 288
      %265 = vst.msk [vmem:[%s264] ss:$8 sm:$0x3] %vm237, 0.0
      %266 = vst.msk [vmem:[%s264] ss:$8 sm:$0x0] %vm237, 0.0
      %s267 = scalar_lea.vmem [#allocation2], 17
      %268 = vst.msk [vmem:[%s267] ss:$8 sm:$0x3] %vm237, 0.0
      %269 = vst.msk [vmem:[%s267] ss:$8 sm:$0x0] %vm237, 0.0
      %s270 = scalar_lea.vmem [#allocation2], 49
      %271 = vst.msk [vmem:[%s270] ss:$8 sm:$0x3] %vm237, 0.0
      %272 = vst.msk [vmem:[%s270] ss:$8 sm:$0x0] %vm237, 0.0
      %s273 = scalar_lea.vmem [#allocation2], 81
      %274 = vst.msk [vmem:[%s273] ss:$8 sm:$0x3] %vm237, 0.0
      %275 = vst.msk [vmem:[%s273] ss:$8 sm:$0x0] %vm237, 0.0
      %s276 = scalar_lea.vmem [#allocation2], 113
      %277 = vst.msk [vmem:[%s276] ss:$8 sm:$0x3] %vm237, 0.0
      %278 = vst.msk [vmem:[%s276] ss:$8 sm:$0x0] %vm237, 0.0
      %s279 = scalar_lea.vmem [#allocation2], 145
      %280 = vst.msk [vmem:[%s279] ss:$8 sm:$0x3] %vm237, 0.0
      %281 = vst.msk [vmem:[%s279] ss:$8 sm:$0x0] %vm237, 0.0
      %s282 = scalar_lea.vmem [#allocation2], 177
      %283 = vst.msk [vmem:[%s282] ss:$8 sm:$0x3] %vm237, 0.0
      %284 = vst.msk [vmem:[%s282] ss:$8 sm:$0x0] %vm237, 0.0
      %s285 = scalar_lea.vmem [#allocation2], 209
      %286 = vst.msk [vmem:[%s285] ss:$8 sm:$0x3] %vm237, 0.0
      %287 = vst.msk [vmem:[%s285] ss:$8 sm:$0x0] %vm237, 0.0
      %s288 = scalar_lea.vmem [#allocation2], 241
      %289 = vst.msk [vmem:[%s288] ss:$8 sm:$0x3] %vm237, 0.0
      %290 = vst.msk [vmem:[%s288] ss:$8 sm:$0x0] %vm237, 0.0
      %s291 = scalar_lea.vmem [#allocation2], 273
      %292 = vst.msk [vmem:[%s291] ss:$8 sm:$0x3] %vm237, 0.0
      %293 = vst.msk [vmem:[%s291] ss:$8 sm:$0x0] %vm237, 0.0
      %s294 = scalar_lea.vmem [#allocation2], 305
      %295 = vst.msk [vmem:[%s294] ss:$8 sm:$0x3] %vm237, 0.0
      %296 = vst.msk [vmem:[%s294] ss:$8 sm:$0x0] %vm237, 0.0
      %297 = vst [vmem:[#allocation3] sm:$0xff] 0.0
      %298 = vst [vmem:[#allocation3 + $0x8] sm:$0xff] 0.0
      %299 = vst [vmem:[#allocation3 + $0x10] sm:$0x3] 0.0
      %300 = vst [vmem:[#allocation3 + $0x18] sm:$0x3] 0.0
      %s301 = scalar_lea.vmem [#allocation3], 288
      %302 = vst [vmem:[%s301] sm:$0xff] 0.0
      %303 = vst [vmem:[%s301 + $0x8] sm:$0xff] 0.0
      %304 = vst [vmem:[%s301 + $0x10] sm:$0x3] 0.0
      %305 = vst [vmem:[%s301 + $0x18] sm:$0x3] 0.0
      %306 = vst.msk [vmem:[#allocation3] ss:$8 sm:$0x3] %vm237, 0.0
      %307 = vst.msk [vmem:[#allocation3] ss:$8 sm:$0x0] %vm237, 0.0
      %s308 = scalar_lea.vmem [#allocation3], 32
      %309 = vst.msk [vmem:[%s308] ss:$8 sm:$0x3] %vm237, 0.0
      %310 = vst.msk [vmem:[%s308] ss:$8 sm:$0x0] %vm237, 0.0
      %s311 = scalar_lea.vmem [#allocation3], 64
      %312 = vst.msk [vmem:[%s311] ss:$8 sm:$0x3] %vm237, 0.0
      %313 = vst.msk [vmem:[%s311] ss:$8 sm:$0x0] %vm237, 0.0
      %s314 = scalar_lea.vmem [#allocation3], 96
      %315 = vst.msk [vmem:[%s314] ss:$8 sm:$0x3] %vm237, 0.0
      %316 = vst.msk [vmem:[%s314] ss:$8 sm:$0x0] %vm237, 0.0
      %s317 = scalar_lea.vmem [#allocation3], 128
      %318 = vst.msk [vmem:[%s317] ss:$8 sm:$0x3] %vm237, 0.0
      %319 = vst.msk [vmem:[%s317] ss:$8 sm:$0x0] %vm237, 0.0
      %s320 = scalar_lea.vmem [#allocation3], 160
      %321 = vst.msk [vmem:[%s320] ss:$8 sm:$0x3] %vm237, 0.0
      %322 = vst.msk [vmem:[%s320] ss:$8 sm:$0x0] %vm237, 0.0
      %s323 = scalar_lea.vmem [#allocation3], 192
      %324 = vst.msk [vmem:[%s323] ss:$8 sm:$0x3] %vm237, 0.0
      %325 = vst.msk [vmem:[%s323] ss:$8 sm:$0x0] %vm237, 0.0
      %s326 = scalar_lea.vmem [#allocation3], 224
      %327 = vst.msk [vmem:[%s326] ss:$8 sm:$0x3] %vm237, 0.0
      %328 = vst.msk [vmem:[%s326] ss:$8 sm:$0x0] %vm237, 0.0
      %s329 = scalar_lea.vmem [#allocation3], 256
      %330 = vst.msk [vmem:[%s329] ss:$8 sm:$0x3] %vm237, 0.0
      %331 = vst.msk [vmem:[%s329] ss:$8 sm:$0x0] %vm237, 0.0
      %s332 = scalar_lea.vmem [#allocation3], 288
      %333 = vst.msk [vmem:[%s332] ss:$8 sm:$0x3] %vm237, 0.0
      %334 = vst.msk [vmem:[%s332] ss:$8 sm:$0x0] %vm237, 0.0
      %s335 = scalar_lea.vmem [#allocation3], 17
      %336 = vst.msk [vmem:[%s335] ss:$8 sm:$0x3] %vm237, 0.0
      %337 = vst.msk [vmem:[%s335] ss:$8 sm:$0x0] %vm237, 0.0
      %s338 = scalar_lea.vmem [#allocation3], 49
      %339 = vst.msk [vmem:[%s338] ss:$8 sm:$0x3] %vm237, 0.0
      %340 = vst.msk [vmem:[%s338] ss:$8 sm:$0x0] %vm237, 0.0
      %s341 = scalar_lea.vmem [#allocation3], 81
      %342 = vst.msk [vmem:[%s341] ss:$8 sm:$0x3] %vm237, 0.0
      %343 = vst.msk [vmem:[%s341] ss:$8 sm:$0x0] %vm237, 0.0
      %s344 = scalar_lea.vmem [#allocation3], 113
      %345 = vst.msk [vmem:[%s344] ss:$8 sm:$0x3] %vm237, 0.0
      %346 = vst.msk [vmem:[%s344] ss:$8 sm:$0x0] %vm237, 0.0
      %s347 = scalar_lea.vmem [#allocation3], 145
      %348 = vst.msk [vmem:[%s347] ss:$8 sm:$0x3] %vm237, 0.0
      %349 = vst.msk [vmem:[%s347] ss:$8 sm:$0x0] %vm237, 0.0
      %s350 = scalar_lea.vmem [#allocation3], 177
      %351 = vst.msk [vmem:[%s350] ss:$8 sm:$0x3] %vm237, 0.0
      %352 = vst.msk [vmem:[%s350] ss:$8 sm:$0x0] %vm237, 0.0
      %s353 = scalar_lea.vmem [#allocation3], 209
      %354 = vst.msk [vmem:[%s353] ss:$8 sm:$0x3] %vm237, 0.0
      %355 = vst.msk [vmem:[%s353] ss:$8 sm:$0x0] %vm237, 0.0
      %s356 = scalar_lea.vmem [#allocation3], 241
      %357 = vst.msk [vmem:[%s356] ss:$8 sm:$0x3] %vm237, 0.0
      %358 = vst.msk [vmem:[%s356] ss:$8 sm:$0x0] %vm237, 0.0
      %s359 = scalar_lea.vmem [#allocation3], 273
      %360 = vst.msk [vmem:[%s359] ss:$8 sm:$0x3] %vm237, 0.0
      %361 = vst.msk [vmem:[%s359] ss:$8 sm:$0x0] %vm237, 0.0
      %s362 = scalar_lea.vmem [#allocation3], 305
      %363 = vst.msk [vmem:[%s362] ss:$8 sm:$0x3] %vm237, 0.0
      %364 = vst.msk [vmem:[%s362] ss:$8 sm:$0x0] %vm237, 0.0
      %v365 = vld [vmem:[%s219] sm:$0xff]
      %v366 = vld [vmem:[%s219 + $0x8] sm:$0xff]
      %v367 = vld [vmem:[%s219 + $0x10] sm:$0xff]
      %v368 = vld [vmem:[%s219 + $0x18] sm:$0xff]
      %v369 = vld [vmem:[%s219 + $0x20] sm:$0xff]
      %v370 = vld [vmem:[%s219 + $0x28] sm:$0xff]
      %v371 = vld [vmem:[%s219 + $0x30] sm:$0xff]
      %v372 = vld [vmem:[%s219 + $0x38] sm:$0xff]
      %v373 = vld [vmem:[%s219 + $0x40] sm:$0xff]
      %v374 = vld [vmem:[%s219 + $0x48] sm:$0xff]
      %v375 = vld [vmem:[%s219 + $0x50] sm:$0xff]
      %v376 = vld [vmem:[%s219 + $0x58] sm:$0xff]
      %v377 = vld [vmem:[%s219 + $0x60] sm:$0xff]
      %v378 = vld [vmem:[%s219 + $0x68] sm:$0xff]
      %v379 = vld [vmem:[%s219 + $0x70] sm:$0xff]
      %v380 = vld [vmem:[%s219 + $0x78] sm:$0xff]
      %v397 = vrot.slane %v365, 7
      %v398 = vrot.slane %v366, 7
      %v399 = vrot.slane %v367, 7
      %v400 = vrot.slane %v368, 7
      %v401 = vrot.slane %v369, 7
      %v402 = vrot.slane %v370, 7
      %v403 = vrot.slane %v371, 7
      %v404 = vrot.slane %v372, 7
      %v405 = vrot.slane %v373, 7
      %v406 = vrot.slane %v374, 7
      %v407 = vrot.slane %v375, 7
      %v408 = vrot.slane %v376, 7
      %v409 = vrot.slane %v377, 7
      %v410 = vrot.slane %v378, 7
      %v411 = vrot.slane %v379, 7
      %v412 = vrot.slane %v380, 7
      %s429 = scalar_lea.vmem [#allocation2], 32
      %430 = vst [vmem:[%s429] sm:$0xfe] %v397
      %431 = vst [vmem:[%s429 + $0x8] sm:$0xfe] %v398
      %432 = vst [vmem:[%s429 + $0x10] sm:$0x1] %v397
      %433 = vst [vmem:[%s429 + $0x18] sm:$0x1] %v398
      %434 = vst [vmem:[%s429 + $0x20] sm:$0xfe] %v399
      %435 = vst [vmem:[%s429 + $0x28] sm:$0xfe] %v400
      %436 = vst [vmem:[%s429 + $0x30] sm:$0x1] %v399
      %437 = vst [vmem:[%s429 + $0x38] sm:$0x1] %v400
      %438 = vst [vmem:[%s429 + $0x40] sm:$0xfe] %v401
      %439 = vst [vmem:[%s429 + $0x48] sm:$0xfe] %v402
      %440 = vst [vmem:[%s429 + $0x50] sm:$0x1] %v401
      %441 = vst [vmem:[%s429 + $0x58] sm:$0x1] %v402
      %442 = vst [vmem:[%s429 + $0x60] sm:$0xfe] %v403
      %443 = vst [vmem:[%s429 + $0x68] sm:$0xfe] %v404
      %444 = vst [vmem:[%s429 + $0x70] sm:$0x1] %v403
      %445 = vst [vmem:[%s429 + $0x78] sm:$0x1] %v404
      %446 = vst [vmem:[%s429 + $0x80] sm:$0xfe] %v405
      %447 = vst [vmem:[%s429 + $0x88] sm:$0xfe] %v406
      %448 = vst [vmem:[%s429 + $0x90] sm:$0x1] %v405
      %449 = vst [vmem:[%s429 + $0x98] sm:$0x1] %v406
      %450 = vst [vmem:[%s429 + $0xa0] sm:$0xfe] %v407
      %451 = vst [vmem:[%s429 + $0xa8] sm:$0xfe] %v408
      %452 = vst [vmem:[%s429 + $0xb0] sm:$0x1] %v407
      %453 = vst [vmem:[%s429 + $0xb8] sm:$0x1] %v408
      %454 = vst [vmem:[%s429 + $0xc0] sm:$0xfe] %v409
      %455 = vst [vmem:[%s429 + $0xc8] sm:$0xfe] %v410
      %456 = vst [vmem:[%s429 + $0xd0] sm:$0x1] %v409
      %457 = vst [vmem:[%s429 + $0xd8] sm:$0x1] %v410
      %458 = vst [vmem:[%s429 + $0xe0] sm:$0xfe] %v411
      %459 = vst [vmem:[%s429 + $0xe8] sm:$0xfe] %v412
      %460 = vst [vmem:[%s429 + $0xf0] sm:$0x1] %v411
      %461 = vst [vmem:[%s429 + $0xf8] sm:$0x1] %v412
      %v462 = vld [vmem:[#allocation2] sm:$0xff]
      %v463 = vld [vmem:[#allocation2 + $0x8] sm:$0xff]
      %v464 = vld [vmem:[#allocation2 + $0x20] sm:$0xff]
      %v465 = vld [vmem:[#allocation2 + $0x28] sm:$0xff]
      %v466 = vld [vmem:[#allocation2 + $0x40] sm:$0xff]
      %v467 = vld [vmem:[#allocation2 + $0x48] sm:$0xff]
      %v468 = vld [vmem:[#allocation2 + $0x60] sm:$0xff]
      %v469 = vld [vmem:[#allocation2 + $0x68] sm:$0xff]
      %v470 = vld [vmem:[#allocation2 + $0x80] sm:$0xff]
      %v471 = vld [vmem:[#allocation2 + $0x88] sm:$0xff]
      %v472 = vld [vmem:[#allocation2 + $0xa0] sm:$0xff]
      %v473 = vld [vmem:[#allocation2 + $0xa8] sm:$0xff]
      %v474 = vld [vmem:[#allocation2 + $0xc0] sm:$0xff]
      %v475 = vld [vmem:[#allocation2 + $0xc8] sm:$0xff]
      %v476 = vld [vmem:[#allocation2 + $0xe0] sm:$0xff]
      %v477 = vld [vmem:[#allocation2 + $0xe8] sm:$0xff]
      %v478 = vld [vmem:[%s1] sm:$0xff]
      %v479 = vld [vmem:[%s1 + $0x8] sm:$0xff]
      %v480 = vld [vmem:[%s1 + $0x10] sm:$0xff]
      %v481 = vld [vmem:[%s1 + $0x18] sm:$0xff]
      %v482 = vld [vmem:[%s1 + $0x20] sm:$0xff]
      %v483 = vld [vmem:[%s1 + $0x28] sm:$0xff]
      %v484 = vld [vmem:[%s1 + $0x30] sm:$0xff]
      %v485 = vld [vmem:[%s1 + $0x38] sm:$0xff]
      %v486 = vld [vmem:[%s1 + $0x40] sm:$0xff]
      %v487 = vld [vmem:[%s1 + $0x48] sm:$0xff]
      %v488 = vld [vmem:[%s1 + $0x50] sm:$0xff]
      %v489 = vld [vmem:[%s1 + $0x58] sm:$0xff]
      %v490 = vld [vmem:[%s1 + $0x60] sm:$0xff]
      %v491 = vld [vmem:[%s1 + $0x68] sm:$0xff]
      %v492 = vld [vmem:[%s1 + $0x70] sm:$0xff]
      %v493 = vld [vmem:[%s1 + $0x78] sm:$0xff]
      %v494 = vld [vmem:[%s1 + $0x80] sm:$0xff]
      %v495 = vld [vmem:[%s1 + $0x88] sm:$0xff]
      %v496 = vld [vmem:[%s1 + $0x90] sm:$0xff]
      %v497 = vld [vmem:[%s1 + $0x98] sm:$0xff]
      %v498 = vld [vmem:[%s1 + $0xa0] sm:$0xff]
      %v499 = vld [vmem:[%s1 + $0xa8] sm:$0xff]
      %v500 = vld [vmem:[%s1 + $0xb0] sm:$0xff]
      %v501 = vld [vmem:[%s1 + $0xb8] sm:$0xff]
      %v502 = vld [vmem:[%s1 + $0xc0] sm:$0xff]
      %v503 = vld [vmem:[%s1 + $0xc8] sm:$0xff]
      %v504 = vld [vmem:[%s1 + $0xd0] sm:$0xff]
      %v505 = vld [vmem:[%s1 + $0xd8] sm:$0xff]
      %v506 = vld [vmem:[%s1 + $0xe0] sm:$0xff]
      %v507 = vld [vmem:[%s1 + $0xe8] sm:$0xff]
      %v508 = vld [vmem:[%s1 + $0xf0] sm:$0xff]
      %v509 = vld [vmem:[%s1 + $0xf8] sm:$0xff]
      %v510 = vld [vmem:[%s1 + $0x100] sm:$0xff]
      %v511 = vld [vmem:[%s1 + $0x108] sm:$0xff]
      %v512 = vld [vmem:[%s1 + $0x110] sm:$0xff]
      %v513 = vld [vmem:[%s1 + $0x118] sm:$0xff]
      %v514 = vld [vmem:[%s1 + $0x120] sm:$0xff]
      %v515 = vld [vmem:[%s1 + $0x128] sm:$0xff]
      %v516 = vld [vmem:[%s1 + $0x130] sm:$0xff]
      %v517 = vld [vmem:[%s1 + $0x138] sm:$0xff]
      %v518 = vld [vmem:[%s1 + $0x140] sm:$0xff]
      %v519 = vld [vmem:[%s1 + $0x148] sm:$0xff]
      %v520 = vld [vmem:[%s1 + $0x150] sm:$0xff]
      %v521 = vld [vmem:[%s1 + $0x158] sm:$0xff]
      %v522 = vld [vmem:[%s1 + $0x160] sm:$0xff]
      %v523 = vld [vmem:[%s1 + $0x168] sm:$0xff]
      %v524 = vld [vmem:[%s1 + $0x170] sm:$0xff]
      %v525 = vld [vmem:[%s1 + $0x178] sm:$0xff]
      %v526 = vld [vmem:[%s1 + $0x180] sm:$0xff]
      %v527 = vld [vmem:[%s1 + $0x188] sm:$0xff]
      %v528 = vld [vmem:[%s1 + $0x190] sm:$0xff]
      %v529 = vld [vmem:[%s1 + $0x198] sm:$0xff]
      %v530 = vld [vmem:[%s1 + $0x1a0] sm:$0xff]
      %v531 = vld [vmem:[%s1 + $0x1a8] sm:$0xff]
      %v532 = vld [vmem:[%s1 + $0x1b0] sm:$0xff]
      %v533 = vld [vmem:[%s1 + $0x1b8] sm:$0xff]
      %v534 = vld [vmem:[%s1 + $0x1c0] sm:$0xff]
      %v535 = vld [vmem:[%s1 + $0x1c8] sm:$0xff]
      %v536 = vld [vmem:[%s1 + $0x1d0] sm:$0xff]
      %v537 = vld [vmem:[%s1 + $0x1d8] sm:$0xff]
      %v538 = vld [vmem:[%s1 + $0x1e0] sm:$0xff]
      %v539 = vld [vmem:[%s1 + $0x1e8] sm:$0xff]
      %v540 = vld [vmem:[%s1 + $0x1f0] sm:$0xff]
      %v541 = vld [vmem:[%s1 + $0x1f8] sm:$0xff]
      %v542 = vld [vmem:[#allocation2] sm:$0xfe]
      %v543 = vld [vmem:[#allocation2 + $0x8] sm:$0xfe]
      %v544 = vld [vmem:[#allocation2 + $0x10] sm:$0x1]
      %v545 = vld [vmem:[#allocation2 + $0x18] sm:$0x1]
      %v546 = vld [vmem:[#allocation2 + $0x20] sm:$0xfe]
      %v547 = vld [vmem:[#allocation2 + $0x28] sm:$0xfe]
      %v548 = vld [vmem:[#allocation2 + $0x30] sm:$0x1]
      %v549 = vld [vmem:[#allocation2 + $0x38] sm:$0x1]
      %v550 = vld [vmem:[#allocation2 + $0x40] sm:$0xfe]
      %v551 = vld [vmem:[#allocation2 + $0x48] sm:$0xfe]
      %v552 = vld [vmem:[#allocation2 + $0x50] sm:$0x1]
      %v553 = vld [vmem:[#allocation2 + $0x58] sm:$0x1]
      %v554 = vld [vmem:[#allocation2 + $0x60] sm:$0xfe]
      %v555 = vld [vmem:[#allocation2 + $0x68] sm:$0xfe]
      %v556 = vld [vmem:[#allocation2 + $0x70] sm:$0x1]
      %v557 = vld [vmem:[#allocation2 + $0x78] sm:$0x1]
      %v558 = vld [vmem:[#allocation2 + $0x80] sm:$0xfe]
      %v559 = vld [vmem:[#allocation2 + $0x88] sm:$0xfe]
      %v560 = vld [vmem:[#allocation2 + $0x90] sm:$0x1]
      %v561 = vld [vmem:[#allocation2 + $0x98] sm:$0x1]
      %v562 = vld [vmem:[#allocation2 + $0xa0] sm:$0xfe]
      %v563 = vld [vmem:[#allocation2 + $0xa8] sm:$0xfe]
      %v564 = vld [vmem:[#allocation2 + $0xb0] sm:$0x1]
      %v565 = vld [vmem:[#allocation2 + $0xb8] sm:$0x1]
      %v566 = vld [vmem:[#allocation2 + $0xc0] sm:$0xfe]
      %v567 = vld [vmem:[#allocation2 + $0xc8] sm:$0xfe]
      %v568 = vld [vmem:[#allocation2 + $0xd0] sm:$0x1]
      %v569 = vld [vmem:[#allocation2 + $0xd8] sm:$0x1]
      %v570 = vld [vmem:[#allocation2 + $0xe0] sm:$0xfe]
      %v571 = vld [vmem:[#allocation2 + $0xe8] sm:$0xfe]
      %v572 = vld [vmem:[#allocation2 + $0xf0] sm:$0x1]
      %v573 = vld [vmem:[#allocation2 + $0xf8] sm:$0x1]
      %vm606 = vcmask 1046528
      %v607 = vrot.slane %v542, 1
      %v608 = vrot.slane %v544, 1
      %v609 = vsel %vm606, %v607, %v608
      %v610 = vrot.slane %v543, 1
      %v611 = vrot.slane %v545, 1
      %v612 = vsel %vm606, %v610, %v611
      %v613 = vrot.slane %v546, 1
      %v614 = vrot.slane %v548, 1
      %v615 = vsel %vm606, %v613, %v614
      %v616 = vrot.slane %v547, 1
      %v617 = vrot.slane %v549, 1
      %v618 = vsel %vm606, %v616, %v617
      %v619 = vrot.slane %v550, 1
      %v620 = vrot.slane %v552, 1
      %v621 = vsel %vm606, %v619, %v620
      %v622 = vrot.slane %v551, 1
      %v623 = vrot.slane %v553, 1
      %v624 = vsel %vm606, %v622, %v623
      %v625 = vrot.slane %v554, 1
      %v626 = vrot.slane %v556, 1
      %v627 = vsel %vm606, %v625, %v626
      %v628 = vrot.slane %v555, 1
      %v629 = vrot.slane %v557, 1
      %v630 = vsel %vm606, %v628, %v629
      %v631 = vrot.slane %v558, 1
      %v632 = vrot.slane %v560, 1
      %v633 = vsel %vm606, %v631, %v632
      %v634 = vrot.slane %v559, 1
      %v635 = vrot.slane %v561, 1
      %v636 = vsel %vm606, %v634, %v635
      %v637 = vrot.slane %v562, 1
      %v638 = vrot.slane %v564, 1
      %v639 = vsel %vm606, %v637, %v638
      %v640 = vrot.slane %v563, 1
      %v641 = vrot.slane %v565, 1
      %v642 = vsel %vm606, %v640, %v641
      %v643 = vrot.slane %v566, 1
      %v644 = vrot.slane %v568, 1
      %v645 = vsel %vm606, %v643, %v644
      %v646 = vrot.slane %v567, 1
      %v647 = vrot.slane %v569, 1
      %v648 = vsel %vm606, %v646, %v647
      %v649 = vrot.slane %v570, 1
      %v650 = vrot.slane %v572, 1
      %v651 = vsel %vm606, %v649, %v650
      %v652 = vrot.slane %v571, 1
      %v653 = vrot.slane %v573, 1
      %v654 = vsel %vm606, %v652, %v653
      %s671 = scalar_lea.vmem %s1, 512
      %v672 = vld [vmem:[%s671] sm:$0xff]
      %v673 = vld [vmem:[%s671 + $0x8] sm:$0xff]
      %v674 = vld [vmem:[%s671 + $0x10] sm:$0xff]
      %v675 = vld [vmem:[%s671 + $0x18] sm:$0xff]
      %v676 = vld [vmem:[%s671 + $0x20] sm:$0xff]
      %v677 = vld [vmem:[%s671 + $0x28] sm:$0xff]
      %v678 = vld [vmem:[%s671 + $0x30] sm:$0xff]
      %v679 = vld [vmem:[%s671 + $0x38] sm:$0xff]
      %v680 = vld [vmem:[%s671 + $0x40] sm:$0xff]
      %v681 = vld [vmem:[%s671 + $0x48] sm:$0xff]
      %v682 = vld [vmem:[%s671 + $0x50] sm:$0xff]
      %v683 = vld [vmem:[%s671 + $0x58] sm:$0xff]
      %v684 = vld [vmem:[%s671 + $0x60] sm:$0xff]
      %v685 = vld [vmem:[%s671 + $0x68] sm:$0xff]
      %v686 = vld [vmem:[%s671 + $0x70] sm:$0xff]
      %v687 = vld [vmem:[%s671 + $0x78] sm:$0xff]
      %v688 = vld [vmem:[%s671 + $0x80] sm:$0xff]
      %v689 = vld [vmem:[%s671 + $0x88] sm:$0xff]
      %v690 = vld [vmem:[%s671 + $0x90] sm:$0xff]
      %v691 = vld [vmem:[%s671 + $0x98] sm:$0xff]
      %v692 = vld [vmem:[%s671 + $0xa0] sm:$0xff]
      %v693 = vld [vmem:[%s671 + $0xa8] sm:$0xff]
      %v694 = vld [vmem:[%s671 + $0xb0] sm:$0xff]
      %v695 = vld [vmem:[%s671 + $0xb8] sm:$0xff]
      %v696 = vld [vmem:[%s671 + $0xc0] sm:$0xff]
      %v697 = vld [vmem:[%s671 + $0xc8] sm:$0xff]
      %v698 = vld [vmem:[%s671 + $0xd0] sm:$0xff]
      %v699 = vld [vmem:[%s671 + $0xd8] sm:$0xff]
      %v700 = vld [vmem:[%s671 + $0xe0] sm:$0xff]
      %v701 = vld [vmem:[%s671 + $0xe8] sm:$0xff]
      %v702 = vld [vmem:[%s671 + $0xf0] sm:$0xff]
      %v703 = vld [vmem:[%s671 + $0xf8] sm:$0xff]
      %v704 = vld [vmem:[%s671 + $0x100] sm:$0xff]
      %v705 = vld [vmem:[%s671 + $0x108] sm:$0xff]
      %v706 = vld [vmem:[%s671 + $0x110] sm:$0xff]
      %v707 = vld [vmem:[%s671 + $0x118] sm:$0xff]
      %v708 = vld [vmem:[%s671 + $0x120] sm:$0xff]
      %v709 = vld [vmem:[%s671 + $0x128] sm:$0xff]
      %v710 = vld [vmem:[%s671 + $0x130] sm:$0xff]
      %v711 = vld [vmem:[%s671 + $0x138] sm:$0xff]
      %v712 = vld [vmem:[%s671 + $0x140] sm:$0xff]
      %v713 = vld [vmem:[%s671 + $0x148] sm:$0xff]
      %v714 = vld [vmem:[%s671 + $0x150] sm:$0xff]
      %v715 = vld [vmem:[%s671 + $0x158] sm:$0xff]
      %v716 = vld [vmem:[%s671 + $0x160] sm:$0xff]
      %v717 = vld [vmem:[%s671 + $0x168] sm:$0xff]
      %v718 = vld [vmem:[%s671 + $0x170] sm:$0xff]
      %v719 = vld [vmem:[%s671 + $0x178] sm:$0xff]
      %v720 = vld [vmem:[%s671 + $0x180] sm:$0xff]
      %v721 = vld [vmem:[%s671 + $0x188] sm:$0xff]
      %v722 = vld [vmem:[%s671 + $0x190] sm:$0xff]
      %v723 = vld [vmem:[%s671 + $0x198] sm:$0xff]
      %v724 = vld [vmem:[%s671 + $0x1a0] sm:$0xff]
      %v725 = vld [vmem:[%s671 + $0x1a8] sm:$0xff]
      %v726 = vld [vmem:[%s671 + $0x1b0] sm:$0xff]
      %v727 = vld [vmem:[%s671 + $0x1b8] sm:$0xff]
      %v728 = vld [vmem:[%s671 + $0x1c0] sm:$0xff]
      %v729 = vld [vmem:[%s671 + $0x1c8] sm:$0xff]
      %v730 = vld [vmem:[%s671 + $0x1d0] sm:$0xff]
      %v731 = vld [vmem:[%s671 + $0x1d8] sm:$0xff]
      %v732 = vld [vmem:[%s671 + $0x1e0] sm:$0xff]
      %v733 = vld [vmem:[%s671 + $0x1e8] sm:$0xff]
      %v734 = vld [vmem:[%s671 + $0x1f0] sm:$0xff]
      %v735 = vld [vmem:[%s671 + $0x1f8] sm:$0xff]
      %736 = vmatprep.subr.mxu0 %v673
      %737 = vmatpush1.msra.mxu0 %v672
      %738 = vmatprep.subr.mxu0 %v675
      %739 = vmatpush1.msra.mxu0 %v674
      %740 = vmatprep.subr.mxu0 %v677
      %741 = vmatpush1.msra.mxu0 %v676
      %742 = vmatprep.subr.mxu0 %v679
      %743 = vmatpush1.msra.mxu0 %v678
      %744 = vmatprep.subr.mxu0 %v681
      %745 = vmatpush1.msra.mxu0 %v680
      %746 = vmatprep.subr.mxu0 %v683
      %747 = vmatpush1.msra.mxu0 %v682
      %748 = vmatprep.subr.mxu0 %v685
      %749 = vmatpush1.msra.mxu0 %v684
      %750 = vmatprep.subr.mxu0 %v687
      %751 = vmatpush1.msra.mxu0 %v686
      %752 = vmatprep.subr.mxu0 %v689
      %753 = vmatpush1.msra.mxu0 %v688
      %754 = vmatprep.subr.mxu0 %v691
      %755 = vmatpush1.msra.mxu0 %v690
      %756 = vmatprep.subr.mxu0 %v693
      %757 = vmatpush1.msra.mxu0 %v692
      %758 = vmatprep.subr.mxu0 %v695
      %759 = vmatpush1.msra.mxu0 %v694
      %760 = vmatprep.subr.mxu0 %v697
      %761 = vmatpush1.msra.mxu0 %v696
      %762 = vmatprep.subr.mxu0 %v699
      %763 = vmatpush1.msra.mxu0 %v698
      %764 = vmatprep.subr.mxu0 %v701
      %765 = vmatpush1.msra.mxu0 %v700
      %766 = vmatprep.subr.mxu0 %v703
      %767 = vmatpush1.msra.mxu0 %v702
      %768 = vmatprep.subr.mxu0 %v705
      %769 = vmatpush1.msra.mxu0 %v704
      %770 = vmatprep.subr.mxu0 %v707
      %771 = vmatpush1.msra.mxu0 %v706
      %772 = vmatprep.subr.mxu0 %v709
      %773 = vmatpush1.msra.mxu0 %v708
      %774 = vmatprep.subr.mxu0 %v711
      %775 = vmatpush1.msra.mxu0 %v710
      %776 = vmatprep.subr.mxu0 %v713
      %777 = vmatpush1.msra.mxu0 %v712
      %778 = vmatprep.subr.mxu0 %v715
      %779 = vmatpush1.msra.mxu0 %v714
      %780 = vmatprep.subr.mxu0 %v717
      %781 = vmatpush1.msra.mxu0 %v716
      %782 = vmatprep.subr.mxu0 %v719
      %783 = vmatpush1.msra.mxu0 %v718
      %784 = vmatprep.subr.mxu0 %v721
      %785 = vmatpush1.msra.mxu0 %v720
      %786 = vmatprep.subr.mxu0 %v723
      %787 = vmatpush1.msra.mxu0 %v722
      %788 = vmatprep.subr.mxu0 %v725
      %789 = vmatpush1.msra.mxu0 %v724
      %790 = vmatprep.subr.mxu0 %v727
      %791 = vmatpush1.msra.mxu0 %v726
      %792 = vmatprep.subr.mxu0 %v729
      %793 = vmatpush1.msra.mxu0 %v728
      %794 = vmatprep.subr.mxu0 %v731
      %795 = vmatpush1.msra.mxu0 %v730
      %796 = vmatprep.subr.mxu0 %v733
      %797 = vmatpush1.msra.mxu0 %v732
      %798 = vmatprep.subr.mxu0 %v735
      %799 = vmatpush1.msra.mxu0 %v734
      %800 = vmatprep.mubr.f32.mxu0 %v612
      %801 = vmatmul.mubr.f32.gmra.mrb[0].mxu0 %v609
      %v802 = vpop.f32.mrb[0].mxu0
      %v803 = vadd.f32 0.0, %v802
      %v804 = vpop.f32.mrb[0].mxu0
      %v805 = vadd.f32 0.0, %v804
      %806 = vmatprep.mubr.f32.mxu0 %v618
      %807 = vmatmul.mubr.f32.gmra.mrb[0].mxu0 %v615
      %v808 = vpop.f32.mrb[0].mxu0
      %v809 = vadd.f32 0.0, %v808
      %v810 = vpop.f32.mrb[0].mxu0
      %v811 = vadd.f32 0.0, %v810
      %812 = vmatprep.mubr.f32.mxu0 %v624
      %813 = vmatmul.mubr.f32.gmra.mrb[0].mxu0 %v621
      %v814 = vpop.f32.mrb[0].mxu0
      %v815 = vadd.f32 0.0, %v814
      %v816 = vpop.f32.mrb[0].mxu0
      %v817 = vadd.f32 0.0, %v816
      %818 = vmatprep.mubr.f32.mxu0 %v630
      %819 = vmatmul.mubr.f32.gmra.mrb[0].mxu0 %v627
      %v820 = vpop.f32.mrb[0].mxu0
      %v821 = vadd.f32 0.0, %v820
      %v822 = vpop.f32.mrb[0].mxu0
      %v823 = vadd.f32 0.0, %v822
      %824 = vmatprep.mubr.f32.mxu0 %v636
      %825 = vmatmul.mubr.f32.gmra.mrb[0].mxu0 %v633
      %v826 = vpop.f32.mrb[0].mxu0
      %v827 = vadd.f32 0.0, %v826
      %v828 = vpop.f32.mrb[0].mxu0
      %v829 = vadd.f32 0.0, %v828
      %830 = vmatprep.mubr.f32.mxu0 %v642
      %831 = vmatmul.mubr.f32.gmra.mrb[0].mxu0 %v639
      %v832 = vpop.f32.mrb[0].mxu0
      %v833 = vadd.f32 0.0, %v832
      %v834 = vpop.f32.mrb[0].mxu0
      %v835 = vadd.f32 0.0, %v834
      %836 = vmatprep.mubr.f32.mxu0 %v648
      %837 = vmatmul.mubr.f32.gmra.mrb[0].mxu0 %v645
      %v838 = vpop.f32.mrb[0].mxu0
      %v839 = vadd.f32 0.0, %v838
      %v840 = vpop.f32.mrb[0].mxu0
      %v841 = vadd.f32 0.0, %v840
      %842 = vmatprep.mubr.f32.mxu0 %v654
      %843 = vmatmul.mubr.f32.gmra.mrb[0].mxu0 %v651
      %v844 = vpop.f32.mrb[0].mxu0
      %v845 = vadd.f32 0.0, %v844
      %v846 = vpop.f32.mrb[0].mxu0
      %v847 = vadd.f32 0.0, %v846
      %848 = vdwg.mxu0
      %849 = vmatprep.subr.mxu0 %v479
      %850 = vmatpush1.msra.mxu0 %v478
      %851 = vmatprep.subr.mxu0 %v481
      %852 = vmatpush1.msra.mxu0 %v480
      %853 = vmatprep.subr.mxu0 %v483
      %854 = vmatpush1.msra.mxu0 %v482
      %855 = vmatprep.subr.mxu0 %v485
      %856 = vmatpush1.msra.mxu0 %v484
      %857 = vmatprep.subr.mxu0 %v487
      %858 = vmatpush1.msra.mxu0 %v486
      %859 = vmatprep.subr.mxu0 %v489
      %860 = vmatpush1.msra.mxu0 %v488
      %861 = vmatprep.subr.mxu0 %v491
      %862 = vmatpush1.msra.mxu0 %v490
      %863 = vmatprep.subr.mxu0 %v493
      %864 = vmatpush1.msra.mxu0 %v492
      %865 = vmatprep.subr.mxu0 %v495
      %866 = vmatpush1.msra.mxu0 %v494
      %867 = vmatprep.subr.mxu0 %v497
      %868 = vmatpush1.msra.mxu0 %v496
      %869 = vmatprep.subr.mxu0 %v499
      %870 = vmatpush1.msra.mxu0 %v498
      %871 = vmatprep.subr.mxu0 %v501
      %872 = vmatpush1.msra.mxu0 %v500
      %873 = vmatprep.subr.mxu0 %v503
      %874 = vmatpush1.msra.mxu0 %v502
      %875 = vmatprep.subr.mxu0 %v505
      %876 = vmatpush1.msra.mxu0 %v504
      %877 = vmatprep.subr.mxu0 %v507
      %878 = vmatpush1.msra.mxu0 %v506
      %879 = vmatprep.subr.mxu0 %v509
      %880 = vmatpush1.msra.mxu0 %v508
      %881 = vmatprep.subr.mxu0 %v511
      %882 = vmatpush1.msra.mxu0 %v510
      %883 = vmatprep.subr.mxu0 %v513
      %884 = vmatpush1.msra.mxu0 %v512
      %885 = vmatprep.subr.mxu0 %v515
      %886 = vmatpush1.msra.mxu0 %v514
      %887 = vmatprep.subr.mxu0 %v517
      %888 = vmatpush1.msra.mxu0 %v516
      %889 = vmatprep.subr.mxu0 %v519
      %890 = vmatpush1.msra.mxu0 %v518
      %891 = vmatprep.subr.mxu0 %v521
      %892 = vmatpush1.msra.mxu0 %v520
      %893 = vmatprep.subr.mxu0 %v523
      %894 = vmatpush1.msra.mxu0 %v522
      %895 = vmatprep.subr.mxu0 %v525
      %896 = vmatpush1.msra.mxu0 %v524
      %897 = vmatprep.subr.mxu0 %v527
      %898 = vmatpush1.msra.mxu0 %v526
      %899 = vmatprep.subr.mxu0 %v529
      %900 = vmatpush1.msra.mxu0 %v528
      %901 = vmatprep.subr.mxu0 %v531
      %902 = vmatpush1.msra.mxu0 %v530
      %903 = vmatprep.subr.mxu0 %v533
      %904 = vmatpush1.msra.mxu0 %v532
      %905 = vmatprep.subr.mxu0 %v535
      %906 = vmatpush1.msra.mxu0 %v534
      %907 = vmatprep.subr.mxu0 %v537
      %908 = vmatpush1.msra.mxu0 %v536
      %909 = vmatprep.subr.mxu0 %v539
      %910 = vmatpush1.msra.mxu0 %v538
      %911 = vmatprep.subr.mxu0 %v541
      %912 = vmatpush1.msra.mxu0 %v540
      %913 = vmatprep.mubr.f32.mxu0 %v463
      %914 = vmatmul.mubr.f32.gmra.mrb[0].mxu0 %v462
      %v915 = vpop.f32.mrb[0].mxu0
      %v916 = vadd.f32 %v803, %v915
      %v917 = vpop.f32.mrb[0].mxu0
      %v918 = vadd.f32 %v805, %v917
      %919 = vmatprep.mubr.f32.mxu0 %v465
      %920 = vmatmul.mubr.f32.gmra.mrb[0].mxu0 %v464
      %v921 = vpop.f32.mrb[0].mxu0
      %v922 = vadd.f32 %v809, %v921
      %v923 = vpop.f32.mrb[0].mxu0
      %v924 = vadd.f32 %v811, %v923
      %925 = vmatprep.mubr.f32.mxu0 %v467
      %926 = vmatmul.mubr.f32.gmra.mrb[0].mxu0 %v466
      %v927 = vpop.f32.mrb[0].mxu0
      %v928 = vadd.f32 %v815, %v927
      %v929 = vpop.f32.mrb[0].mxu0
      %v930 = vadd.f32 %v817, %v929
      %931 = vmatprep.mubr.f32.mxu0 %v469
      %932 = vmatmul.mubr.f32.gmra.mrb[0].mxu0 %v468
      %v933 = vpop.f32.mrb[0].mxu0
      %v934 = vadd.f32 %v821, %v933
      %v935 = vpop.f32.mrb[0].mxu0
      %v936 = vadd.f32 %v823, %v935
      %937 = vmatprep.mubr.f32.mxu0 %v471
      %938 = vmatmul.mubr.f32.gmra.mrb[0].mxu0 %v470
      %v939 = vpop.f32.mrb[0].mxu0
      %v940 = vadd.f32 %v827, %v939
      %v941 = vpop.f32.mrb[0].mxu0
      %v942 = vadd.f32 %v829, %v941
      %943 = vmatprep.mubr.f32.mxu0 %v473
      %944 = vmatmul.mubr.f32.gmra.mrb[0].mxu0 %v472
      %v945 = vpop.f32.mrb[0].mxu0
      %v946 = vadd.f32 %v833, %v945
      %v947 = vpop.f32.mrb[0].mxu0
      %v948 = vadd.f32 %v835, %v947
      %949 = vmatprep.mubr.f32.mxu0 %v475
      %950 = vmatmul.mubr.f32.gmra.mrb[0].mxu0 %v474
      %v951 = vpop.f32.mrb[0].mxu0
      %v952 = vadd.f32 %v839, %v951
      %v953 = vpop.f32.mrb[0].mxu0
      %v954 = vadd.f32 %v841, %v953
      %955 = vmatprep.mubr.f32.mxu0 %v477
      %956 = vmatmul.mubr.f32.gmra.mrb[0].mxu0 %v476
      %v957 = vpop.f32.mrb[0].mxu0
      %v958 = vadd.f32 %v845, %v957
      %v959 = vpop.f32.mrb[0].mxu0
      %v960 = vadd.f32 %v847, %v959
      %961 = vdwg.mxu0
      %v962 = vld [vmem:[#allocation2] sm:$0xfc]
      %v963 = vld [vmem:[#allocation2 + $0x8] sm:$0xfc]
      %v964 = vld [vmem:[#allocation2 + $0x10] sm:$0x3]
      %v965 = vld [vmem:[#allocation2 + $0x18] sm:$0x3]
      %v966 = vld [vmem:[#allocation2 + $0x20] sm:$0xfc]
      %v967 = vld [vmem:[#allocation2 + $0x28] sm:$0xfc]
      %v968 = vld [vmem:[#allocation2 + $0x30] sm:$0x3]
      %v969 = vld [vmem:[#allocation2 + $0x38] sm:$0x3]
      %v970 = vld [vmem:[#allocation2 + $0x40] sm:$0xfc]
      %v971 = vld [vmem:[#allocation2 + $0x48] sm:$0xfc]
      %v972 = vld [vmem:[#allocation2 + $0x50] sm:$0x3]
      %v973 = vld [vmem:[#allocation2 + $0x58] sm:$0x3]
      %v974 = vld [vmem:[#allocation2 + $0x60] sm:$0xfc]
      %v975 = vld [vmem:[#allocation2 + $0x68] sm:$0xfc]
      %v976 = vld [vmem:[#allocation2 + $0x70] sm:$0x3]
      %v977 = vld [vmem:[#allocation2 + $0x78] sm:$0x3]
      %v978 = vld [vmem:[#allocation2 + $0x80] sm:$0xfc]
      %v979 = vld [vmem:[#allocation2 + $0x88] sm:$0xfc]
      %v980 = vld [vmem:[#allocation2 + $0x90] sm:$0x3]
      %v981 = vld [vmem:[#allocation2 + $0x98] sm:$0x3]
      %v982 = vld [vmem:[#allocation2 + $0xa0] sm:$0xfc]
      %v983 = vld [vmem:[#allocation2 + $0xa8] sm:$0xfc]
      %v984 = vld [vmem:[#allocation2 + $0xb0] sm:$0x3]
      %v985 = vld [vmem:[#allocation2 + $0xb8] sm:$0x3]
      %v986 = vld [vmem:[#allocation2 + $0xc0] sm:$0xfc]
      %v987 = vld [vmem:[#allocation2 + $0xc8] sm:$0xfc]
      %v988 = vld [vmem:[#allocation2 + $0xd0] sm:$0x3]
      %v989 = vld [vmem:[#allocation2 + $0xd8] sm:$0x3]
      %v990 = vld [vmem:[#allocation2 + $0xe0] sm:$0xfc]
      %v991 = vld [vmem:[#allocation2 + $0xe8] sm:$0xfc]
      %v992 = vld [vmem:[#allocation2 + $0xf0] sm:$0x3]
      %v993 = vld [vmem:[#allocation2 + $0xf8] sm:$0x3]
      %vm1026 = vcmask 1045504
      %v1027 = vrot.slane %v962, 2
      %v1028 = vrot.slane %v964, 2
      %v1029 = vsel %vm1026, %v1027, %v1028
      %v1030 = vrot.slane %v963, 2
      %v1031 = vrot.slane %v965, 2
      %v1032 = vsel %vm1026, %v1030, %v1031
      %v1033 = vrot.slane %v966, 2
      %v1034 = vrot.slane %v968, 2
      %v1035 = vsel %vm1026, %v1033, %v1034
      %v1036 = vrot.slane %v967, 2
      %v1037 = vrot.slane %v969, 2
      %v1038 = vsel %vm1026, %v1036, %v1037
      %v1039 = vrot.slane %v970, 2
      %v1040 = vrot.slane %v972, 2
      %v1041 = vsel %vm1026, %v1039, %v1040
      %v1042 = vrot.slane %v971, 2
      %v1043 = vrot.slane %v973, 2
      %v1044 = vsel %vm1026, %v1042, %v1043
      %v1045 = vrot.slane %v974, 2
      %v1046 = vrot.slane %v976, 2
      %v1047 = vsel %vm1026, %v1045, %v1046
      %v1048 = vrot.slane %v975, 2
      %v1049 = vrot.slane %v977, 2
      %v1050 = vsel %vm1026, %v1048, %v1049
      %v1051 = vrot.slane %v978, 2
      %v1052 = vrot.slane %v980, 2
      %v1053 = vsel %vm1026, %v1051, %v1052
      %v1054 = vrot.slane %v979, 2
      %v1055 = vrot.slane %v981, 2
      %v1056 = vsel %vm1026, %v1054, %v1055
      %v1057 = vrot.slane %v982, 2
      %v1058 = vrot.slane %v984, 2
      %v1059 = vsel %vm1026, %v1057, %v1058
      %v1060 = vrot.slane %v983, 2
      %v1061 = vrot.slane %v985, 2
      %v1062 = vsel %vm1026, %v1060, %v1061
      %v1063 = vrot.slane %v986, 2
      %v1064 = vrot.slane %v988, 2
      %v1065 = vsel %vm1026, %v1063, %v1064
      %v1066 = vrot.slane %v987, 2
      %v1067 = vrot.slane %v989, 2
      %v1068 = vsel %vm1026, %v1066, %v1067
      %v1069 = vrot.slane %v990, 2
      %v1070 = vrot.slane %v992, 2
      %v1071 = vsel %vm1026, %v1069, %v1070
      %v1072 = vrot.slane %v991, 2
      %v1073 = vrot.slane %v993, 2
      %v1074 = vsel %vm1026, %v1072, %v1073
      %s1091 = scalar_lea.vmem %s1, 1024
      %v1092 = vld [vmem:[%s1091] sm:$0xff]
      %v1093 = vld [vmem:[%s1091 + $0x8] sm:$0xff]
      %v1094 = vld [vmem:[%s1091 + $0x10] sm:$0xff]
      %v1095 = vld [vmem:[%s1091 + $0x18] sm:$0xff]
      %v1096 = vld [vmem:[%s1091 + $0x20] sm:$0xff]
      %v1097 = vld [vmem:[%s1091 + $0x28] sm:$0xff]
      %v1098 = vld [vmem:[%s1091 + $0x30] sm:$0xff]
      %v1099 = vld [vmem:[%s1091 + $0x38] sm:$0xff]
      %v1100 = vld [vmem:[%s1091 + $0x40] sm:$0xff]
      %v1101 = vld [vmem:[%s1091 + $0x48] sm:$0xff]
      %v1102 = vld [vmem:[%s1091 + $0x50] sm:$0xff]
      %v1103 = vld [vmem:[%s1091 + $0x58] sm:$0xff]
      %v1104 = vld [vmem:[%s1091 + $0x60] sm:$0xff]
      %v1105 = vld [vmem:[%s1091 + $0x68] sm:$0xff]
      %v1106 = vld [vmem:[%s1091 + $0x70] sm:$0xff]
      %v1107 = vld [vmem:[%s1091 + $0x78] sm:$0xff]
      %v1108 = vld [vmem:[%s1091 + $0x80] sm:$0xff]
      %v1109 = vld [vmem:[%s1091 + $0x88] sm:$0xff]
      %v1110 = vld [vmem:[%s1091 + $0x90] sm:$0xff]
      %v1111 = vld [vmem:[%s1091 + $0x98] sm:$0xff]
      %v1112 = vld [vmem:[%s1091 + $0xa0] sm:$0xff]
      %v1113 = vld [vmem:[%s1091 + $0xa8] sm:$0xff]
      %v1114 = vld [vmem:[%s1091 + $0xb0] sm:$0xff]
      %v1115 = vld [vmem:[%s1091 + $0xb8] sm:$0xff]
      %v1116 = vld [vmem:[%s1091 + $0xc0] sm:$0xff]
      %v1117 = vld [vmem:[%s1091 + $0xc8] sm:$0xff]
      %v1118 = vld [vmem:[%s1091 + $0xd0] sm:$0xff]
      %v1119 = vld [vmem:[%s1091 + $0xd8] sm:$0xff]
      %v1120 = vld [vmem:[%s1091 + $0xe0] sm:$0xff]
      %v1121 = vld [vmem:[%s1091 + $0xe8] sm:$0xff]
      %v1122 = vld [vmem:[%s1091 + $0xf0] sm:$0xff]
      %v1123 = vld [vmem:[%s1091 + $0xf8] sm:$0xff]
      %v1124 = vld [vmem:[%s1091 + $0x100] sm:$0xff]
      %v1125 = vld [vmem:[%s1091 + $0x108] sm:$0xff]
      %v1126 = vld [vmem:[%s1091 + $0x110] sm:$0xff]
      %v1127 = vld [vmem:[%s1091 + $0x118] sm:$0xff]
      %v1128 = vld [vmem:[%s1091 + $0x120] sm:$0xff]
      %v1129 = vld [vmem:[%s1091 + $0x128] sm:$0xff]
      %v1130 = vld [vmem:[%s1091 + $0x130] sm:$0xff]
      %v1131 = vld [vmem:[%s1091 + $0x138] sm:$0xff]
      %v1132 = vld [vmem:[%s1091 + $0x140] sm:$0xff]
      %v1133 = vld [vmem:[%s1091 + $0x148] sm:$0xff]
      %v1134 = vld [vmem:[%s1091 + $0x150] sm:$0xff]
      %v1135 = vld [vmem:[%s1091 + $0x158] sm:$0xff]
      %v1136 = vld [vmem:[%s1091 + $0x160] sm:$0xff]
      %v1137 = vld [vmem:[%s1091 + $0x168] sm:$0xff]
      %v1138 = vld [vmem:[%s1091 + $0x170] sm:$0xff]
      %v1139 = vld [vmem:[%s1091 + $0x178] sm:$0xff]
      %v1140 = vld [vmem:[%s1091 + $0x180] sm:$0xff]
      %v1141 = vld [vmem:[%s1091 + $0x188] sm:$0xff]
      %v1142 = vld [vmem:[%s1091 + $0x190] sm:$0xff]
      %v1143 = vld [vmem:[%s1091 + $0x198] sm:$0xff]
      %v1144 = vld [vmem:[%s1091 + $0x1a0] sm:$0xff]
      %v1145 = vld [vmem:[%s1091 + $0x1a8] sm:$0xff]
      %v1146 = vld [vmem:[%s1091 + $0x1b0] sm:$0xff]
      %v1147 = vld [vmem:[%s1091 + $0x1b8] sm:$0xff]
      %v1148 = vld [vmem:[%s1091 + $0x1c0] sm:$0xff]
      %v1149 = vld [vmem:[%s1091 + $0x1c8] sm:$0xff]
      %v1150 = vld [vmem:[%s1091 + $0x1d0] sm:$0xff]
      %v1151 = vld [vmem:[%s1091 + $0x1d8] sm:$0xff]
      %v1152 = vld [vmem:[%s1091 + $0x1e0] sm:$0xff]
      %v1153 = vld [vmem:[%s1091 + $0x1e8] sm:$0xff]
      %v1154 = vld [vmem:[%s1091 + $0x1f0] sm:$0xff]
      %v1155 = vld [vmem:[%s1091 + $0x1f8] sm:$0xff]
      %1156 = vmatprep.subr.mxu0 %v1093
      %1157 = vmatpush1.msra.mxu0 %v1092
      %1158 = vmatprep.subr.mxu0 %v1095
      %1159 = vmatpush1.msra.mxu0 %v1094
      %1160 = vmatprep.subr.mxu0 %v1097
      %1161 = vmatpush1.msra.mxu0 %v1096
      %1162 = vmatprep.subr.mxu0 %v1099
      %1163 = vmatpush1.msra.mxu0 %v1098
      %1164 = vmatprep.subr.mxu0 %v1101
      %1165 = vmatpush1.msra.mxu0 %v1100
      %1166 = vmatprep.subr.mxu0 %v1103
      %1167 = vmatpush1.msra.mxu0 %v1102
      %1168 = vmatprep.subr.mxu0 %v1105
      %1169 = vmatpush1.msra.mxu0 %v1104
      %1170 = vmatprep.subr.mxu0 %v1107
      %1171 = vmatpush1.msra.mxu0 %v1106
      %1172 = vmatprep.subr.mxu0 %v1109
      %1173 = vmatpush1.msra.mxu0 %v1108
      %1174 = vmatprep.subr.mxu0 %v1111
      %1175 = vmatpush1.msra.mxu0 %v1110
      %1176 = vmatprep.subr.mxu0 %v1113
      %1177 = vmatpush1.msra.mxu0 %v1112
      %1178 = vmatprep.subr.mxu0 %v1115
      %1179 = vmatpush1.msra.mxu0 %v1114
      %1180 = vmatprep.subr.mxu0 %v1117
      %1181 = vmatpush1.msra.mxu0 %v1116
      %1182 = vmatprep.subr.mxu0 %v1119
      %1183 = vmatpush1.msra.mxu0 %v1118
      %1184 = vmatprep.subr.mxu0 %v1121
      %1185 = vmatpush1.msra.mxu0 %v1120
      %1186 = vmatprep.subr.mxu0 %v1123
      %1187 = vmatpush1.msra.mxu0 %v1122
      %1188 = vmatprep.subr.mxu0 %v1125
      %1189 = vmatpush1.msra.mxu0 %v1124
      %1190 = vmatprep.subr.mxu0 %v1127
      %1191 = vmatpush1.msra.mxu0 %v1126
      %1192 = vmatprep.subr.mxu0 %v1129
      %1193 = vmatpush1.msra.mxu0 %v1128
      %1194 = vmatprep.subr.mxu0 %v1131
      %1195 = vmatpush1.msra.mxu0 %v1130
      %1196 = vmatprep.subr.mxu0 %v1133
      %1197 = vmatpush1.msra.mxu0 %v1132
      %1198 = vmatprep.subr.mxu0 %v1135
      %1199 = vmatpush1.msra.mxu0 %v1134
      %1200 = vmatprep.subr.mxu0 %v1137
      %1201 = vmatpush1.msra.mxu0 %v1136
      %1202 = vmatprep.subr.mxu0 %v1139
      %1203 = vmatpush1.msra.mxu0 %v1138
      %1204 = vmatprep.subr.mxu0 %v1141
      %1205 = vmatpush1.msra.mxu0 %v1140
      %1206 = vmatprep.subr.mxu0 %v1143
      %1207 = vmatpush1.msra.mxu0 %v1142
      %1208 = vmatprep.subr.mxu0 %v1145
      %1209 = vmatpush1.msra.mxu0 %v1144
      %1210 = vmatprep.subr.mxu0 %v1147
      %1211 = vmatpush1.msra.mxu0 %v1146
      %1212 = vmatprep.subr.mxu0 %v1149
      %1213 = vmatpush1.msra.mxu0 %v1148
      %1214 = vmatprep.subr.mxu0 %v1151
      %1215 = vmatpush1.msra.mxu0 %v1150
      %1216 = vmatprep.subr.mxu0 %v1153
      %1217 = vmatpush1.msra.mxu0 %v1152
      %1218 = vmatprep.subr.mxu0 %v1155
      %1219 = vmatpush1.msra.mxu0 %v1154
      %1220 = vmatprep.mubr.f32.mxu0 %v1032
      %1221 = vmatmul.mubr.f32.gmra.mrb[0].mxu0 %v1029
      %v1222 = vpop.f32.mrb[0].mxu0
      %v1223 = vadd.f32 0.0, %v1222
      %v1224 = vpop.f32.mrb[0].mxu0
      %v1225 = vadd.f32 0.0, %v1224
      %1226 = vmatprep.mubr.f32.mxu0 %v1038
      %1227 = vmatmul.mubr.f32.gmra.mrb[0].mxu0 %v1035
      %v1228 = vpop.f32.mrb[0].mxu0
      %v1229 = vadd.f32 0.0, %v1228
      %v1230 = vpop.f32.mrb[0].mxu0
      %v1231 = vadd.f32 0.0, %v1230
      %1232 = vmatprep.mubr.f32.mxu0 %v1044
      %1233 = vmatmul.mubr.f32.gmra.mrb[0].mxu0 %v1041
      %v1234 = vpop.f32.mrb[0].mxu0
      %v1235 = vadd.f32 0.0, %v1234
      %v1236 = vpop.f32.mrb[0].mxu0
      %v1237 = vadd.f32 0.0, %v1236
      %1238 = vmatprep.mubr.f32.mxu0 %v1050
      %1239 = vmatmul.mubr.f32.gmra.mrb[0].mxu0 %v1047
      %v1240 = vpop.f32.mrb[0].mxu0
      %v1241 = vadd.f32 0.0, %v1240
      %v1242 = vpop.f32.mrb[0].mxu0
      %v1243 = vadd.f32 0.0, %v1242
      %1244 = vmatprep.mubr.f32.mxu0 %v1056
      %1245 = vmatmul.mubr.f32.gmra.mrb[0].mxu0 %v1053
      %v1246 = vpop.f32.mrb[0].mxu0
      %v1247 = vadd.f32 0.0, %v1246
      %v1248 = vpop.f32.mrb[0].mxu0
      %v1249 = vadd.f32 0.0, %v1248
      %1250 = vmatprep.mubr.f32.mxu0 %v1062
      %1251 = vmatmul.mubr.f32.gmra.mrb[0].mxu0 %v1059
      %v1252 = vpop.f32.mrb[0].mxu0
      %v1253 = vadd.f32 0.0, %v1252
      %v1254 = vpop.f32.mrb[0].mxu0
      %v1255 = vadd.f32 0.0, %v1254
      %1256 = vmatprep.mubr.f32.mxu0 %v1068
      %1257 = vmatmul.mubr.f32.gmra.mrb[0].mxu0 %v1065
      %v1258 = vpop.f32.mrb[0].mxu0
      %v1259 = vadd.f32 0.0, %v1258
      %v1260 = vpop.f32.mrb[0].mxu0
      %v1261 = vadd.f32 0.0, %v1260
      %1262 = vmatprep.mubr.f32.mxu0 %v1074
      %1263 = vmatmul.mubr.f32.gmra.mrb[0].mxu0 %v1071
      %v1264 = vpop.f32.mrb[0].mxu0
      %v1265 = vadd.f32 0.0, %v1264
      %v1266 = vpop.f32.mrb[0].mxu0
      %v1267 = vadd.f32 0.0, %v1266
      %1268 = vdwg.mxu0
      %v1269 = vadd.f32 %v916, %v1223
      %v1270 = vadd.f32 %v918, %v1225
      %v1271 = vadd.f32 %v922, %v1229
      %v1272 = vadd.f32 %v924, %v1231
      %v1273 = vadd.f32 %v928, %v1235
      %v1274 = vadd.f32 %v930, %v1237
      %v1275 = vadd.f32 %v934, %v1241
      %v1276 = vadd.f32 %v936, %v1243
      %v1277 = vadd.f32 %v940, %v1247
      %v1278 = vadd.f32 %v942, %v1249
      %v1279 = vadd.f32 %v946, %v1253
      %v1280 = vadd.f32 %v948, %v1255
      %v1281 = vadd.f32 %v952, %v1259
      %v1282 = vadd.f32 %v954, %v1261
      %v1283 = vadd.f32 %v958, %v1265
      %v1284 = vadd.f32 %v960, %v1267
      %v1285 = vld [vmem:[%s429] sm:$0xff]
      %v1286 = vld [vmem:[%s429 + $0x8] sm:$0xff]
      %v1287 = vld [vmem:[%s429 + $0x20] sm:$0xff]
      %v1288 = vld [vmem:[%s429 + $0x28] sm:$0xff]
      %v1289 = vld [vmem:[%s429 + $0x40] sm:$0xff]
      %v1290 = vld [vmem:[%s429 + $0x48] sm:$0xff]
      %v1291 = vld [vmem:[%s429 + $0x60] sm:$0xff]
      %v1292 = vld [vmem:[%s429 + $0x68] sm:$0xff]
      %v1293 = vld [vmem:[%s429 + $0x80] sm:$0xff]
      %v1294 = vld [vmem:[%s429 + $0x88] sm:$0xff]
      %v1295 = vld [vmem:[%s429 + $0xa0] sm:$0xff]
      %v1296 = vld [vmem:[%s429 + $0xa8] sm:$0xff]
      %v1297 = vld [vmem:[%s429 + $0xc0] sm:$0xff]
      %v1298 = vld [vmem:[%s429 + $0xc8] sm:$0xff]
      %v1299 = vld [vmem:[%s429 + $0xe0] sm:$0xff]
      %v1300 = vld [vmem:[%s429 + $0xe8] sm:$0xff]
      %s1301 = scalar_lea.vmem %s1, 1536
      %v1302 = vld [vmem:[%s1301] sm:$0xff]
      %v1303 = vld [vmem:[%s1301 + $0x8] sm:$0xff]
      %v1304 = vld [vmem:[%s1301 + $0x10] sm:$0xff]
      %v1305 = vld [vmem:[%s1301 + $0x18] sm:$0xff]
      %v1306 = vld [vmem:[%s1301 + $0x20] sm:$0xff]
      %v1307 = vld [vmem:[%s1301 + $0x28] sm:$0xff]
      %v1308 = vld [vmem:[%s1301 + $0x30] sm:$0xff]
      %v1309 = vld [vmem:[%s1301 + $0x38] sm:$0xff]
      %v1310 = vld [vmem:[%s1301 + $0x40] sm:$0xff]
      %v1311 = vld [vmem:[%s1301 + $0x48] sm:$0xff]
      %v1312 = vld [vmem:[%s1301 + $0x50] sm:$0xff]
      %v1313 = vld [vmem:[%s1301 + $0x58] sm:$0xff]
      %v1314 = vld [vmem:[%s1301 + $0x60] sm:$0xff]
      %v1315 = vld [vmem:[%s1301 + $0x68] sm:$0xff]
      %v1316 = vld [vmem:[%s1301 + $0x70] sm:$0xff]
      %v1317 = vld [vmem:[%s1301 + $0x78] sm:$0xff]
      %v1318 = vld [vmem:[%s1301 + $0x80] sm:$0xff]
      %v1319 = vld [vmem:[%s1301 + $0x88] sm:$0xff]
      %v1320 = vld [vmem:[%s1301 + $0x90] sm:$0xff]
      %v1321 = vld [vmem:[%s1301 + $0x98] sm:$0xff]
      %v1322 = vld [vmem:[%s1301 + $0xa0] sm:$0xff]
      %v1323 = vld [vmem:[%s1301 + $0xa8] sm:$0xff]
      %v1324 = vld [vmem:[%s1301 + $0xb0] sm:$0xff]
      %v1325 = vld [vmem:[%s1301 + $0xb8] sm:$0xff]
      %v1326 = vld [vmem:[%s1301 + $0xc0] sm:$0xff]
      %v1327 = vld [vmem:[%s1301 + $0xc8] sm:$0xff]
      %v1328 = vld [vmem:[%s1301 + $0xd0] sm:$0xff]
      %v1329 = vld [vmem:[%s1301 + $0xd8] sm:$0xff]
      %v1330 = vld [vmem:[%s1301 + $0xe0] sm:$0xff]
      %v1331 = vld [vmem:[%s1301 + $0xe8] sm:$0xff]
      %v1332 = vld [vmem:[%s1301 + $0xf0] sm:$0xff]
      %v1333 = vld [vmem:[%s1301 + $0xf8] sm:$0xff]
      %v1334 = vld [vmem:[%s1301 + $0x100] sm:$0xff]
      %v1335 = vld [vmem:[%s1301 + $0x108] sm:$0xff]
      %v1336 = vld [vmem:[%s1301 + $0x110] sm:$0xff]
      %v1337 = vld [vmem:[%s1301 + $0x118] sm:$0xff]
      %v1338 = vld [vmem:[%s1301 + $0x120] sm:$0xff]
      %v1339 = vld [vmem:[%s1301 + $0x128] sm:$0xff]
      %v1340 = vld [vmem:[%s1301 + $0x130] sm:$0xff]
      %v1341 = vld [vmem:[%s1301 + $0x138] sm:$0xff]
      %v1342 = vld [vmem:[%s1301 + $0x140] sm:$0xff]
      %v1343 = vld [vmem:[%s1301 + $0x148] sm:$0xff]
      %v1344 = vld [vmem:[%s1301 + $0x150] sm:$0xff]
      %v1345 = vld [vmem:[%s1301 + $0x158] sm:$0xff]
      %v1346 = vld [vmem:[%s1301 + $0x160] sm:$0xff]
      %v1347 = vld [vmem:[%s1301 + $0x168] sm:$0xff]
      %v1348 = vld [vmem:[%s1301 + $0x170] sm:$0xff]
      %v1349 = vld [vmem:[%s1301 + $0x178] sm:$0xff]
      %v1350 = vld [vmem:[%s1301 + $0x180] sm:$0xff]
      %v1351 = vld [vmem:[%s1301 + $0x188] sm:$0xff]
      %v1352 = vld [vmem:[%s1301 + $0x190] sm:$0xff]
      %v1353 = vld [vmem:[%s1301 + $0x198] sm:$0xff]
      %v1354 = vld [vmem:[%s1301 + $0x1a0] sm:$0xff]
      %v1355 = vld [vmem:[%s1301 + $0x1a8] sm:$0xff]
      %v1356 = vld [vmem:[%s1301 + $0x1b0] sm:$0xff]
      %v1357 = vld [vmem:[%s1301 + $0x1b8] sm:$0xff]
      %v1358 = vld [vmem:[%s1301 + $0x1c0] sm:$0xff]
      %v1359 = vld [vmem:[%s1301 + $0x1c8] sm:$0xff]
      %v1360 = vld [vmem:[%s1301 + $0x1d0] sm:$0xff]
      %v1361 = vld [vmem:[%s1301 + $0x1d8] sm:$0xff]
      %v1362 = vld [vmem:[%s1301 + $0x1e0] sm:$0xff]
      %v1363 = vld [vmem:[%s1301 + $0x1e8] sm:$0xff]
      %v1364 = vld [vmem:[%s1301 + $0x1f0] sm:$0xff]
      %v1365 = vld [vmem:[%s1301 + $0x1f8] sm:$0xff]
      %1366 = vmatprep.subr.mxu0 %v1303
      %1367 = vmatpush1.msra.mxu0 %v1302
      %1368 = vmatprep.subr.mxu0 %v1305
      %1369 = vmatpush1.msra.mxu0 %v1304
      %1370 = vmatprep.subr.mxu0 %v1307
      %1371 = vmatpush1.msra.mxu0 %v1306
      %1372 = vmatprep.subr.mxu0 %v1309
      %1373 = vmatpush1.msra.mxu0 %v1308
      %1374 = vmatprep.subr.mxu0 %v1311
      %1375 = vmatpush1.msra.mxu0 %v1310
      %1376 = vmatprep.subr.mxu0 %v1313
      %1377 = vmatpush1.msra.mxu0 %v1312
      %1378 = vmatprep.subr.mxu0 %v1315
      %1379 = vmatpush1.msra.mxu0 %v1314
      %1380 = vmatprep.subr.mxu0 %v1317
      %1381 = vmatpush1.msra.mxu0 %v1316
      %1382 = vmatprep.subr.mxu0 %v1319
      %1383 = vmatpush1.msra.mxu0 %v1318
      %1384 = vmatprep.subr.mxu0 %v1321
      %1385 = vmatpush1.msra.mxu0 %v1320
      %1386 = vmatprep.subr.mxu0 %v1323
      %1387 = vmatpush1.msra.mxu0 %v1322
      %1388 = vmatprep.subr.mxu0 %v1325
      %1389 = vmatpush1.msra.mxu0 %v1324
      %1390 = vmatprep.subr.mxu0 %v1327
      %1391 = vmatpush1.msra.mxu0 %v1326
      %1392 = vmatprep.subr.mxu0 %v1329
      %1393 = vmatpush1.msra.mxu0 %v1328
      %1394 = vmatprep.subr.mxu0 %v1331
      %1395 = vmatpush1.msra.mxu0 %v1330
      %1396 = vmatprep.subr.mxu0 %v1333
      %1397 = vmatpush1.msra.mxu0 %v1332
      %1398 = vmatprep.subr.mxu0 %v1335
      %1399 = vmatpush1.msra.mxu0 %v1334
      %1400 = vmatprep.subr.mxu0 %v1337
      %1401 = vmatpush1.msra.mxu0 %v1336
      %1402 = vmatprep.subr.mxu0 %v1339
      %1403 = vmatpush1.msra.mxu0 %v1338
      %1404 = vmatprep.subr.mxu0 %v1341
      %1405 = vmatpush1.msra.mxu0 %v1340
      %1406 = vmatprep.subr.mxu0 %v1343
      %1407 = vmatpush1.msra.mxu0 %v1342
      %1408 = vmatprep.subr.mxu0 %v1345
      %1409 = vmatpush1.msra.mxu0 %v1344
      %1410 = vmatprep.subr.mxu0 %v1347
      %1411 = vmatpush1.msra.mxu0 %v1346
      %1412 = vmatprep.subr.mxu0 %v1349
      %1413 = vmatpush1.msra.mxu0 %v1348
      %1414 = vmatprep.subr.mxu0 %v1351
      %1415 = vmatpush1.msra.mxu0 %v1350
      %1416 = vmatprep.subr.mxu0 %v1353
      %1417 = vmatpush1.msra.mxu0 %v1352
      %1418 = vmatprep.subr.mxu0 %v1355
      %1419 = vmatpush1.msra.mxu0 %v1354
      %1420 = vmatprep.subr.mxu0 %v1357
      %1421 = vmatpush1.msra.mxu0 %v1356
      %1422 = vmatprep.subr.mxu0 %v1359
      %1423 = vmatpush1.msra.mxu0 %v1358
      %1424 = vmatprep.subr.mxu0 %v1361
      %1425 = vmatpush1.msra.mxu0 %v1360
      %1426 = vmatprep.subr.mxu0 %v1363
      %1427 = vmatpush1.msra.mxu0 %v1362
      %1428 = vmatprep.subr.mxu0 %v1365
      %1429 = vmatpush1.msra.mxu0 %v1364
      %1430 = vmatprep.mubr.f32.mxu0 %v1286
      %1431 = vmatmul.mubr.f32.gmra.mrb[0].mxu0 %v1285
      %v1432 = vpop.f32.mrb[0].mxu0
      %v1433 = vadd.f32 0.0, %v1432
      %v1434 = vpop.f32.mrb[0].mxu0
      %v1435 = vadd.f32 0.0, %v1434
      %1436 = vmatprep.mubr.f32.mxu0 %v1288
      %1437 = vmatmul.mubr.f32.gmra.mrb[0].mxu0 %v1287
      %v1438 = vpop.f32.mrb[0].mxu0
      %v1439 = vadd.f32 0.0, %v1438
      %v1440 = vpop.f32.mrb[0].mxu0
      %v1441 = vadd.f32 0.0, %v1440
      %1442 = vmatprep.mubr.f32.mxu0 %v1290
      %1443 = vmatmul.mubr.f32.gmra.mrb[0].mxu0 %v1289
      %v1444 = vpop.f32.mrb[0].mxu0
      %v1445 = vadd.f32 0.0, %v1444
      %v1446 = vpop.f32.mrb[0].mxu0
      %v1447 = vadd.f32 0.0, %v1446
      %1448 = vmatprep.mubr.f32.mxu0 %v1292
      %1449 = vmatmul.mubr.f32.gmra.mrb[0].mxu0 %v1291
      %v1450 = vpop.f32.mrb[0].mxu0
      %v1451 = vadd.f32 0.0, %v1450
      %v1452 = vpop.f32.mrb[0].mxu0
      %v1453 = vadd.f32 0.0, %v1452
      %1454 = vmatprep.mubr.f32.mxu0 %v1294
      %1455 = vmatmul.mubr.f32.gmra.mrb[0].mxu0 %v1293
      %v1456 = vpop.f32.mrb[0].mxu0
      %v1457 = vadd.f32 0.0, %v1456
      %v1458 = vpop.f32.mrb[0].mxu0
      %v1459 = vadd.f32 0.0, %v1458
      %1460 = vmatprep.mubr.f32.mxu0 %v1296
      %1461 = vmatmul.mubr.f32.gmra.mrb[0].mxu0 %v1295
      %v1462 = vpop.f32.mrb[0].mxu0
      %v1463 = vadd.f32 0.0, %v1462
      %v1464 = vpop.f32.mrb[0].mxu0
      %v1465 = vadd.f32 0.0, %v1464
      %1466 = vmatprep.mubr.f32.mxu0 %v1298
      %1467 = vmatmul.mubr.f32.gmra.mrb[0].mxu0 %v1297
      %v1468 = vpop.f32.mrb[0].mxu0
      %v1469 = vadd.f32 0.0, %v1468
      %v1470 = vpop.f32.mrb[0].mxu0
      %v1471 = vadd.f32 0.0, %v1470
      %1472 = vmatprep.mubr.f32.mxu0 %v1300
      %1473 = vmatmul.mubr.f32.gmra.mrb[0].mxu0 %v1299
      %v1474 = vpop.f32.mrb[0].mxu0
      %v1475 = vadd.f32 0.0, %v1474
      %v1476 = vpop.f32.mrb[0].mxu0
      %v1477 = vadd.f32 0.0, %v1476
      %1478 = vdwg.mxu0
      %v1479 = vadd.f32 %v1269, %v1433
      %v1480 = vadd.f32 %v1270, %v1435
      %v1481 = vadd.f32 %v1271, %v1439
      %v1482 = vadd.f32 %v1272, %v1441
      %v1483 = vadd.f32 %v1273, %v1445
      %v1484 = vadd.f32 %v1274, %v1447
      %v1485 = vadd.f32 %v1275, %v1451
      %v1486 = vadd.f32 %v1276, %v1453
      %v1487 = vadd.f32 %v1277, %v1457
      %v1488 = vadd.f32 %v1278, %v1459
      %v1489 = vadd.f32 %v1279, %v1463
      %v1490 = vadd.f32 %v1280, %v1465
      %v1491 = vadd.f32 %v1281, %v1469
      %v1492 = vadd.f32 %v1282, %v1471
      %v1493 = vadd.f32 %v1283, %v1475
      %v1494 = vadd.f32 %v1284, %v1477
      %v1495 = vld [vmem:[%s429] sm:$0xfe]
      %v1496 = vld [vmem:[%s429 + $0x8] sm:$0xfe]
      %v1497 = vld [vmem:[%s429 + $0x10] sm:$0x1]
      %v1498 = vld [vmem:[%s429 + $0x18] sm:$0x1]
      %v1499 = vld [vmem:[%s429 + $0x20] sm:$0xfe]
      %v1500 = vld [vmem:[%s429 + $0x28] sm:$0xfe]
      %v1501 = vld [vmem:[%s429 + $0x30] sm:$0x1]
      %v1502 = vld [vmem:[%s429 + $0x38] sm:$0x1]
      %v1503 = vld [vmem:[%s429 + $0x40] sm:$0xfe]
      %v1504 = vld [vmem:[%s429 + $0x48] sm:$0xfe]
      %v1505 = vld [vmem:[%s429 + $0x50] sm:$0x1]
      %v1506 = vld [vmem:[%s429 + $0x58] sm:$0x1]
      %v1507 = vld [vmem:[%s429 + $0x60] sm:$0xfe]
      %v1508 = vld [vmem:[%s429 + $0x68] sm:$0xfe]
      %v1509 = vld [vmem:[%s429 + $0x70] sm:$0x1]
      %v1510 = vld [vmem:[%s429 + $0x78] sm:$0x1]
      %v1511 = vld [vmem:[%s429 + $0x80] sm:$0xfe]
      %v1512 = vld [vmem:[%s429 + $0x88] sm:$0xfe]
      %v1513 = vld [vmem:[%s429 + $0x90] sm:$0x1]
      %v1514 = vld [vmem:[%s429 + $0x98] sm:$0x1]
      %v1515 = vld [vmem:[%s429 + $0xa0] sm:$0xfe]
      %v1516 = vld [vmem:[%s429 + $0xa8] sm:$0xfe]
      %v1517 = vld [vmem:[%s429 + $0xb0] sm:$0x1]
      %v1518 = vld [vmem:[%s429 + $0xb8] sm:$0x1]
      %v1519 = vld [vmem:[%s429 + $0xc0] sm:$0xfe]
      %v1520 = vld [vmem:[%s429 + $0xc8] sm:$0xfe]
      %v1521 = vld [vmem:[%s429 + $0xd0] sm:$0x1]
      %v1522 = vld [vmem:[%s429 + $0xd8] sm:$0x1]
      %v1523 = vld [vmem:[%s429 + $0xe0] sm:$0xfe]
      %v1524 = vld [vmem:[%s429 + $0xe8] sm:$0xfe]
      %v1525 = vld [vmem:[%s429 + $0xf0] sm:$0x1]
      %v1526 = vld [vmem:[%s429 + $0xf8] sm:$0x1]
      %v1559 = vrot.slane %v1495, 1
      %v1560 = vrot.slane %v1497, 1
      %v1561 = vsel %vm606, %v1559, %v1560
      %v1562 = vrot.slane %v1496, 1
      %v1563 = vrot.slane %v1498, 1
      %v1564 = vsel %vm606, %v1562, %v1563
      %v1565 = vrot.slane %v1499, 1
      %v1566 = vrot.slane %v1501, 1
      %v1567 = vsel %vm606, %v1565, %v1566
      %v1568 = vrot.slane %v1500, 1
      %v1569 = vrot.slane %v1502, 1
      %v1570 = vsel %vm606, %v1568, %v1569
      %v1571 = vrot.slane %v1503, 1
      %v1572 = vrot.slane %v1505, 1
      %v1573 = vsel %vm606, %v1571, %v1572
      %v1574 = vrot.slane %v1504, 1
      %v1575 = vrot.slane %v1506, 1
      %v1576 = vsel %vm606, %v1574, %v1575
      %v1577 = vrot.slane %v1507, 1
      %v1578 = vrot.slane %v1509, 1
      %v1579 = vsel %vm606, %v1577, %v1578
      %v1580 = vrot.slane %v1508, 1
      %v1581 = vrot.slane %v1510, 1
      %v1582 = vsel %vm606, %v1580, %v1581
      %v1583 = vrot.slane %v1511, 1
      %v1584 = vrot.slane %v1513, 1
      %v1585 = vsel %vm606, %v1583, %v1584
      %v1586 = vrot.slane %v1512, 1
      %v1587 = vrot.slane %v1514, 1
      %v1588 = vsel %vm606, %v1586, %v1587
      %v1589 = vrot.slane %v1515, 1
      %v1590 = vrot.slane %v1517, 1
      %v1591 = vsel %vm606, %v1589, %v1590
      %v1592 = vrot.slane %v1516, 1
      %v1593 = vrot.slane %v1518, 1
      %v1594 = vsel %vm606, %v1592, %v1593
      %v1595 = vrot.slane %v1519, 1
      %v1596 = vrot.slane %v1521, 1
      %v1597 = vsel %vm606, %v1595, %v1596
      %v1598 = vrot.slane %v1520, 1
      %v1599 = vrot.slane %v1522, 1
      %v1600 = vsel %vm606, %v1598, %v1599
      %v1601 = vrot.slane %v1523, 1
      %v1602 = vrot.slane %v1525, 1
      %v1603 = vsel %vm606, %v1601, %v1602
      %v1604 = vrot.slane %v1524, 1
      %v1605 = vrot.slane %v1526, 1
      %v1606 = vsel %vm606, %v1604, %v1605
      %s1623 = scalar_lea.vmem %s1, 2048
      %v1624 = vld [vmem:[%s1623] sm:$0xff]
      %v1625 = vld [vmem:[%s1623 + $0x8] sm:$0xff]
      %v1626 = vld [vmem:[%s1623 + $0x10] sm:$0xff]
      %v1627 = vld [vmem:[%s1623 + $0x18] sm:$0xff]
      %v1628 = vld [vmem:[%s1623 + $0x20] sm:$0xff]
      %v1629 = vld [vmem:[%s1623 + $0x28] sm:$0xff]
      %v1630 = vld [vmem:[%s1623 + $0x30] sm:$0xff]
      %v1631 = vld [vmem:[%s1623 + $0x38] sm:$0xff]
      %v1632 = vld [vmem:[%s1623 + $0x40] sm:$0xff]
      %v1633 = vld [vmem:[%s1623 + $0x48] sm:$0xff]
      %v1634 = vld [vmem:[%s1623 + $0x50] sm:$0xff]
      %v1635 = vld [vmem:[%s1623 + $0x58] sm:$0xff]
      %v1636 = vld [vmem:[%s1623 + $0x60] sm:$0xff]
      %v1637 = vld [vmem:[%s1623 + $0x68] sm:$0xff]
      %v1638 = vld [vmem:[%s1623 + $0x70] sm:$0xff]
      %v1639 = vld [vmem:[%s1623 + $0x78] sm:$0xff]
      %v1640 = vld [vmem:[%s1623 + $0x80] sm:$0xff]
      %v1641 = vld [vmem:[%s1623 + $0x88] sm:$0xff]
      %v1642 = vld [vmem:[%s1623 + $0x90] sm:$0xff]
      %v1643 = vld [vmem:[%s1623 + $0x98] sm:$0xff]
      %v1644 = vld [vmem:[%s1623 + $0xa0] sm:$0xff]
      %v1645 = vld [vmem:[%s1623 + $0xa8] sm:$0xff]
      %v1646 = vld [vmem:[%s1623 + $0xb0] sm:$0xff]
      %v1647 = vld [vmem:[%s1623 + $0xb8] sm:$0xff]
      %v1648 = vld [vmem:[%s1623 + $0xc0] sm:$0xff]
      %v1649 = vld [vmem:[%s1623 + $0xc8] sm:$0xff]
      %v1650 = vld [vmem:[%s1623 + $0xd0] sm:$0xff]
      %v1651 = vld [vmem:[%s1623 + $0xd8] sm:$0xff]
      %v1652 = vld [vmem:[%s1623 + $0xe0] sm:$0xff]
      %v1653 = vld [vmem:[%s1623 + $0xe8] sm:$0xff]
      %v1654 = vld [vmem:[%s1623 + $0xf0] sm:$0xff]
      %v1655 = vld [vmem:[%s1623 + $0xf8] sm:$0xff]
      %v1656 = vld [vmem:[%s1623 + $0x100] sm:$0xff]
      %v1657 = vld [vmem:[%s1623 + $0x108] sm:$0xff]
      %v1658 = vld [vmem:[%s1623 + $0x110] sm:$0xff]
      %v1659 = vld [vmem:[%s1623 + $0x118] sm:$0xff]
      %v1660 = vld [vmem:[%s1623 + $0x120] sm:$0xff]
      %v1661 = vld [vmem:[%s1623 + $0x128] sm:$0xff]
      %v1662 = vld [vmem:[%s1623 + $0x130] sm:$0xff]
      %v1663 = vld [vmem:[%s1623 + $0x138] sm:$0xff]
      %v1664 = vld [vmem:[%s1623 + $0x140] sm:$0xff]
      %v1665 = vld [vmem:[%s1623 + $0x148] sm:$0xff]
      %v1666 = vld [vmem:[%s1623 + $0x150] sm:$0xff]
      %v1667 = vld [vmem:[%s1623 + $0x158] sm:$0xff]
      %v1668 = vld [vmem:[%s1623 + $0x160] sm:$0xff]
      %v1669 = vld [vmem:[%s1623 + $0x168] sm:$0xff]
      %v1670 = vld [vmem:[%s1623 + $0x170] sm:$0xff]
      %v1671 = vld [vmem:[%s1623 + $0x178] sm:$0xff]
      %v1672 = vld [vmem:[%s1623 + $0x180] sm:$0xff]
      %v1673 = vld [vmem:[%s1623 + $0x188] sm:$0xff]
      %v1674 = vld [vmem:[%s1623 + $0x190] sm:$0xff]
      %v1675 = vld [vmem:[%s1623 + $0x198] sm:$0xff]
      %v1676 = vld [vmem:[%s1623 + $0x1a0] sm:$0xff]
      %v1677 = vld [vmem:[%s1623 + $0x1a8] sm:$0xff]
      %v1678 = vld [vmem:[%s1623 + $0x1b0] sm:$0xff]
      %v1679 = vld [vmem:[%s1623 + $0x1b8] sm:$0xff]
      %v1680 = vld [vmem:[%s1623 + $0x1c0] sm:$0xff]
      %v1681 = vld [vmem:[%s1623 + $0x1c8] sm:$0xff]
      %v1682 = vld [vmem:[%s1623 + $0x1d0] sm:$0xff]
      %v1683 = vld [vmem:[%s1623 + $0x1d8] sm:$0xff]
      %v1684 = vld [vmem:[%s1623 + $0x1e0] sm:$0xff]
      %v1685 = vld [vmem:[%s1623 + $0x1e8] sm:$0xff]
      %v1686 = vld [vmem:[%s1623 + $0x1f0] sm:$0xff]
      %v1687 = vld [vmem:[%s1623 + $0x1f8] sm:$0xff]
      %1688 = vmatprep.subr.mxu0 %v1625
      %1689 = vmatpush1.msra.mxu0 %v1624
      %1690 = vmatprep.subr.mxu0 %v1627
      %1691 = vmatpush1.msra.mxu0 %v1626
      %1692 = vmatprep.subr.mxu0 %v1629
      %1693 = vmatpush1.msra.mxu0 %v1628
      %1694 = vmatprep.subr.mxu0 %v1631
      %1695 = vmatpush1.msra.mxu0 %v1630
      %1696 = vmatprep.subr.mxu0 %v1633
      %1697 = vmatpush1.msra.mxu0 %v1632
      %1698 = vmatprep.subr.mxu0 %v1635
      %1699 = vmatpush1.msra.mxu0 %v1634
      %1700 = vmatprep.subr.mxu0 %v1637
      %1701 = vmatpush1.msra.mxu0 %v1636
      %1702 = vmatprep.subr.mxu0 %v1639
      %1703 = vmatpush1.msra.mxu0 %v1638
      %1704 = vmatprep.subr.mxu0 %v1641
      %1705 = vmatpush1.msra.mxu0 %v1640
      %1706 = vmatprep.subr.mxu0 %v1643
      %1707 = vmatpush1.msra.mxu0 %v1642
      %1708 = vmatprep.subr.mxu0 %v1645
      %1709 = vmatpush1.msra.mxu0 %v1644
      %1710 = vmatprep.subr.mxu0 %v1647
      %1711 = vmatpush1.msra.mxu0 %v1646
      %1712 = vmatprep.subr.mxu0 %v1649
      %1713 = vmatpush1.msra.mxu0 %v1648
      %1714 = vmatprep.subr.mxu0 %v1651
      %1715 = vmatpush1.msra.mxu0 %v1650
      %1716 = vmatprep.subr.mxu0 %v1653
      %1717 = vmatpush1.msra.mxu0 %v1652
      %1718 = vmatprep.subr.mxu0 %v1655
      %1719 = vmatpush1.msra.mxu0 %v1654
      %1720 = vmatprep.subr.mxu0 %v1657
      %1721 = vmatpush1.msra.mxu0 %v1656
      %1722 = vmatprep.subr.mxu0 %v1659
      %1723 = vmatpush1.msra.mxu0 %v1658
      %1724 = vmatprep.subr.mxu0 %v1661
      %1725 = vmatpush1.msra.mxu0 %v1660
      %1726 = vmatprep.subr.mxu0 %v1663
      %1727 = vmatpush1.msra.mxu0 %v1662
      %1728 = vmatprep.subr.mxu0 %v1665
      %1729 = vmatpush1.msra.mxu0 %v1664
      %1730 = vmatprep.subr.mxu0 %v1667
      %1731 = vmatpush1.msra.mxu0 %v1666
      %1732 = vmatprep.subr.mxu0 %v1669
      %1733 = vmatpush1.msra.mxu0 %v1668
      %1734 = vmatprep.subr.mxu0 %v1671
      %1735 = vmatpush1.msra.mxu0 %v1670
      %1736 = vmatprep.subr.mxu0 %v1673
      %1737 = vmatpush1.msra.mxu0 %v1672
      %1738 = vmatprep.subr.mxu0 %v1675
      %1739 = vmatpush1.msra.mxu0 %v1674
      %1740 = vmatprep.subr.mxu0 %v1677
      %1741 = vmatpush1.msra.mxu0 %v1676
      %1742 = vmatprep.subr.mxu0 %v1679
      %1743 = vmatpush1.msra.mxu0 %v1678
      %1744 = vmatprep.subr.mxu0 %v1681
      %1745 = vmatpush1.msra.mxu0 %v1680
      %1746 = vmatprep.subr.mxu0 %v1683
      %1747 = vmatpush1.msra.mxu0 %v1682
      %1748 = vmatprep.subr.mxu0 %v1685
      %1749 = vmatpush1.msra.mxu0 %v1684
      %1750 = vmatprep.subr.mxu0 %v1687
      %1751 = vmatpush1.msra.mxu0 %v1686
      %1752 = vmatprep.mubr.f32.mxu0 %v1564
      %1753 = vmatmul.mubr.f32.gmra.mrb[0].mxu0 %v1561
      %v1754 = vpop.f32.mrb[0].mxu0
      %v1755 = vadd.f32 0.0, %v1754
      %v1756 = vpop.f32.mrb[0].mxu0
      %v1757 = vadd.f32 0.0, %v1756
      %1758 = vmatprep.mubr.f32.mxu0 %v1570
      %1759 = vmatmul.mubr.f32.gmra.mrb[0].mxu0 %v1567
      %v1760 = vpop.f32.mrb[0].mxu0
      %v1761 = vadd.f32 0.0, %v1760
      %v1762 = vpop.f32.mrb[0].mxu0
      %v1763 = vadd.f32 0.0, %v1762
      %1764 = vmatprep.mubr.f32.mxu0 %v1576
      %1765 = vmatmul.mubr.f32.gmra.mrb[0].mxu0 %v1573
      %v1766 = vpop.f32.mrb[0].mxu0
      %v1767 = vadd.f32 0.0, %v1766
      %v1768 = vpop.f32.mrb[0].mxu0
      %v1769 = vadd.f32 0.0, %v1768
      %1770 = vmatprep.mubr.f32.mxu0 %v1582
      %1771 = vmatmul.mubr.f32.gmra.mrb[0].mxu0 %v1579
      %v1772 = vpop.f32.mrb[0].mxu0
      %v1773 = vadd.f32 0.0, %v1772
      %v1774 = vpop.f32.mrb[0].mxu0
      %v1775 = vadd.f32 0.0, %v1774
      %1776 = vmatprep.mubr.f32.mxu0 %v1588
      %1777 = vmatmul.mubr.f32.gmra.mrb[0].mxu0 %v1585
      %v1778 = vpop.f32.mrb[0].mxu0
      %v1779 = vadd.f32 0.0, %v1778
      %v1780 = vpop.f32.mrb[0].mxu0
      %v1781 = vadd.f32 0.0, %v1780
      %1782 = vmatprep.mubr.f32.mxu0 %v1594
      %1783 = vmatmul.mubr.f32.gmra.mrb[0].mxu0 %v1591
      %v1784 = vpop.f32.mrb[0].mxu0
      %v1785 = vadd.f32 0.0, %v1784
      %v1786 = vpop.f32.mrb[0].mxu0
      %v1787 = vadd.f32 0.0, %v1786
      %1788 = vmatprep.mubr.f32.mxu0 %v1600
      %1789 = vmatmul.mubr.f32.gmra.mrb[0].mxu0 %v1597
      %v1790 = vpop.f32.mrb[0].mxu0
      %v1791 = vadd.f32 0.0, %v1790
      %v1792 = vpop.f32.mrb[0].mxu0
      %v1793 = vadd.f32 0.0, %v1792
      %1794 = vmatprep.mubr.f32.mxu0 %v1606
      %1795 = vmatmul.mubr.f32.gmra.mrb[0].mxu0 %v1603
      %v1796 = vpop.f32.mrb[0].mxu0
      %v1797 = vadd.f32 0.0, %v1796
      %v1798 = vpop.f32.mrb[0].mxu0
      %v1799 = vadd.f32 0.0, %v1798
      %1800 = vdwg.mxu0
      %v1801 = vadd.f32 %v1479, %v1755
      %v1802 = vadd.f32 %v1480, %v1757
      %v1803 = vadd.f32 %v1481, %v1761
      %v1804 = vadd.f32 %v1482, %v1763
      %v1805 = vadd.f32 %v1483, %v1767
      %v1806 = vadd.f32 %v1484, %v1769
      %v1807 = vadd.f32 %v1485, %v1773
      %v1808 = vadd.f32 %v1486, %v1775
      %v1809 = vadd.f32 %v1487, %v1779
      %v1810 = vadd.f32 %v1488, %v1781
      %v1811 = vadd.f32 %v1489, %v1785
      %v1812 = vadd.f32 %v1490, %v1787
      %v1813 = vadd.f32 %v1491, %v1791
      %v1814 = vadd.f32 %v1492, %v1793
      %v1815 = vadd.f32 %v1493, %v1797
      %v1816 = vadd.f32 %v1494, %v1799
      %v1817 = vld [vmem:[%s429] sm:$0xfc]
      %v1818 = vld [vmem:[%s429 + $0x8] sm:$0xfc]
      %v1819 = vld [vmem:[%s429 + $0x10] sm:$0x3]
      %v1820 = vld [vmem:[%s429 + $0x18] sm:$0x3]
      %v1821 = vld [vmem:[%s429 + $0x20] sm:$0xfc]
      %v1822 = vld [vmem:[%s429 + $0x28] sm:$0xfc]
      %v1823 = vld [vmem:[%s429 + $0x30] sm:$0x3]
      %v1824 = vld [vmem:[%s429 + $0x38] sm:$0x3]
      %v1825 = vld [vmem:[%s429 + $0x40] sm:$0xfc]
      %v1826 = vld [vmem:[%s429 + $0x48] sm:$0xfc]
      %v1827 = vld [vmem:[%s429 + $0x50] sm:$0x3]
      %v1828 = vld [vmem:[%s429 + $0x58] sm:$0x3]
      %v1829 = vld [vmem:[%s429 + $0x60] sm:$0xfc]
      %v1830 = vld [vmem:[%s429 + $0x68] sm:$0xfc]
      %v1831 = vld [vmem:[%s429 + $0x70] sm:$0x3]
      %v1832 = vld [vmem:[%s429 + $0x78] sm:$0x3]
      %v1833 = vld [vmem:[%s429 + $0x80] sm:$0xfc]
      %v1834 = vld [vmem:[%s429 + $0x88] sm:$0xfc]
      %v1835 = vld [vmem:[%s429 + $0x90] sm:$0x3]
      %v1836 = vld [vmem:[%s429 + $0x98] sm:$0x3]
      %v1837 = vld [vmem:[%s429 + $0xa0] sm:$0xfc]
      %v1838 = vld [vmem:[%s429 + $0xa8] sm:$0xfc]
      %v1839 = vld [vmem:[%s429 + $0xb0] sm:$0x3]
      %v1840 = vld [vmem:[%s429 + $0xb8] sm:$0x3]
      %v1841 = vld [vmem:[%s429 + $0xc0] sm:$0xfc]
      %v1842 = vld [vmem:[%s429 + $0xc8] sm:$0xfc]
      %v1843 = vld [vmem:[%s429 + $0xd0] sm:$0x3]
      %v1844 = vld [vmem:[%s429 + $0xd8] sm:$0x3]
      %v1845 = vld [vmem:[%s429 + $0xe0] sm:$0xfc]
      %v1846 = vld [vmem:[%s429 + $0xe8] sm:$0xfc]
      %v1847 = vld [vmem:[%s429 + $0xf0] sm:$0x3]
      %v1848 = vld [vmem:[%s429 + $0xf8] sm:$0x3]
      %v1881 = vrot.slane %v1817, 2
      %v1882 = vrot.slane %v1819, 2
      %v1883 = vsel %vm1026, %v1881, %v1882
      %v1884 = vrot.slane %v1818, 2
      %v1885 = vrot.slane %v1820, 2
      %v1886 = vsel %vm1026, %v1884, %v1885
      %v1887 = vrot.slane %v1821, 2
      %v1888 = vrot.slane %v1823, 2
      %v1889 = vsel %vm1026, %v1887, %v1888
      %v1890 = vrot.slane %v1822, 2
      %v1891 = vrot.slane %v1824, 2
      %v1892 = vsel %vm1026, %v1890, %v1891
      %v1893 = vrot.slane %v1825, 2
      %v1894 = vrot.slane %v1827, 2
      %v1895 = vsel %vm1026, %v1893, %v1894
      %v1896 = vrot.slane %v1826, 2
      %v1897 = vrot.slane %v1828, 2
      %v1898 = vsel %vm1026, %v1896, %v1897
      %v1899 = vrot.slane %v1829, 2
      %v1900 = vrot.slane %v1831, 2
      %v1901 = vsel %vm1026, %v1899, %v1900
      %v1902 = vrot.slane %v1830, 2
      %v1903 = vrot.slane %v1832, 2
      %v1904 = vsel %vm1026, %v1902, %v1903
      %v1905 = vrot.slane %v1833, 2
      %v1906 = vrot.slane %v1835, 2
      %v1907 = vsel %vm1026, %v1905, %v1906
      %v1908 = vrot.slane %v1834, 2
      %v1909 = vrot.slane %v1836, 2
      %v1910 = vsel %vm1026, %v1908, %v1909
      %v1911 = vrot.slane %v1837, 2
      %v1912 = vrot.slane %v1839, 2
      %v1913 = vsel %vm1026, %v1911, %v1912
      %v1914 = vrot.slane %v1838, 2
      %v1915 = vrot.slane %v1840, 2
      %v1916 = vsel %vm1026, %v1914, %v1915
      %v1917 = vrot.slane %v1841, 2
      %v1918 = vrot.slane %v1843, 2
      %v1919 = vsel %vm1026, %v1917, %v1918
      %v1920 = vrot.slane %v1842, 2
      %v1921 = vrot.slane %v1844, 2
      %v1922 = vsel %vm1026, %v1920, %v1921
      %v1923 = vrot.slane %v1845, 2
      %v1924 = vrot.slane %v1847, 2
      %v1925 = vsel %vm1026, %v1923, %v1924
      %v1926 = vrot.slane %v1846, 2
      %v1927 = vrot.slane %v1848, 2
      %v1928 = vsel %vm1026, %v1926, %v1927
      %s1945 = scalar_lea.vmem %s1, 2560
      %v1946 = vld [vmem:[%s1945] sm:$0xff]
      %v1947 = vld [vmem:[%s1945 + $0x8] sm:$0xff]
      %v1948 = vld [vmem:[%s1945 + $0x10] sm:$0xff]
      %v1949 = vld [vmem:[%s1945 + $0x18] sm:$0xff]
      %v1950 = vld [vmem:[%s1945 + $0x20] sm:$0xff]
      %v1951 = vld [vmem:[%s1945 + $0x28] sm:$0xff]
      %v1952 = vld [vmem:[%s1945 + $0x30] sm:$0xff]
      %v1953 = vld [vmem:[%s1945 + $0x38] sm:$0xff]
      %v1954 = vld [vmem:[%s1945 + $0x40] sm:$0xff]
      %v1955 = vld [vmem:[%s1945 + $0x48] sm:$0xff]
      %v1956 = vld [vmem:[%s1945 + $0x50] sm:$0xff]
      %v1957 = vld [vmem:[%s1945 + $0x58] sm:$0xff]
      %v1958 = vld [vmem:[%s1945 + $0x60] sm:$0xff]
      %v1959 = vld [vmem:[%s1945 + $0x68] sm:$0xff]
      %v1960 = vld [vmem:[%s1945 + $0x70] sm:$0xff]
      %v1961 = vld [vmem:[%s1945 + $0x78] sm:$0xff]
      %v1962 = vld [vmem:[%s1945 + $0x80] sm:$0xff]
      %v1963 = vld [vmem:[%s1945 + $0x88] sm:$0xff]
      %v1964 = vld [vmem:[%s1945 + $0x90] sm:$0xff]
      %v1965 = vld [vmem:[%s1945 + $0x98] sm:$0xff]
      %v1966 = vld [vmem:[%s1945 + $0xa0] sm:$0xff]
      %v1967 = vld [vmem:[%s1945 + $0xa8] sm:$0xff]
      %v1968 = vld [vmem:[%s1945 + $0xb0] sm:$0xff]
      %v1969 = vld [vmem:[%s1945 + $0xb8] sm:$0xff]
      %v1970 = vld [vmem:[%s1945 + $0xc0] sm:$0xff]
      %v1971 = vld [vmem:[%s1945 + $0xc8] sm:$0xff]
      %v1972 = vld [vmem:[%s1945 + $0xd0] sm:$0xff]
      %v1973 = vld [vmem:[%s1945 + $0xd8] sm:$0xff]
      %v1974 = vld [vmem:[%s1945 + $0xe0] sm:$0xff]
      %v1975 = vld [vmem:[%s1945 + $0xe8] sm:$0xff]
      %v1976 = vld [vmem:[%s1945 + $0xf0] sm:$0xff]
      %v1977 = vld [vmem:[%s1945 + $0xf8] sm:$0xff]
      %v1978 = vld [vmem:[%s1945 + $0x100] sm:$0xff]
      %v1979 = vld [vmem:[%s1945 + $0x108] sm:$0xff]
      %v1980 = vld [vmem:[%s1945 + $0x110] sm:$0xff]
      %v1981 = vld [vmem:[%s1945 + $0x118] sm:$0xff]
      %v1982 = vld [vmem:[%s1945 + $0x120] sm:$0xff]
      %v1983 = vld [vmem:[%s1945 + $0x128] sm:$0xff]
      %v1984 = vld [vmem:[%s1945 + $0x130] sm:$0xff]
      %v1985 = vld [vmem:[%s1945 + $0x138] sm:$0xff]
      %v1986 = vld [vmem:[%s1945 + $0x140] sm:$0xff]
      %v1987 = vld [vmem:[%s1945 + $0x148] sm:$0xff]
      %v1988 = vld [vmem:[%s1945 + $0x150] sm:$0xff]
      %v1989 = vld [vmem:[%s1945 + $0x158] sm:$0xff]
      %v1990 = vld [vmem:[%s1945 + $0x160] sm:$0xff]
      %v1991 = vld [vmem:[%s1945 + $0x168] sm:$0xff]
      %v1992 = vld [vmem:[%s1945 + $0x170] sm:$0xff]
      %v1993 = vld [vmem:[%s1945 + $0x178] sm:$0xff]
      %v1994 = vld [vmem:[%s1945 + $0x180] sm:$0xff]
      %v1995 = vld [vmem:[%s1945 + $0x188] sm:$0xff]
      %v1996 = vld [vmem:[%s1945 + $0x190] sm:$0xff]
      %v1997 = vld [vmem:[%s1945 + $0x198] sm:$0xff]
      %v1998 = vld [vmem:[%s1945 + $0x1a0] sm:$0xff]
      %v1999 = vld [vmem:[%s1945 + $0x1a8] sm:$0xff]
      %v2000 = vld [vmem:[%s1945 + $0x1b0] sm:$0xff]
      %v2001 = vld [vmem:[%s1945 + $0x1b8] sm:$0xff]
      %v2002 = vld [vmem:[%s1945 + $0x1c0] sm:$0xff]
      %v2003 = vld [vmem:[%s1945 + $0x1c8] sm:$0xff]
      %v2004 = vld [vmem:[%s1945 + $0x1d0] sm:$0xff]
      %v2005 = vld [vmem:[%s1945 + $0x1d8] sm:$0xff]
      %v2006 = vld [vmem:[%s1945 + $0x1e0] sm:$0xff]
      %v2007 = vld [vmem:[%s1945 + $0x1e8] sm:$0xff]
      %v2008 = vld [vmem:[%s1945 + $0x1f0] sm:$0xff]
      %v2009 = vld [vmem:[%s1945 + $0x1f8] sm:$0xff]
      %2010 = vmatprep.subr.mxu0 %v1947
      %2011 = vmatpush1.msra.mxu0 %v1946
      %2012 = vmatprep.subr.mxu0 %v1949
      %2013 = vmatpush1.msra.mxu0 %v1948
      %2014 = vmatprep.subr.mxu0 %v1951
      %2015 = vmatpush1.msra.mxu0 %v1950
      %2016 = vmatprep.subr.mxu0 %v1953
      %2017 = vmatpush1.msra.mxu0 %v1952
      %2018 = vmatprep.subr.mxu0 %v1955
      %2019 = vmatpush1.msra.mxu0 %v1954
      %2020 = vmatprep.subr.mxu0 %v1957
      %2021 = vmatpush1.msra.mxu0 %v1956
      %2022 = vmatprep.subr.mxu0 %v1959
      %2023 = vmatpush1.msra.mxu0 %v1958
      %2024 = vmatprep.subr.mxu0 %v1961
      %2025 = vmatpush1.msra.mxu0 %v1960
      %2026 = vmatprep.subr.mxu0 %v1963
      %2027 = vmatpush1.msra.mxu0 %v1962
      %2028 = vmatprep.subr.mxu0 %v1965
      %2029 = vmatpush1.msra.mxu0 %v1964
      %2030 = vmatprep.subr.mxu0 %v1967
      %2031 = vmatpush1.msra.mxu0 %v1966
      %2032 = vmatprep.subr.mxu0 %v1969
      %2033 = vmatpush1.msra.mxu0 %v1968
      %2034 = vmatprep.subr.mxu0 %v1971
      %2035 = vmatpush1.msra.mxu0 %v1970
      %2036 = vmatprep.subr.mxu0 %v1973
      %2037 = vmatpush1.msra.mxu0 %v1972
      %2038 = vmatprep.subr.mxu0 %v1975
      %2039 = vmatpush1.msra.mxu0 %v1974
      %2040 = vmatprep.subr.mxu0 %v1977
      %2041 = vmatpush1.msra.mxu0 %v1976
      %2042 = vmatprep.subr.mxu0 %v1979
      %2043 = vmatpush1.msra.mxu0 %v1978
      %2044 = vmatprep.subr.mxu0 %v1981
      %2045 = vmatpush1.msra.mxu0 %v1980
      %2046 = vmatprep.subr.mxu0 %v1983
      %2047 = vmatpush1.msra.mxu0 %v1982
      %2048 = vmatprep.subr.mxu0 %v1985
      %2049 = vmatpush1.msra.mxu0 %v1984
      %2050 = vmatprep.subr.mxu0 %v1987
      %2051 = vmatpush1.msra.mxu0 %v1986
      %2052 = vmatprep.subr.mxu0 %v1989
      %2053 = vmatpush1.msra.mxu0 %v1988
      %2054 = vmatprep.subr.mxu0 %v1991
      %2055 = vmatpush1.msra.mxu0 %v1990
      %2056 = vmatprep.subr.mxu0 %v1993
      %2057 = vmatpush1.msra.mxu0 %v1992
      %2058 = vmatprep.subr.mxu0 %v1995
      %2059 = vmatpush1.msra.mxu0 %v1994
      %2060 = vmatprep.subr.mxu0 %v1997
      %2061 = vmatpush1.msra.mxu0 %v1996
      %2062 = vmatprep.subr.mxu0 %v1999
      %2063 = vmatpush1.msra.mxu0 %v1998
      %2064 = vmatprep.subr.mxu0 %v2001
      %2065 = vmatpush1.msra.mxu0 %v2000
      %2066 = vmatprep.subr.mxu0 %v2003
      %2067 = vmatpush1.msra.mxu0 %v2002
      %2068 = vmatprep.subr.mxu0 %v2005
      %2069 = vmatpush1.msra.mxu0 %v2004
      %2070 = vmatprep.subr.mxu0 %v2007
      %2071 = vmatpush1.msra.mxu0 %v2006
      %2072 = vmatprep.subr.mxu0 %v2009
      %2073 = vmatpush1.msra.mxu0 %v2008
      %2074 = vmatprep.mubr.f32.mxu0 %v1886
      %2075 = vmatmul.mubr.f32.gmra.mrb[0].mxu0 %v1883
      %v2076 = vpop.f32.mrb[0].mxu0
      %v2077 = vadd.f32 0.0, %v2076
      %v2078 = vpop.f32.mrb[0].mxu0
      %v2079 = vadd.f32 0.0, %v2078
      %2080 = vmatprep.mubr.f32.mxu0 %v1892
      %2081 = vmatmul.mubr.f32.gmra.mrb[0].mxu0 %v1889
      %v2082 = vpop.f32.mrb[0].mxu0
      %v2083 = vadd.f32 0.0, %v2082
      %v2084 = vpop.f32.mrb[0].mxu0
      %v2085 = vadd.f32 0.0, %v2084
      %2086 = vmatprep.mubr.f32.mxu0 %v1898
      %2087 = vmatmul.mubr.f32.gmra.mrb[0].mxu0 %v1895
      %v2088 = vpop.f32.mrb[0].mxu0
      %v2089 = vadd.f32 0.0, %v2088
      %v2090 = vpop.f32.mrb[0].mxu0
      %v2091 = vadd.f32 0.0, %v2090
      %2092 = vmatprep.mubr.f32.mxu0 %v1904
      %2093 = vmatmul.mubr.f32.gmra.mrb[0].mxu0 %v1901
      %v2094 = vpop.f32.mrb[0].mxu0
      %v2095 = vadd.f32 0.0, %v2094
      %v2096 = vpop.f32.mrb[0].mxu0
      %v2097 = vadd.f32 0.0, %v2096
      %2098 = vmatprep.mubr.f32.mxu0 %v1910
      %2099 = vmatmul.mubr.f32.gmra.mrb[0].mxu0 %v1907
      %v2100 = vpop.f32.mrb[0].mxu0
      %v2101 = vadd.f32 0.0, %v2100
      %v2102 = vpop.f32.mrb[0].mxu0
      %v2103 = vadd.f32 0.0, %v2102
      %2104 = vmatprep.mubr.f32.mxu0 %v1916
      %2105 = vmatmul.mubr.f32.gmra.mrb[0].mxu0 %v1913
      %v2106 = vpop.f32.mrb[0].mxu0
      %v2107 = vadd.f32 0.0, %v2106
      %v2108 = vpop.f32.mrb[0].mxu0
      %v2109 = vadd.f32 0.0, %v2108
      %2110 = vmatprep.mubr.f32.mxu0 %v1922
      %2111 = vmatmul.mubr.f32.gmra.mrb[0].mxu0 %v1919
      %v2112 = vpop.f32.mrb[0].mxu0
      %v2113 = vadd.f32 0.0, %v2112
      %v2114 = vpop.f32.mrb[0].mxu0
      %v2115 = vadd.f32 0.0, %v2114
      %2116 = vmatprep.mubr.f32.mxu0 %v1928
      %2117 = vmatmul.mubr.f32.gmra.mrb[0].mxu0 %v1925
      %v2118 = vpop.f32.mrb[0].mxu0
      %v2119 = vadd.f32 0.0, %v2118
      %v2120 = vpop.f32.mrb[0].mxu0
      %v2121 = vadd.f32 0.0, %v2120
      %2122 = vdwg.mxu0
      %v2123 = vadd.f32 %v1801, %v2077
      %v2124 = vadd.f32 %v1802, %v2079
      %v2125 = vadd.f32 %v1803, %v2083
      %v2126 = vadd.f32 %v1804, %v2085
      %v2127 = vadd.f32 %v1805, %v2089
      %v2128 = vadd.f32 %v1806, %v2091
      %v2129 = vadd.f32 %v1807, %v2095
      %v2130 = vadd.f32 %v1808, %v2097
      %v2131 = vadd.f32 %v1809, %v2101
      %v2132 = vadd.f32 %v1810, %v2103
      %v2133 = vadd.f32 %v1811, %v2107
      %v2134 = vadd.f32 %v1812, %v2109
      %v2135 = vadd.f32 %v1813, %v2113
      %v2136 = vadd.f32 %v1814, %v2115
      %v2137 = vadd.f32 %v1815, %v2119
      %v2138 = vadd.f32 %v1816, %v2121
      %s2139 = scalar_lea.vmem [#allocation2], 64
      %v2140 = vld [vmem:[%s2139] sm:$0xff]
      %v2141 = vld [vmem:[%s2139 + $0x8] sm:$0xff]
      %v2142 = vld [vmem:[%s2139 + $0x20] sm:$0xff]
      %v2143 = vld [vmem:[%s2139 + $0x28] sm:$0xff]
      %v2144 = vld [vmem:[%s2139 + $0x40] sm:$0xff]
      %v2145 = vld [vmem:[%s2139 + $0x48] sm:$0xff]
      %v2146 = vld [vmem:[%s2139 + $0x60] sm:$0xff]
      %v2147 = vld [vmem:[%s2139 + $0x68] sm:$0xff]
      %v2148 = vld [vmem:[%s2139 + $0x80] sm:$0xff]
      %v2149 = vld [vmem:[%s2139 + $0x88] sm:$0xff]
      %v2150 = vld [vmem:[%s2139 + $0xa0] sm:$0xff]
      %v2151 = vld [vmem:[%s2139 + $0xa8] sm:$0xff]
      %v2152 = vld [vmem:[%s2139 + $0xc0] sm:$0xff]
      %v2153 = vld [vmem:[%s2139 + $0xc8] sm:$0xff]
      %v2154 = vld [vmem:[%s2139 + $0xe0] sm:$0xff]
      %v2155 = vld [vmem:[%s2139 + $0xe8] sm:$0xff]
      %s2156 = scalar_lea.vmem %s1, 3072
      %v2157 = vld [vmem:[%s2156] sm:$0xff]
      %v2158 = vld [vmem:[%s2156 + $0x8] sm:$0xff]
      %v2159 = vld [vmem:[%s2156 + $0x10] sm:$0xff]
      %v2160 = vld [vmem:[%s2156 + $0x18] sm:$0xff]
      %v2161 = vld [vmem:[%s2156 + $0x20] sm:$0xff]
      %v2162 = vld [vmem:[%s2156 + $0x28] sm:$0xff]
      %v2163 = vld [vmem:[%s2156 + $0x30] sm:$0xff]
      %v2164 = vld [vmem:[%s2156 + $0x38] sm:$0xff]
      %v2165 = vld [vmem:[%s2156 + $0x40] sm:$0xff]
      %v2166 = vld [vmem:[%s2156 + $0x48] sm:$0xff]
      %v2167 = vld [vmem:[%s2156 + $0x50] sm:$0xff]
      %v2168 = vld [vmem:[%s2156 + $0x58] sm:$0xff]
      %v2169 = vld [vmem:[%s2156 + $0x60] sm:$0xff]
      %v2170 = vld [vmem:[%s2156 + $0x68] sm:$0xff]
      %v2171 = vld [vmem:[%s2156 + $0x70] sm:$0xff]
      %v2172 = vld [vmem:[%s2156 + $0x78] sm:$0xff]
      %v2173 = vld [vmem:[%s2156 + $0x80] sm:$0xff]
      %v2174 = vld [vmem:[%s2156 + $0x88] sm:$0xff]
      %v2175 = vld [vmem:[%s2156 + $0x90] sm:$0xff]
      %v2176 = vld [vmem:[%s2156 + $0x98] sm:$0xff]
      %v2177 = vld [vmem:[%s2156 + $0xa0] sm:$0xff]
      %v2178 = vld [vmem:[%s2156 + $0xa8] sm:$0xff]
      %v2179 = vld [vmem:[%s2156 + $0xb0] sm:$0xff]
      %v2180 = vld [vmem:[%s2156 + $0xb8] sm:$0xff]
      %v2181 = vld [vmem:[%s2156 + $0xc0] sm:$0xff]
      %v2182 = vld [vmem:[%s2156 + $0xc8] sm:$0xff]
      %v2183 = vld [vmem:[%s2156 + $0xd0] sm:$0xff]
      %v2184 = vld [vmem:[%s2156 + $0xd8] sm:$0xff]
      %v2185 = vld [vmem:[%s2156 + $0xe0] sm:$0xff]
      %v2186 = vld [vmem:[%s2156 + $0xe8] sm:$0xff]
      %v2187 = vld [vmem:[%s2156 + $0xf0] sm:$0xff]
      %v2188 = vld [vmem:[%s2156 + $0xf8] sm:$0xff]
      %v2189 = vld [vmem:[%s2156 + $0x100] sm:$0xff]
      %v2190 = vld [vmem:[%s2156 + $0x108] sm:$0xff]
      %v2191 = vld [vmem:[%s2156 + $0x110] sm:$0xff]
      %v2192 = vld [vmem:[%s2156 + $0x118] sm:$0xff]
      %v2193 = vld [vmem:[%s2156 + $0x120] sm:$0xff]
      %v2194 = vld [vmem:[%s2156 + $0x128] sm:$0xff]
      %v2195 = vld [vmem:[%s2156 + $0x130] sm:$0xff]
      %v2196 = vld [vmem:[%s2156 + $0x138] sm:$0xff]
      %v2197 = vld [vmem:[%s2156 + $0x140] sm:$0xff]
      %v2198 = vld [vmem:[%s2156 + $0x148] sm:$0xff]
      %v2199 = vld [vmem:[%s2156 + $0x150] sm:$0xff]
      %v2200 = vld [vmem:[%s2156 + $0x158] sm:$0xff]
      %v2201 = vld [vmem:[%s2156 + $0x160] sm:$0xff]
      %v2202 = vld [vmem:[%s2156 + $0x168] sm:$0xff]
      %v2203 = vld [vmem:[%s2156 + $0x170] sm:$0xff]
      %v2204 = vld [vmem:[%s2156 + $0x178] sm:$0xff]
      %v2205 = vld [vmem:[%s2156 + $0x180] sm:$0xff]
      %v2206 = vld [vmem:[%s2156 + $0x188] sm:$0xff]
      %v2207 = vld [vmem:[%s2156 + $0x190] sm:$0xff]
      %v2208 = vld [vmem:[%s2156 + $0x198] sm:$0xff]
      %v2209 = vld [vmem:[%s2156 + $0x1a0] sm:$0xff]
      %v2210 = vld [vmem:[%s2156 + $0x1a8] sm:$0xff]
      %v2211 = vld [vmem:[%s2156 + $0x1b0] sm:$0xff]
      %v2212 = vld [vmem:[%s2156 + $0x1b8] sm:$0xff]
      %v2213 = vld [vmem:[%s2156 + $0x1c0] sm:$0xff]
      %v2214 = vld [vmem:[%s2156 + $0x1c8] sm:$0xff]
      %v2215 = vld [vmem:[%s2156 + $0x1d0] sm:$0xff]
      %v2216 = vld [vmem:[%s2156 + $0x1d8] sm:$0xff]
      %v2217 = vld [vmem:[%s2156 + $0x1e0] sm:$0xff]
      %v2218 = vld [vmem:[%s2156 + $0x1e8] sm:$0xff]
      %v2219 = vld [vmem:[%s2156 + $0x1f0] sm:$0xff]
      %v2220 = vld [vmem:[%s2156 + $0x1f8] sm:$0xff]
      %2221 = vmatprep.subr.mxu0 %v2158
      %2222 = vmatpush1.msra.mxu0 %v2157
      %2223 = vmatprep.subr.mxu0 %v2160
      %2224 = vmatpush1.msra.mxu0 %v2159
      %2225 = vmatprep.subr.mxu0 %v2162
      %2226 = vmatpush1.msra.mxu0 %v2161
      %2227 = vmatprep.subr.mxu0 %v2164
      %2228 = vmatpush1.msra.mxu0 %v2163
      %2229 = vmatprep.subr.mxu0 %v2166
      %2230 = vmatpush1.msra.mxu0 %v2165
      %2231 = vmatprep.subr.mxu0 %v2168
      %2232 = vmatpush1.msra.mxu0 %v2167
      %2233 = vmatprep.subr.mxu0 %v2170
      %2234 = vmatpush1.msra.mxu0 %v2169
      %2235 = vmatprep.subr.mxu0 %v2172
      %2236 = vmatpush1.msra.mxu0 %v2171
      %2237 = vmatprep.subr.mxu0 %v2174
      %2238 = vmatpush1.msra.mxu0 %v2173
      %2239 = vmatprep.subr.mxu0 %v2176
      %2240 = vmatpush1.msra.mxu0 %v2175
      %2241 = vmatprep.subr.mxu0 %v2178
      %2242 = vmatpush1.msra.mxu0 %v2177
      %2243 = vmatprep.subr.mxu0 %v2180
      %2244 = vmatpush1.msra.mxu0 %v2179
      %2245 = vmatprep.subr.mxu0 %v2182
      %2246 = vmatpush1.msra.mxu0 %v2181
      %2247 = vmatprep.subr.mxu0 %v2184
      %2248 = vmatpush1.msra.mxu0 %v2183
      %2249 = vmatprep.subr.mxu0 %v2186
      %2250 = vmatpush1.msra.mxu0 %v2185
      %2251 = vmatprep.subr.mxu0 %v2188
      %2252 = vmatpush1.msra.mxu0 %v2187
      %2253 = vmatprep.subr.mxu0 %v2190
      %2254 = vmatpush1.msra.mxu0 %v2189
      %2255 = vmatprep.subr.mxu0 %v2192
      %2256 = vmatpush1.msra.mxu0 %v2191
      %2257 = vmatprep.subr.mxu0 %v2194
      %2258 = vmatpush1.msra.mxu0 %v2193
      %2259 = vmatprep.subr.mxu0 %v2196
      %2260 = vmatpush1.msra.mxu0 %v2195
      %2261 = vmatprep.subr.mxu0 %v2198
      %2262 = vmatpush1.msra.mxu0 %v2197
      %2263 = vmatprep.subr.mxu0 %v2200
      %2264 = vmatpush1.msra.mxu0 %v2199
      %2265 = vmatprep.subr.mxu0 %v2202
      %2266 = vmatpush1.msra.mxu0 %v2201
      %2267 = vmatprep.subr.mxu0 %v2204
      %2268 = vmatpush1.msra.mxu0 %v2203
      %2269 = vmatprep.subr.mxu0 %v2206
      %2270 = vmatpush1.msra.mxu0 %v2205
      %2271 = vmatprep.subr.mxu0 %v2208
      %2272 = vmatpush1.msra.mxu0 %v2207
      %2273 = vmatprep.subr.mxu0 %v2210
      %2274 = vmatpush1.msra.mxu0 %v2209
      %2275 = vmatprep.subr.mxu0 %v2212
      %2276 = vmatpush1.msra.mxu0 %v2211
      %2277 = vmatprep.subr.mxu0 %v2214
      %2278 = vmatpush1.msra.mxu0 %v2213
      %2279 = vmatprep.subr.mxu0 %v2216
      %2280 = vmatpush1.msra.mxu0 %v2215
      %2281 = vmatprep.subr.mxu0 %v2218
      %2282 = vmatpush1.msra.mxu0 %v2217
      %2283 = vmatprep.subr.mxu0 %v2220
      %2284 = vmatpush1.msra.mxu0 %v2219
      %2285 = vmatprep.mubr.f32.mxu0 %v2141
      %2286 = vmatmul.mubr.f32.gmra.mrb[0].mxu0 %v2140
      %v2287 = vpop.f32.mrb[0].mxu0
      %v2288 = vadd.f32 0.0, %v2287
      %v2289 = vpop.f32.mrb[0].mxu0
      %v2290 = vadd.f32 0.0, %v2289
      %2291 = vmatprep.mubr.f32.mxu0 %v2143
      %2292 = vmatmul.mubr.f32.gmra.mrb[0].mxu0 %v2142
      %v2293 = vpop.f32.mrb[0].mxu0
      %v2294 = vadd.f32 0.0, %v2293
      %v2295 = vpop.f32.mrb[0].mxu0
      %v2296 = vadd.f32 0.0, %v2295
      %2297 = vmatprep.mubr.f32.mxu0 %v2145
      %2298 = vmatmul.mubr.f32.gmra.mrb[0].mxu0 %v2144
      %v2299 = vpop.f32.mrb[0].mxu0
      %v2300 = vadd.f32 0.0, %v2299
      %v2301 = vpop.f32.mrb[0].mxu0
      %v2302 = vadd.f32 0.0, %v2301
      %2303 = vmatprep.mubr.f32.mxu0 %v2147
      %2304 = vmatmul.mubr.f32.gmra.mrb[0].mxu0 %v2146
      %v2305 = vpop.f32.mrb[0].mxu0
      %v2306 = vadd.f32 0.0, %v2305
      %v2307 = vpop.f32.mrb[0].mxu0
      %v2308 = vadd.f32 0.0, %v2307
      %2309 = vmatprep.mubr.f32.mxu0 %v2149
      %2310 = vmatmul.mubr.f32.gmra.mrb[0].mxu0 %v2148
      %v2311 = vpop.f32.mrb[0].mxu0
      %v2312 = vadd.f32 0.0, %v2311
      %v2313 = vpop.f32.mrb[0].mxu0
      %v2314 = vadd.f32 0.0, %v2313
      %2315 = vmatprep.mubr.f32.mxu0 %v2151
      %2316 = vmatmul.mubr.f32.gmra.mrb[0].mxu0 %v2150
      %v2317 = vpop.f32.mrb[0].mxu0
      %v2318 = vadd.f32 0.0, %v2317
      %v2319 = vpop.f32.mrb[0].mxu0
      %v2320 = vadd.f32 0.0, %v2319
      %2321 = vmatprep.mubr.f32.mxu0 %v2153
      %2322 = vmatmul.mubr.f32.gmra.mrb[0].mxu0 %v2152
      %v2323 = vpop.f32.mrb[0].mxu0
      %v2324 = vadd.f32 0.0, %v2323
      %v2325 = vpop.f32.mrb[0].mxu0
      %v2326 = vadd.f32 0.0, %v2325
      %2327 = vmatprep.mubr.f32.mxu0 %v2155
      %2328 = vmatmul.mubr.f32.gmra.mrb[0].mxu0 %v2154
      %v2329 = vpop.f32.mrb[0].mxu0
      %v2330 = vadd.f32 0.0, %v2329
      %v2331 = vpop.f32.mrb[0].mxu0
      %v2332 = vadd.f32 0.0, %v2331
      %2333 = vdwg.mxu0
      %v2334 = vadd.f32 %v2123, %v2288
      %v2335 = vadd.f32 %v2124, %v2290
      %v2336 = vadd.f32 %v2125, %v2294
      %v2337 = vadd.f32 %v2126, %v2296
      %v2338 = vadd.f32 %v2127, %v2300
      %v2339 = vadd.f32 %v2128, %v2302
      %v2340 = vadd.f32 %v2129, %v2306
      %v2341 = vadd.f32 %v2130, %v2308
      %v2342 = vadd.f32 %v2131, %v2312
      %v2343 = vadd.f32 %v2132, %v2314
      %v2344 = vadd.f32 %v2133, %v2318
      %v2345 = vadd.f32 %v2134, %v2320
      %v2346 = vadd.f32 %v2135, %v2324
      %v2347 = vadd.f32 %v2136, %v2326
      %v2348 = vadd.f32 %v2137, %v2330
      %v2349 = vadd.f32 %v2138, %v2332
      %v2350 = vld [vmem:[%s2139] sm:$0xfe]
      %v2351 = vld [vmem:[%s2139 + $0x8] sm:$0xfe]
      %v2352 = vld [vmem:[%s2139 + $0x10] sm:$0x1]
      %v2353 = vld [vmem:[%s2139 + $0x18] sm:$0x1]
      %v2354 = vld [vmem:[%s2139 + $0x20] sm:$0xfe]
      %v2355 = vld [vmem:[%s2139 + $0x28] sm:$0xfe]
      %v2356 = vld [vmem:[%s2139 + $0x30] sm:$0x1]
      %v2357 = vld [vmem:[%s2139 + $0x38] sm:$0x1]
      %v2358 = vld [vmem:[%s2139 + $0x40] sm:$0xfe]
      %v2359 = vld [vmem:[%s2139 + $0x48] sm:$0xfe]
      %v2360 = vld [vmem:[%s2139 + $0x50] sm:$0x1]
      %v2361 = vld [vmem:[%s2139 + $0x58] sm:$0x1]
      %v2362 = vld [vmem:[%s2139 + $0x60] sm:$0xfe]
      %v2363 = vld [vmem:[%s2139 + $0x68] sm:$0xfe]
      %v2364 = vld [vmem:[%s2139 + $0x70] sm:$0x1]
      %v2365 = vld [vmem:[%s2139 + $0x78] sm:$0x1]
      %v2366 = vld [vmem:[%s2139 + $0x80] sm:$0xfe]
      %v2367 = vld [vmem:[%s2139 + $0x88] sm:$0xfe]
      %v2368 = vld [vmem:[%s2139 + $0x90] sm:$0x1]
      %v2369 = vld [vmem:[%s2139 + $0x98] sm:$0x1]
      %v2370 = vld [vmem:[%s2139 + $0xa0] sm:$0xfe]
      %v2371 = vld [vmem:[%s2139 + $0xa8] sm:$0xfe]
      %v2372 = vld [vmem:[%s2139 + $0xb0] sm:$0x1]
      %v2373 = vld [vmem:[%s2139 + $0xb8] sm:$0x1]
      %v2374 = vld [vmem:[%s2139 + $0xc0] sm:$0xfe]
      %v2375 = vld [vmem:[%s2139 + $0xc8] sm:$0xfe]
      %v2376 = vld [vmem:[%s2139 + $0xd0] sm:$0x1]
      %v2377 = vld [vmem:[%s2139 + $0xd8] sm:$0x1]
      %v2378 = vld [vmem:[%s2139 + $0xe0] sm:$0xfe]
      %v2379 = vld [vmem:[%s2139 + $0xe8] sm:$0xfe]
      %v2380 = vld [vmem:[%s2139 + $0xf0] sm:$0x1]
      %v2381 = vld [vmem:[%s2139 + $0xf8] sm:$0x1]
      %v2414 = vrot.slane %v2350, 1
      %v2415 = vrot.slane %v2352, 1
      %v2416 = vsel %vm606, %v2414, %v2415
      %v2417 = vrot.slane %v2351, 1
      %v2418 = vrot.slane %v2353, 1
      %v2419 = vsel %vm606, %v2417, %v2418
      %v2420 = vrot.slane %v2354, 1
      %v2421 = vrot.slane %v2356, 1
      %v2422 = vsel %vm606, %v2420, %v2421
      %v2423 = vrot.slane %v2355, 1
      %v2424 = vrot.slane %v2357, 1
      %v2425 = vsel %vm606, %v2423, %v2424
      %v2426 = vrot.slane %v2358, 1
      %v2427 = vrot.slane %v2360, 1
      %v2428 = vsel %vm606, %v2426, %v2427
      %v2429 = vrot.slane %v2359, 1
      %v2430 = vrot.slane %v2361, 1
      %v2431 = vsel %vm606, %v2429, %v2430
      %v2432 = vrot.slane %v2362, 1
      %v2433 = vrot.slane %v2364, 1
      %v2434 = vsel %vm606, %v2432, %v2433
      %v2435 = vrot.slane %v2363, 1
      %v2436 = vrot.slane %v2365, 1
      %v2437 = vsel %vm606, %v2435, %v2436
      %v2438 = vrot.slane %v2366, 1
      %v2439 = vrot.slane %v2368, 1
      %v2440 = vsel %vm606, %v2438, %v2439
      %v2441 = vrot.slane %v2367, 1
      %v2442 = vrot.slane %v2369, 1
      %v2443 = vsel %vm606, %v2441, %v2442
      %v2444 = vrot.slane %v2370, 1
      %v2445 = vrot.slane %v2372, 1
      %v2446 = vsel %vm606, %v2444, %v2445
      %v2447 = vrot.slane %v2371, 1
      %v2448 = vrot.slane %v2373, 1
      %v2449 = vsel %vm606, %v2447, %v2448
      %v2450 = vrot.slane %v2374, 1
      %v2451 = vrot.slane %v2376, 1
      %v2452 = vsel %vm606, %v2450, %v2451
      %v2453 = vrot.slane %v2375, 1
      %v2454 = vrot.slane %v2377, 1
      %v2455 = vsel %vm606, %v2453, %v2454
      %v2456 = vrot.slane %v2378, 1
      %v2457 = vrot.slane %v2380, 1
      %v2458 = vsel %vm606, %v2456, %v2457
      %v2459 = vrot.slane %v2379, 1
      %v2460 = vrot.slane %v2381, 1
      %v2461 = vsel %vm606, %v2459, %v2460
      %s2478 = scalar_lea.vmem %s1, 3584
      %v2479 = vld [vmem:[%s2478] sm:$0xff]
      %v2480 = vld [vmem:[%s2478 + $0x8] sm:$0xff]
      %v2481 = vld [vmem:[%s2478 + $0x10] sm:$0xff]
      %v2482 = vld [vmem:[%s2478 + $0x18] sm:$0xff]
      %v2483 = vld [vmem:[%s2478 + $0x20] sm:$0xff]
      %v2484 = vld [vmem:[%s2478 + $0x28] sm:$0xff]
      %v2485 = vld [vmem:[%s2478 + $0x30] sm:$0xff]
      %v2486 = vld [vmem:[%s2478 + $0x38] sm:$0xff]
      %v2487 = vld [vmem:[%s2478 + $0x40] sm:$0xff]
      %v2488 = vld [vmem:[%s2478 + $0x48] sm:$0xff]
      %v2489 = vld [vmem:[%s2478 + $0x50] sm:$0xff]
      %v2490 = vld [vmem:[%s2478 + $0x58] sm:$0xff]
      %v2491 = vld [vmem:[%s2478 + $0x60] sm:$0xff]
      %v2492 = vld [vmem:[%s2478 + $0x68] sm:$0xff]
      %v2493 = vld [vmem:[%s2478 + $0x70] sm:$0xff]
      %v2494 = vld [vmem:[%s2478 + $0x78] sm:$0xff]
      %v2495 = vld [vmem:[%s2478 + $0x80] sm:$0xff]
      %v2496 = vld [vmem:[%s2478 + $0x88] sm:$0xff]
      %v2497 = vld [vmem:[%s2478 + $0x90] sm:$0xff]
      %v2498 = vld [vmem:[%s2478 + $0x98] sm:$0xff]
      %v2499 = vld [vmem:[%s2478 + $0xa0] sm:$0xff]
      %v2500 = vld [vmem:[%s2478 + $0xa8] sm:$0xff]
      %v2501 = vld [vmem:[%s2478 + $0xb0] sm:$0xff]
      %v2502 = vld [vmem:[%s2478 + $0xb8] sm:$0xff]
      %v2503 = vld [vmem:[%s2478 + $0xc0] sm:$0xff]
      %v2504 = vld [vmem:[%s2478 + $0xc8] sm:$0xff]
      %v2505 = vld [vmem:[%s2478 + $0xd0] sm:$0xff]
      %v2506 = vld [vmem:[%s2478 + $0xd8] sm:$0xff]
      %v2507 = vld [vmem:[%s2478 + $0xe0] sm:$0xff]
      %v2508 = vld [vmem:[%s2478 + $0xe8] sm:$0xff]
      %v2509 = vld [vmem:[%s2478 + $0xf0] sm:$0xff]
      %v2510 = vld [vmem:[%s2478 + $0xf8] sm:$0xff]
      %v2511 = vld [vmem:[%s2478 + $0x100] sm:$0xff]
      %v2512 = vld [vmem:[%s2478 + $0x108] sm:$0xff]
      %v2513 = vld [vmem:[%s2478 + $0x110] sm:$0xff]
      %v2514 = vld [vmem:[%s2478 + $0x118] sm:$0xff]
      %v2515 = vld [vmem:[%s2478 + $0x120] sm:$0xff]
      %v2516 = vld [vmem:[%s2478 + $0x128] sm:$0xff]
      %v2517 = vld [vmem:[%s2478 + $0x130] sm:$0xff]
      %v2518 = vld [vmem:[%s2478 + $0x138] sm:$0xff]
      %v2519 = vld [vmem:[%s2478 + $0x140] sm:$0xff]
      %v2520 = vld [vmem:[%s2478 + $0x148] sm:$0xff]
      %v2521 = vld [vmem:[%s2478 + $0x150] sm:$0xff]
      %v2522 = vld [vmem:[%s2478 + $0x158] sm:$0xff]
      %v2523 = vld [vmem:[%s2478 + $0x160] sm:$0xff]
      %v2524 = vld [vmem:[%s2478 + $0x168] sm:$0xff]
      %v2525 = vld [vmem:[%s2478 + $0x170] sm:$0xff]
      %v2526 = vld [vmem:[%s2478 + $0x178] sm:$0xff]
      %v2527 = vld [vmem:[%s2478 + $0x180] sm:$0xff]
      %v2528 = vld [vmem:[%s2478 + $0x188] sm:$0xff]
      %v2529 = vld [vmem:[%s2478 + $0x190] sm:$0xff]
      %v2530 = vld [vmem:[%s2478 + $0x198] sm:$0xff]
      %v2531 = vld [vmem:[%s2478 + $0x1a0] sm:$0xff]
      %v2532 = vld [vmem:[%s2478 + $0x1a8] sm:$0xff]
      %v2533 = vld [vmem:[%s2478 + $0x1b0] sm:$0xff]
      %v2534 = vld [vmem:[%s2478 + $0x1b8] sm:$0xff]
      %v2535 = vld [vmem:[%s2478 + $0x1c0] sm:$0xff]
      %v2536 = vld [vmem:[%s2478 + $0x1c8] sm:$0xff]
      %v2537 = vld [vmem:[%s2478 + $0x1d0] sm:$0xff]
      %v2538 = vld [vmem:[%s2478 + $0x1d8] sm:$0xff]
      %v2539 = vld [vmem:[%s2478 + $0x1e0] sm:$0xff]
      %v2540 = vld [vmem:[%s2478 + $0x1e8] sm:$0xff]
      %v2541 = vld [vmem:[%s2478 + $0x1f0] sm:$0xff]
      %v2542 = vld [vmem:[%s2478 + $0x1f8] sm:$0xff]
      %2543 = vmatprep.subr.mxu0 %v2480
      %2544 = vmatpush1.msra.mxu0 %v2479
      %2545 = vmatprep.subr.mxu0 %v2482
      %2546 = vmatpush1.msra.mxu0 %v2481
      %2547 = vmatprep.subr.mxu0 %v2484
      %2548 = vmatpush1.msra.mxu0 %v2483
      %2549 = vmatprep.subr.mxu0 %v2486
      %2550 = vmatpush1.msra.mxu0 %v2485
      %2551 = vmatprep.subr.mxu0 %v2488
      %2552 = vmatpush1.msra.mxu0 %v2487
      %2553 = vmatprep.subr.mxu0 %v2490
      %2554 = vmatpush1.msra.mxu0 %v2489
      %2555 = vmatprep.subr.mxu0 %v2492
      %2556 = vmatpush1.msra.mxu0 %v2491
      %2557 = vmatprep.subr.mxu0 %v2494
      %2558 = vmatpush1.msra.mxu0 %v2493
      %2559 = vmatprep.subr.mxu0 %v2496
      %2560 = vmatpush1.msra.mxu0 %v2495
      %2561 = vmatprep.subr.mxu0 %v2498
      %2562 = vmatpush1.msra.mxu0 %v2497
      %2563 = vmatprep.subr.mxu0 %v2500
      %2564 = vmatpush1.msra.mxu0 %v2499
      %2565 = vmatprep.subr.mxu0 %v2502
      %2566 = vmatpush1.msra.mxu0 %v2501
      %2567 = vmatprep.subr.mxu0 %v2504
      %2568 = vmatpush1.msra.mxu0 %v2503
      %2569 = vmatprep.subr.mxu0 %v2506
      %2570 = vmatpush1.msra.mxu0 %v2505
      %2571 = vmatprep.subr.mxu0 %v2508
      %2572 = vmatpush1.msra.mxu0 %v2507
      %2573 = vmatprep.subr.mxu0 %v2510
      %2574 = vmatpush1.msra.mxu0 %v2509
      %2575 = vmatprep.subr.mxu0 %v2512
      %2576 = vmatpush1.msra.mxu0 %v2511
      %2577 = vmatprep.subr.mxu0 %v2514
      %2578 = vmatpush1.msra.mxu0 %v2513
      %2579 = vmatprep.subr.mxu0 %v2516
      %2580 = vmatpush1.msra.mxu0 %v2515
      %2581 = vmatprep.subr.mxu0 %v2518
      %2582 = vmatpush1.msra.mxu0 %v2517
      %2583 = vmatprep.subr.mxu0 %v2520
      %2584 = vmatpush1.msra.mxu0 %v2519
      %2585 = vmatprep.subr.mxu0 %v2522
      %2586 = vmatpush1.msra.mxu0 %v2521
      %2587 = vmatprep.subr.mxu0 %v2524
      %2588 = vmatpush1.msra.mxu0 %v2523
      %2589 = vmatprep.subr.mxu0 %v2526
      %2590 = vmatpush1.msra.mxu0 %v2525
      %2591 = vmatprep.subr.mxu0 %v2528
      %2592 = vmatpush1.msra.mxu0 %v2527
      %2593 = vmatprep.subr.mxu0 %v2530
      %2594 = vmatpush1.msra.mxu0 %v2529
      %2595 = vmatprep.subr.mxu0 %v2532
      %2596 = vmatpush1.msra.mxu0 %v2531
      %2597 = vmatprep.subr.mxu0 %v2534
      %2598 = vmatpush1.msra.mxu0 %v2533
      %2599 = vmatprep.subr.mxu0 %v2536
      %2600 = vmatpush1.msra.mxu0 %v2535
      %2601 = vmatprep.subr.mxu0 %v2538
      %2602 = vmatpush1.msra.mxu0 %v2537
      %2603 = vmatprep.subr.mxu0 %v2540
      %2604 = vmatpush1.msra.mxu0 %v2539
      %2605 = vmatprep.subr.mxu0 %v2542
      %2606 = vmatpush1.msra.mxu0 %v2541
      %2607 = vmatprep.mubr.f32.mxu0 %v2419
      %2608 = vmatmul.mubr.f32.gmra.mrb[0].mxu0 %v2416
      %v2609 = vpop.f32.mrb[0].mxu0
      %v2610 = vadd.f32 0.0, %v2609
      %v2611 = vpop.f32.mrb[0].mxu0
      %v2612 = vadd.f32 0.0, %v2611
      %2613 = vmatprep.mubr.f32.mxu0 %v2425
      %2614 = vmatmul.mubr.f32.gmra.mrb[0].mxu0 %v2422
      %v2615 = vpop.f32.mrb[0].mxu0
      %v2616 = vadd.f32 0.0, %v2615
      %v2617 = vpop.f32.mrb[0].mxu0
      %v2618 = vadd.f32 0.0, %v2617
      %2619 = vmatprep.mubr.f32.mxu0 %v2431
      %2620 = vmatmul.mubr.f32.gmra.mrb[0].mxu0 %v2428
      %v2621 = vpop.f32.mrb[0].mxu0
      %v2622 = vadd.f32 0.0, %v2621
      %v2623 = vpop.f32.mrb[0].mxu0
      %v2624 = vadd.f32 0.0, %v2623
      %2625 = vmatprep.mubr.f32.mxu0 %v2437
      %2626 = vmatmul.mubr.f32.gmra.mrb[0].mxu0 %v2434
      %v2627 = vpop.f32.mrb[0].mxu0
      %v2628 = vadd.f32 0.0, %v2627
      %v2629 = vpop.f32.mrb[0].mxu0
      %v2630 = vadd.f32 0.0, %v2629
      %2631 = vmatprep.mubr.f32.mxu0 %v2443
      %2632 = vmatmul.mubr.f32.gmra.mrb[0].mxu0 %v2440
      %v2633 = vpop.f32.mrb[0].mxu0
      %v2634 = vadd.f32 0.0, %v2633
      %v2635 = vpop.f32.mrb[0].mxu0
      %v2636 = vadd.f32 0.0, %v2635
      %2637 = vmatprep.mubr.f32.mxu0 %v2449
      %2638 = vmatmul.mubr.f32.gmra.mrb[0].mxu0 %v2446
      %v2639 = vpop.f32.mrb[0].mxu0
      %v2640 = vadd.f32 0.0, %v2639
      %v2641 = vpop.f32.mrb[0].mxu0
      %v2642 = vadd.f32 0.0, %v2641
      %2643 = vmatprep.mubr.f32.mxu0 %v2455
      %2644 = vmatmul.mubr.f32.gmra.mrb[0].mxu0 %v2452
      %v2645 = vpop.f32.mrb[0].mxu0
      %v2646 = vadd.f32 0.0, %v2645
      %v2647 = vpop.f32.mrb[0].mxu0
      %v2648 = vadd.f32 0.0, %v2647
      %2649 = vmatprep.mubr.f32.mxu0 %v2461
      %2650 = vmatmul.mubr.f32.gmra.mrb[0].mxu0 %v2458
      %v2651 = vpop.f32.mrb[0].mxu0
      %v2652 = vadd.f32 0.0, %v2651
      %v2653 = vpop.f32.mrb[0].mxu0
      %v2654 = vadd.f32 0.0, %v2653
      %2655 = vdwg.mxu0
      %v2656 = vadd.f32 %v2334, %v2610
      %v2657 = vadd.f32 %v2335, %v2612
      %v2658 = vadd.f32 %v2336, %v2616
      %v2659 = vadd.f32 %v2337, %v2618
      %v2660 = vadd.f32 %v2338, %v2622
      %v2661 = vadd.f32 %v2339, %v2624
      %v2662 = vadd.f32 %v2340, %v2628
      %v2663 = vadd.f32 %v2341, %v2630
      %v2664 = vadd.f32 %v2342, %v2634
      %v2665 = vadd.f32 %v2343, %v2636
      %v2666 = vadd.f32 %v2344, %v2640
      %v2667 = vadd.f32 %v2345, %v2642
      %v2668 = vadd.f32 %v2346, %v2646
      %v2669 = vadd.f32 %v2347, %v2648
      %v2670 = vadd.f32 %v2348, %v2652
      %v2671 = vadd.f32 %v2349, %v2654
      %v2672 = vld [vmem:[%s2139] sm:$0xfc]
      %v2673 = vld [vmem:[%s2139 + $0x8] sm:$0xfc]
      %v2674 = vld [vmem:[%s2139 + $0x10] sm:$0x3]
      %v2675 = vld [vmem:[%s2139 + $0x18] sm:$0x3]
      %v2676 = vld [vmem:[%s2139 + $0x20] sm:$0xfc]
      %v2677 = vld [vmem:[%s2139 + $0x28] sm:$0xfc]
      %v2678 = vld [vmem:[%s2139 + $0x30] sm:$0x3]
      %v2679 = vld [vmem:[%s2139 + $0x38] sm:$0x3]
      %v2680 = vld [vmem:[%s2139 + $0x40] sm:$0xfc]
      %v2681 = vld [vmem:[%s2139 + $0x48] sm:$0xfc]
      %v2682 = vld [vmem:[%s2139 + $0x50] sm:$0x3]
      %v2683 = vld [vmem:[%s2139 + $0x58] sm:$0x3]
      %v2684 = vld [vmem:[%s2139 + $0x60] sm:$0xfc]
      %v2685 = vld [vmem:[%s2139 + $0x68] sm:$0xfc]
      %v2686 = vld [vmem:[%s2139 + $0x70] sm:$0x3]
      %v2687 = vld [vmem:[%s2139 + $0x78] sm:$0x3]
      %v2688 = vld [vmem:[%s2139 + $0x80] sm:$0xfc]
      %v2689 = vld [vmem:[%s2139 + $0x88] sm:$0xfc]
      %v2690 = vld [vmem:[%s2139 + $0x90] sm:$0x3]
      %v2691 = vld [vmem:[%s2139 + $0x98] sm:$0x3]
      %v2692 = vld [vmem:[%s2139 + $0xa0] sm:$0xfc]
      %v2693 = vld [vmem:[%s2139 + $0xa8] sm:$0xfc]
      %v2694 = vld [vmem:[%s2139 + $0xb0] sm:$0x3]
      %v2695 = vld [vmem:[%s2139 + $0xb8] sm:$0x3]
      %v2696 = vld [vmem:[%s2139 + $0xc0] sm:$0xfc]
      %v2697 = vld [vmem:[%s2139 + $0xc8] sm:$0xfc]
      %v2698 = vld [vmem:[%s2139 + $0xd0] sm:$0x3]
      %v2699 = vld [vmem:[%s2139 + $0xd8] sm:$0x3]
      %v2700 = vld [vmem:[%s2139 + $0xe0] sm:$0xfc]
      %v2701 = vld [vmem:[%s2139 + $0xe8] sm:$0xfc]
      %v2702 = vld [vmem:[%s2139 + $0xf0] sm:$0x3]
      %v2703 = vld [vmem:[%s2139 + $0xf8] sm:$0x3]
      %v2736 = vrot.slane %v2672, 2
      %v2737 = vrot.slane %v2674, 2
      %v2738 = vsel %vm1026, %v2736, %v2737
      %v2739 = vrot.slane %v2673, 2
      %v2740 = vrot.slane %v2675, 2
      %v2741 = vsel %vm1026, %v2739, %v2740
      %v2742 = vrot.slane %v2676, 2
      %v2743 = vrot.slane %v2678, 2
      %v2744 = vsel %vm1026, %v2742, %v2743
      %v2745 = vrot.slane %v2677, 2
      %v2746 = vrot.slane %v2679, 2
      %v2747 = vsel %vm1026, %v2745, %v2746
      %v2748 = vrot.slane %v2680, 2
      %v2749 = vrot.slane %v2682, 2
      %v2750 = vsel %vm1026, %v2748, %v2749
      %v2751 = vrot.slane %v2681, 2
      %v2752 = vrot.slane %v2683, 2
      %v2753 = vsel %vm1026, %v2751, %v2752
      %v2754 = vrot.slane %v2684, 2
      %v2755 = vrot.slane %v2686, 2
      %v2756 = vsel %vm1026, %v2754, %v2755
      %v2757 = vrot.slane %v2685, 2
      %v2758 = vrot.slane %v2687, 2
      %v2759 = vsel %vm1026, %v2757, %v2758
      %v2760 = vrot.slane %v2688, 2
      %v2761 = vrot.slane %v2690, 2
      %v2762 = vsel %vm1026, %v2760, %v2761
      %v2763 = vrot.slane %v2689, 2
      %v2764 = vrot.slane %v2691, 2
      %v2765 = vsel %vm1026, %v2763, %v2764
      %v2766 = vrot.slane %v2692, 2
      %v2767 = vrot.slane %v2694, 2
      %v2768 = vsel %vm1026, %v2766, %v2767
      %v2769 = vrot.slane %v2693, 2
      %v2770 = vrot.slane %v2695, 2
      %v2771 = vsel %vm1026, %v2769, %v2770
      %v2772 = vrot.slane %v2696, 2
      %v2773 = vrot.slane %v2698, 2
      %v2774 = vsel %vm1026, %v2772, %v2773
      %v2775 = vrot.slane %v2697, 2
      %v2776 = vrot.slane %v2699, 2
      %v2777 = vsel %vm1026, %v2775, %v2776
      %v2778 = vrot.slane %v2700, 2
      %v2779 = vrot.slane %v2702, 2
      %v2780 = vsel %vm1026, %v2778, %v2779
      %v2781 = vrot.slane %v2701, 2
      %v2782 = vrot.slane %v2703, 2
      %v2783 = vsel %vm1026, %v2781, %v2782
      %s2800 = scalar_lea.vmem %s1, 4096
      %v2801 = vld [vmem:[%s2800] sm:$0xff]
      %v2802 = vld [vmem:[%s2800 + $0x8] sm:$0xff]
      %v2803 = vld [vmem:[%s2800 + $0x10] sm:$0xff]
      %v2804 = vld [vmem:[%s2800 + $0x18] sm:$0xff]
      %v2805 = vld [vmem:[%s2800 + $0x20] sm:$0xff]
      %v2806 = vld [vmem:[%s2800 + $0x28] sm:$0xff]
      %v2807 = vld [vmem:[%s2800 + $0x30] sm:$0xff]
      %v2808 = vld [vmem:[%s2800 + $0x38] sm:$0xff]
      %v2809 = vld [vmem:[%s2800 + $0x40] sm:$0xff]
      %v2810 = vld [vmem:[%s2800 + $0x48] sm:$0xff]
      %v2811 = vld [vmem:[%s2800 + $0x50] sm:$0xff]
      %v2812 = vld [vmem:[%s2800 + $0x58] sm:$0xff]
      %v2813 = vld [vmem:[%s2800 + $0x60] sm:$0xff]
      %v2814 = vld [vmem:[%s2800 + $0x68] sm:$0xff]
      %v2815 = vld [vmem:[%s2800 + $0x70] sm:$0xff]
      %v2816 = vld [vmem:[%s2800 + $0x78] sm:$0xff]
      %v2817 = vld [vmem:[%s2800 + $0x80] sm:$0xff]
      %v2818 = vld [vmem:[%s2800 + $0x88] sm:$0xff]
      %v2819 = vld [vmem:[%s2800 + $0x90] sm:$0xff]
      %v2820 = vld [vmem:[%s2800 + $0x98] sm:$0xff]
      %v2821 = vld [vmem:[%s2800 + $0xa0] sm:$0xff]
      %v2822 = vld [vmem:[%s2800 + $0xa8] sm:$0xff]
      %v2823 = vld [vmem:[%s2800 + $0xb0] sm:$0xff]
      %v2824 = vld [vmem:[%s2800 + $0xb8] sm:$0xff]
      %v2825 = vld [vmem:[%s2800 + $0xc0] sm:$0xff]
      %v2826 = vld [vmem:[%s2800 + $0xc8] sm:$0xff]
      %v2827 = vld [vmem:[%s2800 + $0xd0] sm:$0xff]
      %v2828 = vld [vmem:[%s2800 + $0xd8] sm:$0xff]
      %v2829 = vld [vmem:[%s2800 + $0xe0] sm:$0xff]
      %v2830 = vld [vmem:[%s2800 + $0xe8] sm:$0xff]
      %v2831 = vld [vmem:[%s2800 + $0xf0] sm:$0xff]
      %v2832 = vld [vmem:[%s2800 + $0xf8] sm:$0xff]
      %v2833 = vld [vmem:[%s2800 + $0x100] sm:$0xff]
      %v2834 = vld [vmem:[%s2800 + $0x108] sm:$0xff]
      %v2835 = vld [vmem:[%s2800 + $0x110] sm:$0xff]
      %v2836 = vld [vmem:[%s2800 + $0x118] sm:$0xff]
      %v2837 = vld [vmem:[%s2800 + $0x120] sm:$0xff]
      %v2838 = vld [vmem:[%s2800 + $0x128] sm:$0xff]
      %v2839 = vld [vmem:[%s2800 + $0x130] sm:$0xff]
      %v2840 = vld [vmem:[%s2800 + $0x138] sm:$0xff]
      %v2841 = vld [vmem:[%s2800 + $0x140] sm:$0xff]
      %v2842 = vld [vmem:[%s2800 + $0x148] sm:$0xff]
      %v2843 = vld [vmem:[%s2800 + $0x150] sm:$0xff]
      %v2844 = vld [vmem:[%s2800 + $0x158] sm:$0xff]
      %v2845 = vld [vmem:[%s2800 + $0x160] sm:$0xff]
      %v2846 = vld [vmem:[%s2800 + $0x168] sm:$0xff]
      %v2847 = vld [vmem:[%s2800 + $0x170] sm:$0xff]
      %v2848 = vld [vmem:[%s2800 + $0x178] sm:$0xff]
      %v2849 = vld [vmem:[%s2800 + $0x180] sm:$0xff]
      %v2850 = vld [vmem:[%s2800 + $0x188] sm:$0xff]
      %v2851 = vld [vmem:[%s2800 + $0x190] sm:$0xff]
      %v2852 = vld [vmem:[%s2800 + $0x198] sm:$0xff]
      %v2853 = vld [vmem:[%s2800 + $0x1a0] sm:$0xff]
      %v2854 = vld [vmem:[%s2800 + $0x1a8] sm:$0xff]
      %v2855 = vld [vmem:[%s2800 + $0x1b0] sm:$0xff]
      %v2856 = vld [vmem:[%s2800 + $0x1b8] sm:$0xff]
      %v2857 = vld [vmem:[%s2800 + $0x1c0] sm:$0xff]
      %v2858 = vld [vmem:[%s2800 + $0x1c8] sm:$0xff]
      %v2859 = vld [vmem:[%s2800 + $0x1d0] sm:$0xff]
      %v2860 = vld [vmem:[%s2800 + $0x1d8] sm:$0xff]
      %v2861 = vld [vmem:[%s2800 + $0x1e0] sm:$0xff]
      %v2862 = vld [vmem:[%s2800 + $0x1e8] sm:$0xff]
      %v2863 = vld [vmem:[%s2800 + $0x1f0] sm:$0xff]
      %v2864 = vld [vmem:[%s2800 + $0x1f8] sm:$0xff]
      %2865 = vmatprep.subr.mxu0 %v2802
      %2866 = vmatpush1.msra.mxu0 %v2801
      %2867 = vmatprep.subr.mxu0 %v2804
      %2868 = vmatpush1.msra.mxu0 %v2803
      %2869 = vmatprep.subr.mxu0 %v2806
      %2870 = vmatpush1.msra.mxu0 %v2805
      %2871 = vmatprep.subr.mxu0 %v2808
      %2872 = vmatpush1.msra.mxu0 %v2807
      %2873 = vmatprep.subr.mxu0 %v2810
      %2874 = vmatpush1.msra.mxu0 %v2809
      %2875 = vmatprep.subr.mxu0 %v2812
      %2876 = vmatpush1.msra.mxu0 %v2811
      %2877 = vmatprep.subr.mxu0 %v2814
      %2878 = vmatpush1.msra.mxu0 %v2813
      %2879 = vmatprep.subr.mxu0 %v2816
      %2880 = vmatpush1.msra.mxu0 %v2815
      %2881 = vmatprep.subr.mxu0 %v2818
      %2882 = vmatpush1.msra.mxu0 %v2817
      %2883 = vmatprep.subr.mxu0 %v2820
      %2884 = vmatpush1.msra.mxu0 %v2819
      %2885 = vmatprep.subr.mxu0 %v2822
      %2886 = vmatpush1.msra.mxu0 %v2821
      %2887 = vmatprep.subr.mxu0 %v2824
      %2888 = vmatpush1.msra.mxu0 %v2823
      %2889 = vmatprep.subr.mxu0 %v2826
      %2890 = vmatpush1.msra.mxu0 %v2825
      %2891 = vmatprep.subr.mxu0 %v2828
      %2892 = vmatpush1.msra.mxu0 %v2827
      %2893 = vmatprep.subr.mxu0 %v2830
      %2894 = vmatpush1.msra.mxu0 %v2829
      %2895 = vmatprep.subr.mxu0 %v2832
      %2896 = vmatpush1.msra.mxu0 %v2831
      %2897 = vmatprep.subr.mxu0 %v2834
      %2898 = vmatpush1.msra.mxu0 %v2833
      %2899 = vmatprep.subr.mxu0 %v2836
      %2900 = vmatpush1.msra.mxu0 %v2835
      %2901 = vmatprep.subr.mxu0 %v2838
      %2902 = vmatpush1.msra.mxu0 %v2837
      %2903 = vmatprep.subr.mxu0 %v2840
      %2904 = vmatpush1.msra.mxu0 %v2839
      %2905 = vmatprep.subr.mxu0 %v2842
      %2906 = vmatpush1.msra.mxu0 %v2841
      %2907 = vmatprep.subr.mxu0 %v2844
      %2908 = vmatpush1.msra.mxu0 %v2843
      %2909 = vmatprep.subr.mxu0 %v2846
      %2910 = vmatpush1.msra.mxu0 %v2845
      %2911 = vmatprep.subr.mxu0 %v2848
      %2912 = vmatpush1.msra.mxu0 %v2847
      %2913 = vmatprep.subr.mxu0 %v2850
      %2914 = vmatpush1.msra.mxu0 %v2849
      %2915 = vmatprep.subr.mxu0 %v2852
      %2916 = vmatpush1.msra.mxu0 %v2851
      %2917 = vmatprep.subr.mxu0 %v2854
      %2918 = vmatpush1.msra.mxu0 %v2853
      %2919 = vmatprep.subr.mxu0 %v2856
      %2920 = vmatpush1.msra.mxu0 %v2855
      %2921 = vmatprep.subr.mxu0 %v2858
      %2922 = vmatpush1.msra.mxu0 %v2857
      %2923 = vmatprep.subr.mxu0 %v2860
      %2924 = vmatpush1.msra.mxu0 %v2859
      %2925 = vmatprep.subr.mxu0 %v2862
      %2926 = vmatpush1.msra.mxu0 %v2861
      %2927 = vmatprep.subr.mxu0 %v2864
      %2928 = vmatpush1.msra.mxu0 %v2863
      %2929 = vmatprep.mubr.f32.mxu0 %v2741
      %2930 = vmatmul.mubr.f32.gmra.mrb[0].mxu0 %v2738
      %v2931 = vpop.f32.mrb[0].mxu0
      %v2932 = vadd.f32 0.0, %v2931
      %v2933 = vpop.f32.mrb[0].mxu0
      %v2934 = vadd.f32 0.0, %v2933
      %2935 = vmatprep.mubr.f32.mxu0 %v2747
      %2936 = vmatmul.mubr.f32.gmra.mrb[0].mxu0 %v2744
      %v2937 = vpop.f32.mrb[0].mxu0
      %v2938 = vadd.f32 0.0, %v2937
      %v2939 = vpop.f32.mrb[0].mxu0
      %v2940 = vadd.f32 0.0, %v2939
      %2941 = vmatprep.mubr.f32.mxu0 %v2753
      %2942 = vmatmul.mubr.f32.gmra.mrb[0].mxu0 %v2750
      %v2943 = vpop.f32.mrb[0].mxu0
      %v2944 = vadd.f32 0.0, %v2943
      %v2945 = vpop.f32.mrb[0].mxu0
      %v2946 = vadd.f32 0.0, %v2945
      %2947 = vmatprep.mubr.f32.mxu0 %v2759
      %2948 = vmatmul.mubr.f32.gmra.mrb[0].mxu0 %v2756
      %v2949 = vpop.f32.mrb[0].mxu0
      %v2950 = vadd.f32 0.0, %v2949
      %v2951 = vpop.f32.mrb[0].mxu0
      %v2952 = vadd.f32 0.0, %v2951
      %2953 = vmatprep.mubr.f32.mxu0 %v2765
      %2954 = vmatmul.mubr.f32.gmra.mrb[0].mxu0 %v2762
      %v2955 = vpop.f32.mrb[0].mxu0
      %v2956 = vadd.f32 0.0, %v2955
      %v2957 = vpop.f32.mrb[0].mxu0
      %v2958 = vadd.f32 0.0, %v2957
      %2959 = vmatprep.mubr.f32.mxu0 %v2771
      %2960 = vmatmul.mubr.f32.gmra.mrb[0].mxu0 %v2768
      %v2961 = vpop.f32.mrb[0].mxu0
      %v2962 = vadd.f32 0.0, %v2961
      %v2963 = vpop.f32.mrb[0].mxu0
      %v2964 = vadd.f32 0.0, %v2963
      %2965 = vmatprep.mubr.f32.mxu0 %v2777
      %2966 = vmatmul.mubr.f32.gmra.mrb[0].mxu0 %v2774
      %v2967 = vpop.f32.mrb[0].mxu0
      %v2968 = vadd.f32 0.0, %v2967
      %v2969 = vpop.f32.mrb[0].mxu0
      %v2970 = vadd.f32 0.0, %v2969
      %2971 = vmatprep.mubr.f32.mxu0 %v2783
      %2972 = vmatmul.mubr.f32.gmra.mrb[0].mxu0 %v2780
      %v2973 = vpop.f32.mrb[0].mxu0
      %v2974 = vadd.f32 0.0, %v2973
      %v2975 = vpop.f32.mrb[0].mxu0
      %v2976 = vadd.f32 0.0, %v2975
      %2977 = vdwg.mxu0
      %v2978 = vadd.f32 %v2656, %v2932
      %v2979 = vadd.f32 %v2657, %v2934
      %v2980 = vadd.f32 %v2658, %v2938
      %v2981 = vadd.f32 %v2659, %v2940
      %v2982 = vadd.f32 %v2660, %v2944
      %v2983 = vadd.f32 %v2661, %v2946
      %v2984 = vadd.f32 %v2662, %v2950
      %v2985 = vadd.f32 %v2663, %v2952
      %v2986 = vadd.f32 %v2664, %v2956
      %v2987 = vadd.f32 %v2665, %v2958
      %v2988 = vadd.f32 %v2666, %v2962
      %v2989 = vadd.f32 %v2667, %v2964
      %v2990 = vadd.f32 %v2668, %v2968
      %v2991 = vadd.f32 %v2669, %v2970
      %v2992 = vadd.f32 %v2670, %v2974
      %v2993 = vadd.f32 %v2671, %v2976
      %v2994 = vld [vmem:[%s3] sm:$0x3]
      %v2996 = vlaneseq
      %v2997 = vshrl.u32 %v2996, 7
      %v2998 = vsub.s32 0, %v2997
      %v2999 = vrot.slane %v2994, %v2998
      %v3000 = vlaneseq
      %v3001 = vshrl.u32 %v3000, 7
      %v3002 = vsub.s32 1, %v3001
      %v3003 = vrot.slane %v2994, %v3002
      %v3006 = vadd.f32 %v2978, %v2999
      %v3007 = vadd.f32 %v2979, %v3003
      %v3008 = vadd.f32 %v2980, %v2999
      %v3009 = vadd.f32 %v2981, %v3003
      %v3010 = vadd.f32 %v2982, %v2999
      %v3011 = vadd.f32 %v2983, %v3003
      %v3012 = vadd.f32 %v2984, %v2999
      %v3013 = vadd.f32 %v2985, %v3003
      %v3014 = vadd.f32 %v2986, %v2999
      %v3015 = vadd.f32 %v2987, %v3003
      %v3016 = vadd.f32 %v2988, %v2999
      %v3017 = vadd.f32 %v2989, %v3003
      %v3018 = vadd.f32 %v2990, %v2999
      %v3019 = vadd.f32 %v2991, %v3003
      %v3020 = vadd.f32 %v2992, %v2999
      %v3021 = vadd.f32 %v2993, %v3003
      %v3022 = vmax.f32 %v3006, 0.0
      %v3023 = vmax.f32 %v3007, 0.0
      %v3024 = vmax.f32 %v3008, 0.0
      %v3025 = vmax.f32 %v3009, 0.0
      %v3026 = vmax.f32 %v3010, 0.0
      %v3027 = vmax.f32 %v3011, 0.0
      %v3028 = vmax.f32 %v3012, 0.0
      %v3029 = vmax.f32 %v3013, 0.0
      %v3030 = vmax.f32 %v3014, 0.0
      %v3031 = vmax.f32 %v3015, 0.0
      %v3032 = vmax.f32 %v3016, 0.0
      %v3033 = vmax.f32 %v3017, 0.0
      %v3034 = vmax.f32 %v3018, 0.0
      %v3035 = vmax.f32 %v3019, 0.0
      %v3036 = vmax.f32 %v3020, 0.0
      %v3037 = vmax.f32 %v3021, 0.0
      %v3054 = vrot.slane %v3022, 7
      %v3055 = vrot.slane %v3023, 7
      %v3056 = vrot.slane %v3024, 7
      %v3057 = vrot.slane %v3025, 7
      %v3058 = vrot.slane %v3026, 7
      %v3059 = vrot.slane %v3027, 7
      %v3060 = vrot.slane %v3028, 7
      %v3061 = vrot.slane %v3029, 7
      %v3062 = vrot.slane %v3030, 7
      %v3063 = vrot.slane %v3031, 7
      %v3064 = vrot.slane %v3032, 7
      %v3065 = vrot.slane %v3033, 7
      %v3066 = vrot.slane %v3034, 7
      %v3067 = vrot.slane %v3035, 7
      %v3068 = vrot.slane %v3036, 7
      %v3069 = vrot.slane %v3037, 7
      %s3086 = scalar_lea.vmem [#allocation3], 32
      %3087 = vst [vmem:[%s3086] sm:$0xfe] %v3054
      %3088 = vst [vmem:[%s3086 + $0x8] sm:$0xfe] %v3055
      %3089 = vst [vmem:[%s3086 + $0x10] sm:$0x1] %v3054
      %3090 = vst [vmem:[%s3086 + $0x18] sm:$0x1] %v3055
      %3091 = vst [vmem:[%s3086 + $0x20] sm:$0xfe] %v3056
      %3092 = vst [vmem:[%s3086 + $0x28] sm:$0xfe] %v3057
      %3093 = vst [vmem:[%s3086 + $0x30] sm:$0x1] %v3056
      %3094 = vst [vmem:[%s3086 + $0x38] sm:$0x1] %v3057
      %3095 = vst [vmem:[%s3086 + $0x40] sm:$0xfe] %v3058
      %3096 = vst [vmem:[%s3086 + $0x48] sm:$0xfe] %v3059
      %3097 = vst [vmem:[%s3086 + $0x50] sm:$0x1] %v3058
      %3098 = vst [vmem:[%s3086 + $0x58] sm:$0x1] %v3059
      %3099 = vst [vmem:[%s3086 + $0x60] sm:$0xfe] %v3060
      %3100 = vst [vmem:[%s3086 + $0x68] sm:$0xfe] %v3061
      %3101 = vst [vmem:[%s3086 + $0x70] sm:$0x1] %v3060
      %3102 = vst [vmem:[%s3086 + $0x78] sm:$0x1] %v3061
      %3103 = vst [vmem:[%s3086 + $0x80] sm:$0xfe] %v3062
      %3104 = vst [vmem:[%s3086 + $0x88] sm:$0xfe] %v3063
      %3105 = vst [vmem:[%s3086 + $0x90] sm:$0x1] %v3062
      %3106 = vst [vmem:[%s3086 + $0x98] sm:$0x1] %v3063
      %3107 = vst [vmem:[%s3086 + $0xa0] sm:$0xfe] %v3064
      %3108 = vst [vmem:[%s3086 + $0xa8] sm:$0xfe] %v3065
      %3109 = vst [vmem:[%s3086 + $0xb0] sm:$0x1] %v3064
      %3110 = vst [vmem:[%s3086 + $0xb8] sm:$0x1] %v3065
      %3111 = vst [vmem:[%s3086 + $0xc0] sm:$0xfe] %v3066
      %3112 = vst [vmem:[%s3086 + $0xc8] sm:$0xfe] %v3067
      %3113 = vst [vmem:[%s3086 + $0xd0] sm:$0x1] %v3066
      %3114 = vst [vmem:[%s3086 + $0xd8] sm:$0x1] %v3067
      %3115 = vst [vmem:[%s3086 + $0xe0] sm:$0xfe] %v3068
      %3116 = vst [vmem:[%s3086 + $0xe8] sm:$0xfe] %v3069
      %3117 = vst [vmem:[%s3086 + $0xf0] sm:$0x1] %v3068
      %3118 = vst [vmem:[%s3086 + $0xf8] sm:$0x1] %v3069
      %v3119 = vld [vmem:[#allocation3] sm:$0xff]
      %v3120 = vld [vmem:[#allocation3 + $0x8] sm:$0xff]
      %v3121 = vld [vmem:[#allocation3 + $0x20] sm:$0xff]
      %v3122 = vld [vmem:[#allocation3 + $0x28] sm:$0xff]
      %v3123 = vld [vmem:[#allocation3 + $0x40] sm:$0xff]
      %v3124 = vld [vmem:[#allocation3 + $0x48] sm:$0xff]
      %v3125 = vld [vmem:[#allocation3 + $0x60] sm:$0xff]
      %v3126 = vld [vmem:[#allocation3 + $0x68] sm:$0xff]
      %v3127 = vld [vmem:[#allocation3 + $0x80] sm:$0xff]
      %v3128 = vld [vmem:[#allocation3 + $0x88] sm:$0xff]
      %v3129 = vld [vmem:[#allocation3 + $0xa0] sm:$0xff]
      %v3130 = vld [vmem:[#allocation3 + $0xa8] sm:$0xff]
      %v3131 = vld [vmem:[#allocation3 + $0xc0] sm:$0xff]
      %v3132 = vld [vmem:[#allocation3 + $0xc8] sm:$0xff]
      %v3133 = vld [vmem:[#allocation3 + $0xe0] sm:$0xff]
      %v3134 = vld [vmem:[#allocation3 + $0xe8] sm:$0xff]
      %v3135 = vld [vmem:[%s2] sm:$0xff]
      %v3136 = vld [vmem:[%s2 + $0x8] sm:$0xff]
      %v3137 = vld [vmem:[%s2 + $0x10] sm:$0xff]
      %v3138 = vld [vmem:[%s2 + $0x18] sm:$0xff]
      %v3139 = vld [vmem:[%s2 + $0x20] sm:$0xff]
      %v3140 = vld [vmem:[%s2 + $0x28] sm:$0xff]
      %v3141 = vld [vmem:[%s2 + $0x30] sm:$0xff]
      %v3142 = vld [vmem:[%s2 + $0x38] sm:$0xff]
      %v3143 = vld [vmem:[%s2 + $0x40] sm:$0xff]
      %v3144 = vld [vmem:[%s2 + $0x48] sm:$0xff]
      %v3145 = vld [vmem:[%s2 + $0x50] sm:$0xff]
      %v3146 = vld [vmem:[%s2 + $0x58] sm:$0xff]
      %v3147 = vld [vmem:[%s2 + $0x60] sm:$0xff]
      %v3148 = vld [vmem:[%s2 + $0x68] sm:$0xff]
      %v3149 = vld [vmem:[%s2 + $0x70] sm:$0xff]
      %v3150 = vld [vmem:[%s2 + $0x78] sm:$0xff]
      %v3151 = vld [vmem:[%s2 + $0x80] sm:$0xff]
      %v3152 = vld [vmem:[%s2 + $0x88] sm:$0xff]
      %v3153 = vld [vmem:[%s2 + $0x90] sm:$0xff]
      %v3154 = vld [vmem:[%s2 + $0x98] sm:$0xff]
      %v3155 = vld [vmem:[%s2 + $0xa0] sm:$0xff]
      %v3156 = vld [vmem:[%s2 + $0xa8] sm:$0xff]
      %v3157 = vld [vmem:[%s2 + $0xb0] sm:$0xff]
      %v3158 = vld [vmem:[%s2 + $0xb8] sm:$0xff]
      %v3159 = vld [vmem:[%s2 + $0xc0] sm:$0xff]
      %v3160 = vld [vmem:[%s2 + $0xc8] sm:$0xff]
      %v3161 = vld [vmem:[%s2 + $0xd0] sm:$0xff]
      %v3162 = vld [vmem:[%s2 + $0xd8] sm:$0xff]
      %v3163 = vld [vmem:[%s2 + $0xe0] sm:$0xff]
      %v3164 = vld [vmem:[%s2 + $0xe8] sm:$0xff]
      %v3165 = vld [vmem:[%s2 + $0xf0] sm:$0xff]
      %v3166 = vld [vmem:[%s2 + $0xf8] sm:$0xff]
      %v3167 = vld [vmem:[%s2 + $0x100] sm:$0xff]
      %v3168 = vld [vmem:[%s2 + $0x108] sm:$0xff]
      %v3169 = vld [vmem:[%s2 + $0x110] sm:$0xff]
      %v3170 = vld [vmem:[%s2 + $0x118] sm:$0xff]
      %v3171 = vld [vmem:[%s2 + $0x120] sm:$0xff]
      %v3172 = vld [vmem:[%s2 + $0x128] sm:$0xff]
      %v3173 = vld [vmem:[%s2 + $0x130] sm:$0xff]
      %v3174 = vld [vmem:[%s2 + $0x138] sm:$0xff]
      %v3175 = vld [vmem:[%s2 + $0x140] sm:$0xff]
      %v3176 = vld [vmem:[%s2 + $0x148] sm:$0xff]
      %v3177 = vld [vmem:[%s2 + $0x150] sm:$0xff]
      %v3178 = vld [vmem:[%s2 + $0x158] sm:$0xff]
      %v3179 = vld [vmem:[%s2 + $0x160] sm:$0xff]
      %v3180 = vld [vmem:[%s2 + $0x168] sm:$0xff]
      %v3181 = vld [vmem:[%s2 + $0x170] sm:$0xff]
      %v3182 = vld [vmem:[%s2 + $0x178] sm:$0xff]
      %v3183 = vld [vmem:[%s2 + $0x180] sm:$0xff]
      %v3184 = vld [vmem:[%s2 + $0x188] sm:$0xff]
      %v3185 = vld [vmem:[%s2 + $0x190] sm:$0xff]
      %v3186 = vld [vmem:[%s2 + $0x198] sm:$0xff]
      %v3187 = vld [vmem:[%s2 + $0x1a0] sm:$0xff]
      %v3188 = vld [vmem:[%s2 + $0x1a8] sm:$0xff]
      %v3189 = vld [vmem:[%s2 + $0x1b0] sm:$0xff]
      %v3190 = vld [vmem:[%s2 + $0x1b8] sm:$0xff]
      %v3191 = vld [vmem:[%s2 + $0x1c0] sm:$0xff]
      %v3192 = vld [vmem:[%s2 + $0x1c8] sm:$0xff]
      %v3193 = vld [vmem:[%s2 + $0x1d0] sm:$0xff]
      %v3194 = vld [vmem:[%s2 + $0x1d8] sm:$0xff]
      %v3195 = vld [vmem:[%s2 + $0x1e0] sm:$0xff]
      %v3196 = vld [vmem:[%s2 + $0x1e8] sm:$0xff]
      %v3197 = vld [vmem:[%s2 + $0x1f0] sm:$0xff]
      %v3198 = vld [vmem:[%s2 + $0x1f8] sm:$0xff]
      %v3199 = vld [vmem:[#allocation3] sm:$0xfe]
      %v3200 = vld [vmem:[#allocation3 + $0x8] sm:$0xfe]
      %v3201 = vld [vmem:[#allocation3 + $0x10] sm:$0x1]
      %v3202 = vld [vmem:[#allocation3 + $0x18] sm:$0x1]
      %v3203 = vld [vmem:[#allocation3 + $0x20] sm:$0xfe]
      %v3204 = vld [vmem:[#allocation3 + $0x28] sm:$0xfe]
      %v3205 = vld [vmem:[#allocation3 + $0x30] sm:$0x1]
      %v3206 = vld [vmem:[#allocation3 + $0x38] sm:$0x1]
      %v3207 = vld [vmem:[#allocation3 + $0x40] sm:$0xfe]
      %v3208 = vld [vmem:[#allocation3 + $0x48] sm:$0xfe]
      %v3209 = vld [vmem:[#allocation3 + $0x50] sm:$0x1]
      %v3210 = vld [vmem:[#allocation3 + $0x58] sm:$0x1]
      %v3211 = vld [vmem:[#allocation3 + $0x60] sm:$0xfe]
      %v3212 = vld [vmem:[#allocation3 + $0x68] sm:$0xfe]
      %v3213 = vld [vmem:[#allocation3 + $0x70] sm:$0x1]
      %v3214 = vld [vmem:[#allocation3 + $0x78] sm:$0x1]
      %v3215 = vld [vmem:[#allocation3 + $0x80] sm:$0xfe]
      %v3216 = vld [vmem:[#allocation3 + $0x88] sm:$0xfe]
      %v3217 = vld [vmem:[#allocation3 + $0x90] sm:$0x1]
      %v3218 = vld [vmem:[#allocation3 + $0x98] sm:$0x1]
      %v3219 = vld [vmem:[#allocation3 + $0xa0] sm:$0xfe]
      %v3220 = vld [vmem:[#allocation3 + $0xa8] sm:$0xfe]
      %v3221 = vld [vmem:[#allocation3 + $0xb0] sm:$0x1]
      %v3222 = vld [vmem:[#allocation3 + $0xb8] sm:$0x1]
      %v3223 = vld [vmem:[#allocation3 + $0xc0] sm:$0xfe]
      %v3224 = vld [vmem:[#allocation3 + $0xc8] sm:$0xfe]
      %v3225 = vld [vmem:[#allocation3 + $0xd0] sm:$0x1]
      %v3226 = vld [vmem:[#allocation3 + $0xd8] sm:$0x1]
      %v3227 = vld [vmem:[#allocation3 + $0xe0] sm:$0xfe]
      %v3228 = vld [vmem:[#allocation3 + $0xe8] sm:$0xfe]
      %v3229 = vld [vmem:[#allocation3 + $0xf0] sm:$0x1]
      %v3230 = vld [vmem:[#allocation3 + $0xf8] sm:$0x1]
      %v3263 = vrot.slane %v3199, 1
      %v3264 = vrot.slane %v3201, 1
      %v3265 = vsel %vm606, %v3263, %v3264
      %v3266 = vrot.slane %v3200, 1
      %v3267 = vrot.slane %v3202, 1
      %v3268 = vsel %vm606, %v3266, %v3267
      %v3269 = vrot.slane %v3203, 1
      %v3270 = vrot.slane %v3205, 1
      %v3271 = vsel %vm606, %v3269, %v3270
      %v3272 = vrot.slane %v3204, 1
      %v3273 = vrot.slane %v3206, 1
      %v3274 = vsel %vm606, %v3272, %v3273
      %v3275 = vrot.slane %v3207, 1
      %v3276 = vrot.slane %v3209, 1
      %v3277 = vsel %vm606, %v3275, %v3276
      %v3278 = vrot.slane %v3208, 1
      %v3279 = vrot.slane %v3210, 1
      %v3280 = vsel %vm606, %v3278, %v3279
      %v3281 = vrot.slane %v3211, 1
      %v3282 = vrot.slane %v3213, 1
      %v3283 = vsel %vm606, %v3281, %v3282
      %v3284 = vrot.slane %v3212, 1
      %v3285 = vrot.slane %v3214, 1
      %v3286 = vsel %vm606, %v3284, %v3285
      %v3287 = vrot.slane %v3215, 1
      %v3288 = vrot.slane %v3217, 1
      %v3289 = vsel %vm606, %v3287, %v3288
      %v3290 = vrot.slane %v3216, 1
      %v3291 = vrot.slane %v3218, 1
      %v3292 = vsel %vm606, %v3290, %v3291
      %v3293 = vrot.slane %v3219, 1
      %v3294 = vrot.slane %v3221, 1
      %v3295 = vsel %vm606, %v3293, %v3294
      %v3296 = vrot.slane %v3220, 1
      %v3297 = vrot.slane %v3222, 1
      %v3298 = vsel %vm606, %v3296, %v3297
      %v3299 = vrot.slane %v3223, 1
      %v3300 = vrot.slane %v3225, 1
      %v3301 = vsel %vm606, %v3299, %v3300
      %v3302 = vrot.slane %v3224, 1
      %v3303 = vrot.slane %v3226, 1
      %v3304 = vsel %vm606, %v3302, %v3303
      %v3305 = vrot.slane %v3227, 1
      %v3306 = vrot.slane %v3229, 1
      %v3307 = vsel %vm606, %v3305, %v3306
      %v3308 = vrot.slane %v3228, 1
      %v3309 = vrot.slane %v3230, 1
      %v3310 = vsel %vm606, %v3308, %v3309
      %s3327 = scalar_lea.vmem %s2, 512
      %v3328 = vld [vmem:[%s3327] sm:$0xff]
      %v3329 = vld [vmem:[%s3327 + $0x8] sm:$0xff]
      %v3330 = vld [vmem:[%s3327 + $0x10] sm:$0xff]
      %v3331 = vld [vmem:[%s3327 + $0x18] sm:$0xff]
      %v3332 = vld [vmem:[%s3327 + $0x20] sm:$0xff]
      %v3333 = vld [vmem:[%s3327 + $0x28] sm:$0xff]
      %v3334 = vld [vmem:[%s3327 + $0x30] sm:$0xff]
      %v3335 = vld [vmem:[%s3327 + $0x38] sm:$0xff]
      %v3336 = vld [vmem:[%s3327 + $0x40] sm:$0xff]
      %v3337 = vld [vmem:[%s3327 + $0x48] sm:$0xff]
      %v3338 = vld [vmem:[%s3327 + $0x50] sm:$0xff]
      %v3339 = vld [vmem:[%s3327 + $0x58] sm:$0xff]
      %v3340 = vld [vmem:[%s3327 + $0x60] sm:$0xff]
      %v3341 = vld [vmem:[%s3327 + $0x68] sm:$0xff]
      %v3342 = vld [vmem:[%s3327 + $0x70] sm:$0xff]
      %v3343 = vld [vmem:[%s3327 + $0x78] sm:$0xff]
      %v3344 = vld [vmem:[%s3327 + $0x80] sm:$0xff]
      %v3345 = vld [vmem:[%s3327 + $0x88] sm:$0xff]
      %v3346 = vld [vmem:[%s3327 + $0x90] sm:$0xff]
      %v3347 = vld [vmem:[%s3327 + $0x98] sm:$0xff]
      %v3348 = vld [vmem:[%s3327 + $0xa0] sm:$0xff]
      %v3349 = vld [vmem:[%s3327 + $0xa8] sm:$0xff]
      %v3350 = vld [vmem:[%s3327 + $0xb0] sm:$0xff]
      %v3351 = vld [vmem:[%s3327 + $0xb8] sm:$0xff]
      %v3352 = vld [vmem:[%s3327 + $0xc0] sm:$0xff]
      %v3353 = vld [vmem:[%s3327 + $0xc8] sm:$0xff]
      %v3354 = vld [vmem:[%s3327 + $0xd0] sm:$0xff]
      %v3355 = vld [vmem:[%s3327 + $0xd8] sm:$0xff]
      %v3356 = vld [vmem:[%s3327 + $0xe0] sm:$0xff]
      %v3357 = vld [vmem:[%s3327 + $0xe8] sm:$0xff]
      %v3358 = vld [vmem:[%s3327 + $0xf0] sm:$0xff]
      %v3359 = vld [vmem:[%s3327 + $0xf8] sm:$0xff]
      %v3360 = vld [vmem:[%s3327 + $0x100] sm:$0xff]
      %v3361 = vld [vmem:[%s3327 + $0x108] sm:$0xff]
      %v3362 = vld [vmem:[%s3327 + $0x110] sm:$0xff]
      %v3363 = vld [vmem:[%s3327 + $0x118] sm:$0xff]
      %v3364 = vld [vmem:[%s3327 + $0x120] sm:$0xff]
      %v3365 = vld [vmem:[%s3327 + $0x128] sm:$0xff]
      %v3366 = vld [vmem:[%s3327 + $0x130] sm:$0xff]
      %v3367 = vld [vmem:[%s3327 + $0x138] sm:$0xff]
      %v3368 = vld [vmem:[%s3327 + $0x140] sm:$0xff]
      %v3369 = vld [vmem:[%s3327 + $0x148] sm:$0xff]
      %v3370 = vld [vmem:[%s3327 + $0x150] sm:$0xff]
      %v3371 = vld [vmem:[%s3327 + $0x158] sm:$0xff]
      %v3372 = vld [vmem:[%s3327 + $0x160] sm:$0xff]
      %v3373 = vld [vmem:[%s3327 + $0x168] sm:$0xff]
      %v3374 = vld [vmem:[%s3327 + $0x170] sm:$0xff]
      %v3375 = vld [vmem:[%s3327 + $0x178] sm:$0xff]
      %v3376 = vld [vmem:[%s3327 + $0x180] sm:$0xff]
      %v3377 = vld [vmem:[%s3327 + $0x188] sm:$0xff]
      %v3378 = vld [vmem:[%s3327 + $0x190] sm:$0xff]
      %v3379 = vld [vmem:[%s3327 + $0x198] sm:$0xff]
      %v3380 = vld [vmem:[%s3327 + $0x1a0] sm:$0xff]
      %v3381 = vld [vmem:[%s3327 + $0x1a8] sm:$0xff]
      %v3382 = vld [vmem:[%s3327 + $0x1b0] sm:$0xff]
      %v3383 = vld [vmem:[%s3327 + $0x1b8] sm:$0xff]
      %v3384 = vld [vmem:[%s3327 + $0x1c0] sm:$0xff]
      %v3385 = vld [vmem:[%s3327 + $0x1c8] sm:$0xff]
      %v3386 = vld [vmem:[%s3327 + $0x1d0] sm:$0xff]
      %v3387 = vld [vmem:[%s3327 + $0x1d8] sm:$0xff]
      %v3388 = vld [vmem:[%s3327 + $0x1e0] sm:$0xff]
      %v3389 = vld [vmem:[%s3327 + $0x1e8] sm:$0xff]
      %v3390 = vld [vmem:[%s3327 + $0x1f0] sm:$0xff]
      %v3391 = vld [vmem:[%s3327 + $0x1f8] sm:$0xff]
      %3392 = vmatprep.subr.mxu0 %v3329
      %3393 = vmatpush1.msra.mxu0 %v3328
      %3394 = vmatprep.subr.mxu0 %v3331
      %3395 = vmatpush1.msra.mxu0 %v3330
      %3396 = vmatprep.subr.mxu0 %v3333
      %3397 = vmatpush1.msra.mxu0 %v3332
      %3398 = vmatprep.subr.mxu0 %v3335
      %3399 = vmatpush1.msra.mxu0 %v3334
      %3400 = vmatprep.subr.mxu0 %v3337
      %3401 = vmatpush1.msra.mxu0 %v3336
      %3402 = vmatprep.subr.mxu0 %v3339
      %3403 = vmatpush1.msra.mxu0 %v3338
      %3404 = vmatprep.subr.mxu0 %v3341
      %3405 = vmatpush1.msra.mxu0 %v3340
      %3406 = vmatprep.subr.mxu0 %v3343
      %3407 = vmatpush1.msra.mxu0 %v3342
      %3408 = vmatprep.subr.mxu0 %v3345
      %3409 = vmatpush1.msra.mxu0 %v3344
      %3410 = vmatprep.subr.mxu0 %v3347
      %3411 = vmatpush1.msra.mxu0 %v3346
      %3412 = vmatprep.subr.mxu0 %v3349
      %3413 = vmatpush1.msra.mxu0 %v3348
      %3414 = vmatprep.subr.mxu0 %v3351
      %3415 = vmatpush1.msra.mxu0 %v3350
      %3416 = vmatprep.subr.mxu0 %v3353
      %3417 = vmatpush1.msra.mxu0 %v3352
      %3418 = vmatprep.subr.mxu0 %v3355
      %3419 = vmatpush1.msra.mxu0 %v3354
      %3420 = vmatprep.subr.mxu0 %v3357
      %3421 = vmatpush1.msra.mxu0 %v3356
      %3422 = vmatprep.subr.mxu0 %v3359
      %3423 = vmatpush1.msra.mxu0 %v3358
      %3424 = vmatprep.subr.mxu0 %v3361
      %3425 = vmatpush1.msra.mxu0 %v3360
      %3426 = vmatprep.subr.mxu0 %v3363
      %3427 = vmatpush1.msra.mxu0 %v3362
      %3428 = vmatprep.subr.mxu0 %v3365
      %3429 = vmatpush1.msra.mxu0 %v3364
      %3430 = vmatprep.subr.mxu0 %v3367
      %3431 = vmatpush1.msra.mxu0 %v3366
      %3432 = vmatprep.subr.mxu0 %v3369
      %3433 = vmatpush1.msra.mxu0 %v3368
      %3434 = vmatprep.subr.mxu0 %v3371
      %3435 = vmatpush1.msra.mxu0 %v3370
      %3436 = vmatprep.subr.mxu0 %v3373
      %3437 = vmatpush1.msra.mxu0 %v3372
      %3438 = vmatprep.subr.mxu0 %v3375
      %3439 = vmatpush1.msra.mxu0 %v3374
      %3440 = vmatprep.subr.mxu0 %v3377
      %3441 = vmatpush1.msra.mxu0 %v3376
      %3442 = vmatprep.subr.mxu0 %v3379
      %3443 = vmatpush1.msra.mxu0 %v3378
      %3444 = vmatprep.subr.mxu0 %v3381
      %3445 = vmatpush1.msra.mxu0 %v3380
      %3446 = vmatprep.subr.mxu0 %v3383
      %3447 = vmatpush1.msra.mxu0 %v3382
      %3448 = vmatprep.subr.mxu0 %v3385
      %3449 = vmatpush1.msra.mxu0 %v3384
      %3450 = vmatprep.subr.mxu0 %v3387
      %3451 = vmatpush1.msra.mxu0 %v3386
      %3452 = vmatprep.subr.mxu0 %v3389
      %3453 = vmatpush1.msra.mxu0 %v3388
      %3454 = vmatprep.subr.mxu0 %v3391
      %3455 = vmatpush1.msra.mxu0 %v3390
      %3456 = vmatprep.mubr.f32.mxu0 %v3268
      %3457 = vmatmul.mubr.f32.gmra.mrb[0].mxu0 %v3265
      %v3458 = vpop.f32.mrb[0].mxu0
      %v3459 = vadd.f32 0.0, %v3458
      %v3460 = vpop.f32.mrb[0].mxu0
      %v3461 = vadd.f32 0.0, %v3460
      %3462 = vmatprep.mubr.f32.mxu0 %v3274
      %3463 = vmatmul.mubr.f32.gmra.mrb[0].mxu0 %v3271
      %v3464 = vpop.f32.mrb[0].mxu0
      %v3465 = vadd.f32 0.0, %v3464
      %v3466 = vpop.f32.mrb[0].mxu0
      %v3467 = vadd.f32 0.0, %v3466
      %3468 = vmatprep.mubr.f32.mxu0 %v3280
      %3469 = vmatmul.mubr.f32.gmra.mrb[0].mxu0 %v3277
      %v3470 = vpop.f32.mrb[0].mxu0
      %v3471 = vadd.f32 0.0, %v3470
      %v3472 = vpop.f32.mrb[0].mxu0
      %v3473 = vadd.f32 0.0, %v3472
      %3474 = vmatprep.mubr.f32.mxu0 %v3286
      %3475 = vmatmul.mubr.f32.gmra.mrb[0].mxu0 %v3283
      %v3476 = vpop.f32.mrb[0].mxu0
      %v3477 = vadd.f32 0.0, %v3476
      %v3478 = vpop.f32.mrb[0].mxu0
      %v3479 = vadd.f32 0.0, %v3478
      %3480 = vmatprep.mubr.f32.mxu0 %v3292
      %3481 = vmatmul.mubr.f32.gmra.mrb[0].mxu0 %v3289
      %v3482 = vpop.f32.mrb[0].mxu0
      %v3483 = vadd.f32 0.0, %v3482
      %v3484 = vpop.f32.mrb[0].mxu0
      %v3485 = vadd.f32 0.0, %v3484
      %3486 = vmatprep.mubr.f32.mxu0 %v3298
      %3487 = vmatmul.mubr.f32.gmra.mrb[0].mxu0 %v3295
      %v3488 = vpop.f32.mrb[0].mxu0
      %v3489 = vadd.f32 0.0, %v3488
      %v3490 = vpop.f32.mrb[0].mxu0
      %v3491 = vadd.f32 0.0, %v3490
      %3492 = vmatprep.mubr.f32.mxu0 %v3304
      %3493 = vmatmul.mubr.f32.gmra.mrb[0].mxu0 %v3301
      %v3494 = vpop.f32.mrb[0].mxu0
      %v3495 = vadd.f32 0.0, %v3494
      %v3496 = vpop.f32.mrb[0].mxu0
      %v3497 = vadd.f32 0.0, %v3496
      %3498 = vmatprep.mubr.f32.mxu0 %v3310
      %3499 = vmatmul.mubr.f32.gmra.mrb[0].mxu0 %v3307
      %v3500 = vpop.f32.mrb[0].mxu0
      %v3501 = vadd.f32 0.0, %v3500
      %v3502 = vpop.f32.mrb[0].mxu0
      %v3503 = vadd.f32 0.0, %v3502
      %3504 = vdwg.mxu0
      %3505 = vmatprep.subr.mxu0 %v3136
      %3506 = vmatpush1.msra.mxu0 %v3135
      %3507 = vmatprep.subr.mxu0 %v3138
      %3508 = vmatpush1.msra.mxu0 %v3137
      %3509 = vmatprep.subr.mxu0 %v3140
      %3510 = vmatpush1.msra.mxu0 %v3139
      %3511 = vmatprep.subr.mxu0 %v3142
      %3512 = vmatpush1.msra.mxu0 %v3141
      %3513 = vmatprep.subr.mxu0 %v3144
      %3514 = vmatpush1.msra.mxu0 %v3143
      %3515 = vmatprep.subr.mxu0 %v3146
      %3516 = vmatpush1.msra.mxu0 %v3145
      %3517 = vmatprep.subr.mxu0 %v3148
      %3518 = vmatpush1.msra.mxu0 %v3147
      %3519 = vmatprep.subr.mxu0 %v3150
      %3520 = vmatpush1.msra.mxu0 %v3149
      %3521 = vmatprep.subr.mxu0 %v3152
      %3522 = vmatpush1.msra.mxu0 %v3151
      %3523 = vmatprep.subr.mxu0 %v3154
      %3524 = vmatpush1.msra.mxu0 %v3153
      %3525 = vmatprep.subr.mxu0 %v3156
      %3526 = vmatpush1.msra.mxu0 %v3155
      %3527 = vmatprep.subr.mxu0 %v3158
      %3528 = vmatpush1.msra.mxu0 %v3157
      %3529 = vmatprep.subr.mxu0 %v3160
      %3530 = vmatpush1.msra.mxu0 %v3159
      %3531 = vmatprep.subr.mxu0 %v3162
      %3532 = vmatpush1.msra.mxu0 %v3161
      %3533 = vmatprep.subr.mxu0 %v3164
      %3534 = vmatpush1.msra.mxu0 %v3163
      %3535 = vmatprep.subr.mxu0 %v3166
      %3536 = vmatpush1.msra.mxu0 %v3165
      %3537 = vmatprep.subr.mxu0 %v3168
      %3538 = vmatpush1.msra.mxu0 %v3167
      %3539 = vmatprep.subr.mxu0 %v3170
      %3540 = vmatpush1.msra.mxu0 %v3169
      %3541 = vmatprep.subr.mxu0 %v3172
      %3542 = vmatpush1.msra.mxu0 %v3171
      %3543 = vmatprep.subr.mxu0 %v3174
      %3544 = vmatpush1.msra.mxu0 %v3173
      %3545 = vmatprep.subr.mxu0 %v3176
      %3546 = vmatpush1.msra.mxu0 %v3175
      %3547 = vmatprep.subr.mxu0 %v3178
      %3548 = vmatpush1.msra.mxu0 %v3177
      %3549 = vmatprep.subr.mxu0 %v3180
      %3550 = vmatpush1.msra.mxu0 %v3179
      %3551 = vmatprep.subr.mxu0 %v3182
      %3552 = vmatpush1.msra.mxu0 %v3181
      %3553 = vmatprep.subr.mxu0 %v3184
      %3554 = vmatpush1.msra.mxu0 %v3183
      %3555 = vmatprep.subr.mxu0 %v3186
      %3556 = vmatpush1.msra.mxu0 %v3185
      %3557 = vmatprep.subr.mxu0 %v3188
      %3558 = vmatpush1.msra.mxu0 %v3187
      %3559 = vmatprep.subr.mxu0 %v3190
      %3560 = vmatpush1.msra.mxu0 %v3189
      %3561 = vmatprep.subr.mxu0 %v3192
      %3562 = vmatpush1.msra.mxu0 %v3191
      %3563 = vmatprep.subr.mxu0 %v3194
      %3564 = vmatpush1.msra.mxu0 %v3193
      %3565 = vmatprep.subr.mxu0 %v3196
      %3566 = vmatpush1.msra.mxu0 %v3195
      %3567 = vmatprep.subr.mxu0 %v3198
      %3568 = vmatpush1.msra.mxu0 %v3197
      %3569 = vmatprep.mubr.f32.mxu0 %v3120
      %3570 = vmatmul.mubr.f32.gmra.mrb[0].mxu0 %v3119
      %v3571 = vpop.f32.mrb[0].mxu0
      %v3572 = vadd.f32 %v3459, %v3571
      %v3573 = vpop.f32.mrb[0].mxu0
      %v3574 = vadd.f32 %v3461, %v3573
      %3575 = vmatprep.mubr.f32.mxu0 %v3122
      %3576 = vmatmul.mubr.f32.gmra.mrb[0].mxu0 %v3121
      %v3577 = vpop.f32.mrb[0].mxu0
      %v3578 = vadd.f32 %v3465, %v3577
      %v3579 = vpop.f32.mrb[0].mxu0
      %v3580 = vadd.f32 %v3467, %v3579
      %3581 = vmatprep.mubr.f32.mxu0 %v3124
      %3582 = vmatmul.mubr.f32.gmra.mrb[0].mxu0 %v3123
      %v3583 = vpop.f32.mrb[0].mxu0
      %v3584 = vadd.f32 %v3471, %v3583
      %v3585 = vpop.f32.mrb[0].mxu0
      %v3586 = vadd.f32 %v3473, %v3585
      %3587 = vmatprep.mubr.f32.mxu0 %v3126
      %3588 = vmatmul.mubr.f32.gmra.mrb[0].mxu0 %v3125
      %v3589 = vpop.f32.mrb[0].mxu0
      %v3590 = vadd.f32 %v3477, %v3589
      %v3591 = vpop.f32.mrb[0].mxu0
      %v3592 = vadd.f32 %v3479, %v3591
      %3593 = vmatprep.mubr.f32.mxu0 %v3128
      %3594 = vmatmul.mubr.f32.gmra.mrb[0].mxu0 %v3127
      %v3595 = vpop.f32.mrb[0].mxu0
      %v3596 = vadd.f32 %v3483, %v3595
      %v3597 = vpop.f32.mrb[0].mxu0
      %v3598 = vadd.f32 %v3485, %v3597
      %3599 = vmatprep.mubr.f32.mxu0 %v3130
      %3600 = vmatmul.mubr.f32.gmra.mrb[0].mxu0 %v3129
      %v3601 = vpop.f32.mrb[0].mxu0
      %v3602 = vadd.f32 %v3489, %v3601
      %v3603 = vpop.f32.mrb[0].mxu0
      %v3604 = vadd.f32 %v3491, %v3603
      %3605 = vmatprep.mubr.f32.mxu0 %v3132
      %3606 = vmatmul.mubr.f32.gmra.mrb[0].mxu0 %v3131
      %v3607 = vpop.f32.mrb[0].mxu0
      %v3608 = vadd.f32 %v3495, %v3607
      %v3609 = vpop.f32.mrb[0].mxu0
      %v3610 = vadd.f32 %v3497, %v3609
      %3611 = vmatprep.mubr.f32.mxu0 %v3134
      %3612 = vmatmul.mubr.f32.gmra.mrb[0].mxu0 %v3133
      %v3613 = vpop.f32.mrb[0].mxu0
      %v3614 = vadd.f32 %v3501, %v3613
      %v3615 = vpop.f32.mrb[0].mxu0
      %v3616 = vadd.f32 %v3503, %v3615
      %3617 = vdwg.mxu0
      %v3618 = vld [vmem:[#allocation3] sm:$0xfc]
      %v3619 = vld [vmem:[#allocation3 + $0x8] sm:$0xfc]
      %v3620 = vld [vmem:[#allocation3 + $0x10] sm:$0x3]
      %v3621 = vld [vmem:[#allocation3 + $0x18] sm:$0x3]
      %v3622 = vld [vmem:[#allocation3 + $0x20] sm:$0xfc]
      %v3623 = vld [vmem:[#allocation3 + $0x28] sm:$0xfc]
      %v3624 = vld [vmem:[#allocation3 + $0x30] sm:$0x3]
      %v3625 = vld [vmem:[#allocation3 + $0x38] sm:$0x3]
      %v3626 = vld [vmem:[#allocation3 + $0x40] sm:$0xfc]
      %v3627 = vld [vmem:[#allocation3 + $0x48] sm:$0xfc]
      %v3628 = vld [vmem:[#allocation3 + $0x50] sm:$0x3]
      %v3629 = vld [vmem:[#allocation3 + $0x58] sm:$0x3]
      %v3630 = vld [vmem:[#allocation3 + $0x60] sm:$0xfc]
      %v3631 = vld [vmem:[#allocation3 + $0x68] sm:$0xfc]
      %v3632 = vld [vmem:[#allocation3 + $0x70] sm:$0x3]
      %v3633 = vld [vmem:[#allocation3 + $0x78] sm:$0x3]
      %v3634 = vld [vmem:[#allocation3 + $0x80] sm:$0xfc]
      %v3635 = vld [vmem:[#allocation3 + $0x88] sm:$0xfc]
      %v3636 = vld [vmem:[#allocation3 + $0x90] sm:$0x3]
      %v3637 = vld [vmem:[#allocation3 + $0x98] sm:$0x3]
      %v3638 = vld [vmem:[#allocation3 + $0xa0] sm:$0xfc]
      %v3639 = vld [vmem:[#allocation3 + $0xa8] sm:$0xfc]
      %v3640 = vld [vmem:[#allocation3 + $0xb0] sm:$0x3]
      %v3641 = vld [vmem:[#allocation3 + $0xb8] sm:$0x3]
      %v3642 = vld [vmem:[#allocation3 + $0xc0] sm:$0xfc]
      %v3643 = vld [vmem:[#allocation3 + $0xc8] sm:$0xfc]
      %v3644 = vld [vmem:[#allocation3 + $0xd0] sm:$0x3]
      %v3645 = vld [vmem:[#allocation3 + $0xd8] sm:$0x3]
      %v3646 = vld [vmem:[#allocation3 + $0xe0] sm:$0xfc]
      %v3647 = vld [vmem:[#allocation3 + $0xe8] sm:$0xfc]
      %v3648 = vld [vmem:[#allocation3 + $0xf0] sm:$0x3]
      %v3649 = vld [vmem:[#allocation3 + $0xf8] sm:$0x3]
      %v3682 = vrot.slane %v3618, 2
      %v3683 = vrot.slane %v3620, 2
      %v3684 = vsel %vm1026, %v3682, %v3683
      %v3685 = vrot.slane %v3619, 2
      %v3686 = vrot.slane %v3621, 2
      %v3687 = vsel %vm1026, %v3685, %v3686
      %v3688 = vrot.slane %v3622, 2
      %v3689 = vrot.slane %v3624, 2
      %v3690 = vsel %vm1026, %v3688, %v3689
      %v3691 = vrot.slane %v3623, 2
      %v3692 = vrot.slane %v3625, 2
      %v3693 = vsel %vm1026, %v3691, %v3692
      %v3694 = vrot.slane %v3626, 2
      %v3695 = vrot.slane %v3628, 2
      %v3696 = vsel %vm1026, %v3694, %v3695
      %v3697 = vrot.slane %v3627, 2
      %v3698 = vrot.slane %v3629, 2
      %v3699 = vsel %vm1026, %v3697, %v3698
      %v3700 = vrot.slane %v3630, 2
      %v3701 = vrot.slane %v3632, 2
      %v3702 = vsel %vm1026, %v3700, %v3701
      %v3703 = vrot.slane %v3631, 2
      %v3704 = vrot.slane %v3633, 2
      %v3705 = vsel %vm1026, %v3703, %v3704
      %v3706 = vrot.slane %v3634, 2
      %v3707 = vrot.slane %v3636, 2
      %v3708 = vsel %vm1026, %v3706, %v3707
      %v3709 = vrot.slane %v3635, 2
      %v3710 = vrot.slane %v3637, 2
      %v3711 = vsel %vm1026, %v3709, %v3710
      %v3712 = vrot.slane %v3638, 2
      %v3713 = vrot.slane %v3640, 2
      %v3714 = vsel %vm1026, %v3712, %v3713
      %v3715 = vrot.slane %v3639, 2
      %v3716 = vrot.slane %v3641, 2
      %v3717 = vsel %vm1026, %v3715, %v3716
      %v3718 = vrot.slane %v3642, 2
      %v3719 = vrot.slane %v3644, 2
      %v3720 = vsel %vm1026, %v3718, %v3719
      %v3721 = vrot.slane %v3643, 2
      %v3722 = vrot.slane %v3645, 2
      %v3723 = vsel %vm1026, %v3721, %v3722
      %v3724 = vrot.slane %v3646, 2
      %v3725 = vrot.slane %v3648, 2
      %v3726 = vsel %vm1026, %v3724, %v3725
      %v3727 = vrot.slane %v3647, 2
      %v3728 = vrot.slane %v3649, 2
      %v3729 = vsel %vm1026, %v3727, %v3728
      %s3746 = scalar_lea.vmem %s2, 1024
      %v3747 = vld [vmem:[%s3746] sm:$0xff]
      %v3748 = vld [vmem:[%s3746 + $0x8] sm:$0xff]
      %v3749 = vld [vmem:[%s3746 + $0x10] sm:$0xff]
      %v3750 = vld [vmem:[%s3746 + $0x18] sm:$0xff]
      %v3751 = vld [vmem:[%s3746 + $0x20] sm:$0xff]
      %v3752 = vld [vmem:[%s3746 + $0x28] sm:$0xff]
      %v3753 = vld [vmem:[%s3746 + $0x30] sm:$0xff]
      %v3754 = vld [vmem:[%s3746 + $0x38] sm:$0xff]
      %v3755 = vld [vmem:[%s3746 + $0x40] sm:$0xff]
      %v3756 = vld [vmem:[%s3746 + $0x48] sm:$0xff]
      %v3757 = vld [vmem:[%s3746 + $0x50] sm:$0xff]
      %v3758 = vld [vmem:[%s3746 + $0x58] sm:$0xff]
      %v3759 = vld [vmem:[%s3746 + $0x60] sm:$0xff]
      %v3760 = vld [vmem:[%s3746 + $0x68] sm:$0xff]
      %v3761 = vld [vmem:[%s3746 + $0x70] sm:$0xff]
      %v3762 = vld [vmem:[%s3746 + $0x78] sm:$0xff]
      %v3763 = vld [vmem:[%s3746 + $0x80] sm:$0xff]
      %v3764 = vld [vmem:[%s3746 + $0x88] sm:$0xff]
      %v3765 = vld [vmem:[%s3746 + $0x90] sm:$0xff]
      %v3766 = vld [vmem:[%s3746 + $0x98] sm:$0xff]
      %v3767 = vld [vmem:[%s3746 + $0xa0] sm:$0xff]
      %v3768 = vld [vmem:[%s3746 + $0xa8] sm:$0xff]
      %v3769 = vld [vmem:[%s3746 + $0xb0] sm:$0xff]
      %v3770 = vld [vmem:[%s3746 + $0xb8] sm:$0xff]
      %v3771 = vld [vmem:[%s3746 + $0xc0] sm:$0xff]
      %v3772 = vld [vmem:[%s3746 + $0xc8] sm:$0xff]
      %v3773 = vld [vmem:[%s3746 + $0xd0] sm:$0xff]
      %v3774 = vld [vmem:[%s3746 + $0xd8] sm:$0xff]
      %v3775 = vld [vmem:[%s3746 + $0xe0] sm:$0xff]
      %v3776 = vld [vmem:[%s3746 + $0xe8] sm:$0xff]
      %v3777 = vld [vmem:[%s3746 + $0xf0] sm:$0xff]
      %v3778 = vld [vmem:[%s3746 + $0xf8] sm:$0xff]
      %v3779 = vld [vmem:[%s3746 + $0x100] sm:$0xff]
      %v3780 = vld [vmem:[%s3746 + $0x108] sm:$0xff]
      %v3781 = vld [vmem:[%s3746 + $0x110] sm:$0xff]
      %v3782 = vld [vmem:[%s3746 + $0x118] sm:$0xff]
      %v3783 = vld [vmem:[%s3746 + $0x120] sm:$0xff]
      %v3784 = vld [vmem:[%s3746 + $0x128] sm:$0xff]
      %v3785 = vld [vmem:[%s3746 + $0x130] sm:$0xff]
      %v3786 = vld [vmem:[%s3746 + $0x138] sm:$0xff]
      %v3787 = vld [vmem:[%s3746 + $0x140] sm:$0xff]
      %v3788 = vld [vmem:[%s3746 + $0x148] sm:$0xff]
      %v3789 = vld [vmem:[%s3746 + $0x150] sm:$0xff]
      %v3790 = vld [vmem:[%s3746 + $0x158] sm:$0xff]
      %v3791 = vld [vmem:[%s3746 + $0x160] sm:$0xff]
      %v3792 = vld [vmem:[%s3746 + $0x168] sm:$0xff]
      %v3793 = vld [vmem:[%s3746 + $0x170] sm:$0xff]
      %v3794 = vld [vmem:[%s3746 + $0x178] sm:$0xff]
      %v3795 = vld [vmem:[%s3746 + $0x180] sm:$0xff]
      %v3796 = vld [vmem:[%s3746 + $0x188] sm:$0xff]
      %v3797 = vld [vmem:[%s3746 + $0x190] sm:$0xff]
      %v3798 = vld [vmem:[%s3746 + $0x198] sm:$0xff]
      %v3799 = vld [vmem:[%s3746 + $0x1a0] sm:$0xff]
      %v3800 = vld [vmem:[%s3746 + $0x1a8] sm:$0xff]
      %v3801 = vld [vmem:[%s3746 + $0x1b0] sm:$0xff]
      %v3802 = vld [vmem:[%s3746 + $0x1b8] sm:$0xff]
      %v3803 = vld [vmem:[%s3746 + $0x1c0] sm:$0xff]
      %v3804 = vld [vmem:[%s3746 + $0x1c8] sm:$0xff]
      %v3805 = vld [vmem:[%s3746 + $0x1d0] sm:$0xff]
      %v3806 = vld [vmem:[%s3746 + $0x1d8] sm:$0xff]
      %v3807 = vld [vmem:[%s3746 + $0x1e0] sm:$0xff]
      %v3808 = vld [vmem:[%s3746 + $0x1e8] sm:$0xff]
      %v3809 = vld [vmem:[%s3746 + $0x1f0] sm:$0xff]
      %v3810 = vld [vmem:[%s3746 + $0x1f8] sm:$0xff]
      %3811 = vmatprep.subr.mxu0 %v3748
      %3812 = vmatpush1.msra.mxu0 %v3747
      %3813 = vmatprep.subr.mxu0 %v3750
      %3814 = vmatpush1.msra.mxu0 %v3749
      %3815 = vmatprep.subr.mxu0 %v3752
      %3816 = vmatpush1.msra.mxu0 %v3751
      %3817 = vmatprep.subr.mxu0 %v3754
      %3818 = vmatpush1.msra.mxu0 %v3753
      %3819 = vmatprep.subr.mxu0 %v3756
      %3820 = vmatpush1.msra.mxu0 %v3755
      %3821 = vmatprep.subr.mxu0 %v3758
      %3822 = vmatpush1.msra.mxu0 %v3757
      %3823 = vmatprep.subr.mxu0 %v3760
      %3824 = vmatpush1.msra.mxu0 %v3759
      %3825 = vmatprep.subr.mxu0 %v3762
      %3826 = vmatpush1.msra.mxu0 %v3761
      %3827 = vmatprep.subr.mxu0 %v3764
      %3828 = vmatpush1.msra.mxu0 %v3763
      %3829 = vmatprep.subr.mxu0 %v3766
      %3830 = vmatpush1.msra.mxu0 %v3765
      %3831 = vmatprep.subr.mxu0 %v3768
      %3832 = vmatpush1.msra.mxu0 %v3767
      %3833 = vmatprep.subr.mxu0 %v3770
      %3834 = vmatpush1.msra.mxu0 %v3769
      %3835 = vmatprep.subr.mxu0 %v3772
      %3836 = vmatpush1.msra.mxu0 %v3771
      %3837 = vmatprep.subr.mxu0 %v3774
      %3838 = vmatpush1.msra.mxu0 %v3773
      %3839 = vmatprep.subr.mxu0 %v3776
      %3840 = vmatpush1.msra.mxu0 %v3775
      %3841 = vmatprep.subr.mxu0 %v3778
      %3842 = vmatpush1.msra.mxu0 %v3777
      %3843 = vmatprep.subr.mxu0 %v3780
      %3844 = vmatpush1.msra.mxu0 %v3779
      %3845 = vmatprep.subr.mxu0 %v3782
      %3846 = vmatpush1.msra.mxu0 %v3781
      %3847 = vmatprep.subr.mxu0 %v3784
      %3848 = vmatpush1.msra.mxu0 %v3783
      %3849 = vmatprep.subr.mxu0 %v3786
      %3850 = vmatpush1.msra.mxu0 %v3785
      %3851 = vmatprep.subr.mxu0 %v3788
      %3852 = vmatpush1.msra.mxu0 %v3787
      %3853 = vmatprep.subr.mxu0 %v3790
      %3854 = vmatpush1.msra.mxu0 %v3789
      %3855 = vmatprep.subr.mxu0 %v3792
      %3856 = vmatpush1.msra.mxu0 %v3791
      %3857 = vmatprep.subr.mxu0 %v3794
      %3858 = vmatpush1.msra.mxu0 %v3793
      %3859 = vmatprep.subr.mxu0 %v3796
      %3860 = vmatpush1.msra.mxu0 %v3795
      %3861 = vmatprep.subr.mxu0 %v3798
      %3862 = vmatpush1.msra.mxu0 %v3797
      %3863 = vmatprep.subr.mxu0 %v3800
      %3864 = vmatpush1.msra.mxu0 %v3799
      %3865 = vmatprep.subr.mxu0 %v3802
      %3866 = vmatpush1.msra.mxu0 %v3801
      %3867 = vmatprep.subr.mxu0 %v3804
      %3868 = vmatpush1.msra.mxu0 %v3803
      %3869 = vmatprep.subr.mxu0 %v3806
      %3870 = vmatpush1.msra.mxu0 %v3805
      %3871 = vmatprep.subr.mxu0 %v3808
      %3872 = vmatpush1.msra.mxu0 %v3807
      %3873 = vmatprep.subr.mxu0 %v3810
      %3874 = vmatpush1.msra.mxu0 %v3809
      %3875 = vmatprep.mubr.f32.mxu0 %v3687
      %3876 = vmatmul.mubr.f32.gmra.mrb[0].mxu0 %v3684
      %v3877 = vpop.f32.mrb[0].mxu0
      %v3878 = vadd.f32 0.0, %v3877
      %v3879 = vpop.f32.mrb[0].mxu0
      %v3880 = vadd.f32 0.0, %v3879
      %3881 = vmatprep.mubr.f32.mxu0 %v3693
      %3882 = vmatmul.mubr.f32.gmra.mrb[0].mxu0 %v3690
      %v3883 = vpop.f32.mrb[0].mxu0
      %v3884 = vadd.f32 0.0, %v3883
      %v3885 = vpop.f32.mrb[0].mxu0
      %v3886 = vadd.f32 0.0, %v3885
      %3887 = vmatprep.mubr.f32.mxu0 %v3699
      %3888 = vmatmul.mubr.f32.gmra.mrb[0].mxu0 %v3696
      %v3889 = vpop.f32.mrb[0].mxu0
      %v3890 = vadd.f32 0.0, %v3889
      %v3891 = vpop.f32.mrb[0].mxu0
      %v3892 = vadd.f32 0.0, %v3891
      %3893 = vmatprep.mubr.f32.mxu0 %v3705
      %3894 = vmatmul.mubr.f32.gmra.mrb[0].mxu0 %v3702
      %v3895 = vpop.f32.mrb[0].mxu0
      %v3896 = vadd.f32 0.0, %v3895
      %v3897 = vpop.f32.mrb[0].mxu0
      %v3898 = vadd.f32 0.0, %v3897
      %3899 = vmatprep.mubr.f32.mxu0 %v3711
      %3900 = vmatmul.mubr.f32.gmra.mrb[0].mxu0 %v3708
      %v3901 = vpop.f32.mrb[0].mxu0
      %v3902 = vadd.f32 0.0, %v3901
      %v3903 = vpop.f32.mrb[0].mxu0
      %v3904 = vadd.f32 0.0, %v3903
      %3905 = vmatprep.mubr.f32.mxu0 %v3717
      %3906 = vmatmul.mubr.f32.gmra.mrb[0].mxu0 %v3714
      %v3907 = vpop.f32.mrb[0].mxu0
      %v3908 = vadd.f32 0.0, %v3907
      %v3909 = vpop.f32.mrb[0].mxu0
      %v3910 = vadd.f32 0.0, %v3909
      %3911 = vmatprep.mubr.f32.mxu0 %v3723
      %3912 = vmatmul.mubr.f32.gmra.mrb[0].mxu0 %v3720
      %v3913 = vpop.f32.mrb[0].mxu0
      %v3914 = vadd.f32 0.0, %v3913
      %v3915 = vpop.f32.mrb[0].mxu0
      %v3916 = vadd.f32 0.0, %v3915
      %3917 = vmatprep.mubr.f32.mxu0 %v3729
      %3918 = vmatmul.mubr.f32.gmra.mrb[0].mxu0 %v3726
      %v3919 = vpop.f32.mrb[0].mxu0
      %v3920 = vadd.f32 0.0, %v3919
      %v3921 = vpop.f32.mrb[0].mxu0
      %v3922 = vadd.f32 0.0, %v3921
      %3923 = vdwg.mxu0
      %v3924 = vadd.f32 %v3572, %v3878
      %v3925 = vadd.f32 %v3574, %v3880
      %v3926 = vadd.f32 %v3578, %v3884
      %v3927 = vadd.f32 %v3580, %v3886
      %v3928 = vadd.f32 %v3584, %v3890
      %v3929 = vadd.f32 %v3586, %v3892
      %v3930 = vadd.f32 %v3590, %v3896
      %v3931 = vadd.f32 %v3592, %v3898
      %v3932 = vadd.f32 %v3596, %v3902
      %v3933 = vadd.f32 %v3598, %v3904
      %v3934 = vadd.f32 %v3602, %v3908
      %v3935 = vadd.f32 %v3604, %v3910
      %v3936 = vadd.f32 %v3608, %v3914
      %v3937 = vadd.f32 %v3610, %v3916
      %v3938 = vadd.f32 %v3614, %v3920
      %v3939 = vadd.f32 %v3616, %v3922
      %v3940 = vld [vmem:[%s3086] sm:$0xff]
      %v3941 = vld [vmem:[%s3086 + $0x8] sm:$0xff]
      %v3942 = vld [vmem:[%s3086 + $0x20] sm:$0xff]
      %v3943 = vld [vmem:[%s3086 + $0x28] sm:$0xff]
      %v3944 = vld [vmem:[%s3086 + $0x40] sm:$0xff]
      %v3945 = vld [vmem:[%s3086 + $0x48] sm:$0xff]
      %v3946 = vld [vmem:[%s3086 + $0x60] sm:$0xff]
      %v3947 = vld [vmem:[%s3086 + $0x68] sm:$0xff]
      %v3948 = vld [vmem:[%s3086 + $0x80] sm:$0xff]
      %v3949 = vld [vmem:[%s3086 + $0x88] sm:$0xff]
      %v3950 = vld [vmem:[%s3086 + $0xa0] sm:$0xff]
      %v3951 = vld [vmem:[%s3086 + $0xa8] sm:$0xff]
      %v3952 = vld [vmem:[%s3086 + $0xc0] sm:$0xff]
      %v3953 = vld [vmem:[%s3086 + $0xc8] sm:$0xff]
      %v3954 = vld [vmem:[%s3086 + $0xe0] sm:$0xff]
      %v3955 = vld [vmem:[%s3086 + $0xe8] sm:$0xff]
      %s3956 = scalar_lea.vmem %s2, 1536
      %v3957 = vld [vmem:[%s3956] sm:$0xff]
      %v3958 = vld [vmem:[%s3956 + $0x8] sm:$0xff]
      %v3959 = vld [vmem:[%s3956 + $0x10] sm:$0xff]
      %v3960 = vld [vmem:[%s3956 + $0x18] sm:$0xff]
      %v3961 = vld [vmem:[%s3956 + $0x20] sm:$0xff]
      %v3962 = vld [vmem:[%s3956 + $0x28] sm:$0xff]
      %v3963 = vld [vmem:[%s3956 + $0x30] sm:$0xff]
      %v3964 = vld [vmem:[%s3956 + $0x38] sm:$0xff]
      %v3965 = vld [vmem:[%s3956 + $0x40] sm:$0xff]
      %v3966 = vld [vmem:[%s3956 + $0x48] sm:$0xff]
      %v3967 = vld [vmem:[%s3956 + $0x50] sm:$0xff]
      %v3968 = vld [vmem:[%s3956 + $0x58] sm:$0xff]
      %v3969 = vld [vmem:[%s3956 + $0x60] sm:$0xff]
      %v3970 = vld [vmem:[%s3956 + $0x68] sm:$0xff]
      %v3971 = vld [vmem:[%s3956 + $0x70] sm:$0xff]
      %v3972 = vld [vmem:[%s3956 + $0x78] sm:$0xff]
      %v3973 = vld [vmem:[%s3956 + $0x80] sm:$0xff]
      %v3974 = vld [vmem:[%s3956 + $0x88] sm:$0xff]
      %v3975 = vld [vmem:[%s3956 + $0x90] sm:$0xff]
      %v3976 = vld [vmem:[%s3956 + $0x98] sm:$0xff]
      %v3977 = vld [vmem:[%s3956 + $0xa0] sm:$0xff]
      %v3978 = vld [vmem:[%s3956 + $0xa8] sm:$0xff]
      %v3979 = vld [vmem:[%s3956 + $0xb0] sm:$0xff]
      %v3980 = vld [vmem:[%s3956 + $0xb8] sm:$0xff]
      %v3981 = vld [vmem:[%s3956 + $0xc0] sm:$0xff]
      %v3982 = vld [vmem:[%s3956 + $0xc8] sm:$0xff]
      %v3983 = vld [vmem:[%s3956 + $0xd0] sm:$0xff]
      %v3984 = vld [vmem:[%s3956 + $0xd8] sm:$0xff]
      %v3985 = vld [vmem:[%s3956 + $0xe0] sm:$0xff]
      %v3986 = vld [vmem:[%s3956 + $0xe8] sm:$0xff]
      %v3987 = vld [vmem:[%s3956 + $0xf0] sm:$0xff]
      %v3988 = vld [vmem:[%s3956 + $0xf8] sm:$0xff]
      %v3989 = vld [vmem:[%s3956 + $0x100] sm:$0xff]
      %v3990 = vld [vmem:[%s3956 + $0x108] sm:$0xff]
      %v3991 = vld [vmem:[%s3956 + $0x110] sm:$0xff]
      %v3992 = vld [vmem:[%s3956 + $0x118] sm:$0xff]
      %v3993 = vld [vmem:[%s3956 + $0x120] sm:$0xff]
      %v3994 = vld [vmem:[%s3956 + $0x128] sm:$0xff]
      %v3995 = vld [vmem:[%s3956 + $0x130] sm:$0xff]
      %v3996 = vld [vmem:[%s3956 + $0x138] sm:$0xff]
      %v3997 = vld [vmem:[%s3956 + $0x140] sm:$0xff]
      %v3998 = vld [vmem:[%s3956 + $0x148] sm:$0xff]
      %v3999 = vld [vmem:[%s3956 + $0x150] sm:$0xff]
      %v4000 = vld [vmem:[%s3956 + $0x158] sm:$0xff]
      %v4001 = vld [vmem:[%s3956 + $0x160] sm:$0xff]
      %v4002 = vld [vmem:[%s3956 + $0x168] sm:$0xff]
      %v4003 = vld [vmem:[%s3956 + $0x170] sm:$0xff]
      %v4004 = vld [vmem:[%s3956 + $0x178] sm:$0xff]
      %v4005 = vld [vmem:[%s3956 + $0x180] sm:$0xff]
      %v4006 = vld [vmem:[%s3956 + $0x188] sm:$0xff]
      %v4007 = vld [vmem:[%s3956 + $0x190] sm:$0xff]
      %v4008 = vld [vmem:[%s3956 + $0x198] sm:$0xff]
      %v4009 = vld [vmem:[%s3956 + $0x1a0] sm:$0xff]
      %v4010 = vld [vmem:[%s3956 + $0x1a8] sm:$0xff]
      %v4011 = vld [vmem:[%s3956 + $0x1b0] sm:$0xff]
      %v4012 = vld [vmem:[%s3956 + $0x1b8] sm:$0xff]
      %v4013 = vld [vmem:[%s3956 + $0x1c0] sm:$0xff]
      %v4014 = vld [vmem:[%s3956 + $0x1c8] sm:$0xff]
      %v4015 = vld [vmem:[%s3956 + $0x1d0] sm:$0xff]
      %v4016 = vld [vmem:[%s3956 + $0x1d8] sm:$0xff]
      %v4017 = vld [vmem:[%s3956 + $0x1e0] sm:$0xff]
      %v4018 = vld [vmem:[%s3956 + $0x1e8] sm:$0xff]
      %v4019 = vld [vmem:[%s3956 + $0x1f0] sm:$0xff]
      %v4020 = vld [vmem:[%s3956 + $0x1f8] sm:$0xff]
      %4021 = vmatprep.subr.mxu0 %v3958
      %4022 = vmatpush1.msra.mxu0 %v3957
      %4023 = vmatprep.subr.mxu0 %v3960
      %4024 = vmatpush1.msra.mxu0 %v3959
      %4025 = vmatprep.subr.mxu0 %v3962
      %4026 = vmatpush1.msra.mxu0 %v3961
      %4027 = vmatprep.subr.mxu0 %v3964
      %4028 = vmatpush1.msra.mxu0 %v3963
      %4029 = vmatprep.subr.mxu0 %v3966
      %4030 = vmatpush1.msra.mxu0 %v3965
      %4031 = vmatprep.subr.mxu0 %v3968
      %4032 = vmatpush1.msra.mxu0 %v3967
      %4033 = vmatprep.subr.mxu0 %v3970
      %4034 = vmatpush1.msra.mxu0 %v3969
      %4035 = vmatprep.subr.mxu0 %v3972
      %4036 = vmatpush1.msra.mxu0 %v3971
      %4037 = vmatprep.subr.mxu0 %v3974
      %4038 = vmatpush1.msra.mxu0 %v3973
      %4039 = vmatprep.subr.mxu0 %v3976
      %4040 = vmatpush1.msra.mxu0 %v3975
      %4041 = vmatprep.subr.mxu0 %v3978
      %4042 = vmatpush1.msra.mxu0 %v3977
      %4043 = vmatprep.subr.mxu0 %v3980
      %4044 = vmatpush1.msra.mxu0 %v3979
      %4045 = vmatprep.subr.mxu0 %v3982
      %4046 = vmatpush1.msra.mxu0 %v3981
      %4047 = vmatprep.subr.mxu0 %v3984
      %4048 = vmatpush1.msra.mxu0 %v3983
      %4049 = vmatprep.subr.mxu0 %v3986
      %4050 = vmatpush1.msra.mxu0 %v3985
      %4051 = vmatprep.subr.mxu0 %v3988
      %4052 = vmatpush1.msra.mxu0 %v3987
      %4053 = vmatprep.subr.mxu0 %v3990
      %4054 = vmatpush1.msra.mxu0 %v3989
      %4055 = vmatprep.subr.mxu0 %v3992
      %4056 = vmatpush1.msra.mxu0 %v3991
      %4057 = vmatprep.subr.mxu0 %v3994
      %4058 = vmatpush1.msra.mxu0 %v3993
      %4059 = vmatprep.subr.mxu0 %v3996
      %4060 = vmatpush1.msra.mxu0 %v3995
      %4061 = vmatprep.subr.mxu0 %v3998
      %4062 = vmatpush1.msra.mxu0 %v3997
      %4063 = vmatprep.subr.mxu0 %v4000
      %4064 = vmatpush1.msra.mxu0 %v3999
      %4065 = vmatprep.subr.mxu0 %v4002
      %4066 = vmatpush1.msra.mxu0 %v4001
      %4067 = vmatprep.subr.mxu0 %v4004
      %4068 = vmatpush1.msra.mxu0 %v4003
      %4069 = vmatprep.subr.mxu0 %v4006
      %4070 = vmatpush1.msra.mxu0 %v4005
      %4071 = vmatprep.subr.mxu0 %v4008
      %4072 = vmatpush1.msra.mxu0 %v4007
      %4073 = vmatprep.subr.mxu0 %v4010
      %4074 = vmatpush1.msra.mxu0 %v4009
      %4075 = vmatprep.subr.mxu0 %v4012
      %4076 = vmatpush1.msra.mxu0 %v4011
      %4077 = vmatprep.subr.mxu0 %v4014
      %4078 = vmatpush1.msra.mxu0 %v4013
      %4079 = vmatprep.subr.mxu0 %v4016
      %4080 = vmatpush1.msra.mxu0 %v4015
      %4081 = vmatprep.subr.mxu0 %v4018
      %4082 = vmatpush1.msra.mxu0 %v4017
      %4083 = vmatprep.subr.mxu0 %v4020
      %4084 = vmatpush1.msra.mxu0 %v4019
      %4085 = vmatprep.mubr.f32.mxu0 %v3941
      %4086 = vmatmul.mubr.f32.gmra.mrb[0].mxu0 %v3940
      %v4087 = vpop.f32.mrb[0].mxu0
      %v4088 = vadd.f32 0.0, %v4087
      %v4089 = vpop.f32.mrb[0].mxu0
      %v4090 = vadd.f32 0.0, %v4089
      %4091 = vmatprep.mubr.f32.mxu0 %v3943
      %4092 = vmatmul.mubr.f32.gmra.mrb[0].mxu0 %v3942
      %v4093 = vpop.f32.mrb[0].mxu0
      %v4094 = vadd.f32 0.0, %v4093
      %v4095 = vpop.f32.mrb[0].mxu0
      %v4096 = vadd.f32 0.0, %v4095
      %4097 = vmatprep.mubr.f32.mxu0 %v3945
      %4098 = vmatmul.mubr.f32.gmra.mrb[0].mxu0 %v3944
      %v4099 = vpop.f32.mrb[0].mxu0
      %v4100 = vadd.f32 0.0, %v4099
      %v4101 = vpop.f32.mrb[0].mxu0
      %v4102 = vadd.f32 0.0, %v4101
      %4103 = vmatprep.mubr.f32.mxu0 %v3947
      %4104 = vmatmul.mubr.f32.gmra.mrb[0].mxu0 %v3946
      %v4105 = vpop.f32.mrb[0].mxu0
      %v4106 = vadd.f32 0.0, %v4105
      %v4107 = vpop.f32.mrb[0].mxu0
      %v4108 = vadd.f32 0.0, %v4107
      %4109 = vmatprep.mubr.f32.mxu0 %v3949
      %4110 = vmatmul.mubr.f32.gmra.mrb[0].mxu0 %v3948
      %v4111 = vpop.f32.mrb[0].mxu0
      %v4112 = vadd.f32 0.0, %v4111
      %v4113 = vpop.f32.mrb[0].mxu0
      %v4114 = vadd.f32 0.0, %v4113
      %4115 = vmatprep.mubr.f32.mxu0 %v3951
      %4116 = vmatmul.mubr.f32.gmra.mrb[0].mxu0 %v3950
      %v4117 = vpop.f32.mrb[0].mxu0
      %v4118 = vadd.f32 0.0, %v4117
      %v4119 = vpop.f32.mrb[0].mxu0
      %v4120 = vadd.f32 0.0, %v4119
      %4121 = vmatprep.mubr.f32.mxu0 %v3953
      %4122 = vmatmul.mubr.f32.gmra.mrb[0].mxu0 %v3952
      %v4123 = vpop.f32.mrb[0].mxu0
      %v4124 = vadd.f32 0.0, %v4123
      %v4125 = vpop.f32.mrb[0].mxu0
      %v4126 = vadd.f32 0.0, %v4125
      %4127 = vmatprep.mubr.f32.mxu0 %v3955
      %4128 = vmatmul.mubr.f32.gmra.mrb[0].mxu0 %v3954
      %v4129 = vpop.f32.mrb[0].mxu0
      %v4130 = vadd.f32 0.0, %v4129
      %v4131 = vpop.f32.mrb[0].mxu0
      %v4132 = vadd.f32 0.0, %v4131
      %4133 = vdwg.mxu0
      %v4134 = vadd.f32 %v3924, %v4088
      %v4135 = vadd.f32 %v3925, %v4090
      %v4136 = vadd.f32 %v3926, %v4094
      %v4137 = vadd.f32 %v3927, %v4096
      %v4138 = vadd.f32 %v3928, %v4100
      %v4139 = vadd.f32 %v3929, %v4102
      %v4140 = vadd.f32 %v3930, %v4106
      %v4141 = vadd.f32 %v3931, %v4108
      %v4142 = vadd.f32 %v3932, %v4112
      %v4143 = vadd.f32 %v3933, %v4114
      %v4144 = vadd.f32 %v3934, %v4118
      %v4145 = vadd.f32 %v3935, %v4120
      %v4146 = vadd.f32 %v3936, %v4124
      %v4147 = vadd.f32 %v3937, %v4126
      %v4148 = vadd.f32 %v3938, %v4130
      %v4149 = vadd.f32 %v3939, %v4132
      %v4150 = vld [vmem:[%s3086] sm:$0xfe]
      %v4151 = vld [vmem:[%s3086 + $0x8] sm:$0xfe]
      %v4152 = vld [vmem:[%s3086 + $0x10] sm:$0x1]
      %v4153 = vld [vmem:[%s3086 + $0x18] sm:$0x1]
      %v4154 = vld [vmem:[%s3086 + $0x20] sm:$0xfe]
      %v4155 = vld [vmem:[%s3086 + $0x28] sm:$0xfe]
      %v4156 = vld [vmem:[%s3086 + $0x30] sm:$0x1]
      %v4157 = vld [vmem:[%s3086 + $0x38] sm:$0x1]
      %v4158 = vld [vmem:[%s3086 + $0x40] sm:$0xfe]
      %v4159 = vld [vmem:[%s3086 + $0x48] sm:$0xfe]
      %v4160 = vld [vmem:[%s3086 + $0x50] sm:$0x1]
      %v4161 = vld [vmem:[%s3086 + $0x58] sm:$0x1]
      %v4162 = vld [vmem:[%s3086 + $0x60] sm:$0xfe]
      %v4163 = vld [vmem:[%s3086 + $0x68] sm:$0xfe]
      %v4164 = vld [vmem:[%s3086 + $0x70] sm:$0x1]
      %v4165 = vld [vmem:[%s3086 + $0x78] sm:$0x1]
      %v4166 = vld [vmem:[%s3086 + $0x80] sm:$0xfe]
      %v4167 = vld [vmem:[%s3086 + $0x88] sm:$0xfe]
      %v4168 = vld [vmem:[%s3086 + $0x90] sm:$0x1]
      %v4169 = vld [vmem:[%s3086 + $0x98] sm:$0x1]
      %v4170 = vld [vmem:[%s3086 + $0xa0] sm:$0xfe]
      %v4171 = vld [vmem:[%s3086 + $0xa8] sm:$0xfe]
      %v4172 = vld [vmem:[%s3086 + $0xb0] sm:$0x1]
      %v4173 = vld [vmem:[%s3086 + $0xb8] sm:$0x1]
      %v4174 = vld [vmem:[%s3086 + $0xc0] sm:$0xfe]
      %v4175 = vld [vmem:[%s3086 + $0xc8] sm:$0xfe]
      %v4176 = vld [vmem:[%s3086 + $0xd0] sm:$0x1]
      %v4177 = vld [vmem:[%s3086 + $0xd8] sm:$0x1]
      %v4178 = vld [vmem:[%s3086 + $0xe0] sm:$0xfe]
      %v4179 = vld [vmem:[%s3086 + $0xe8] sm:$0xfe]
      %v4180 = vld [vmem:[%s3086 + $0xf0] sm:$0x1]
      %v4181 = vld [vmem:[%s3086 + $0xf8] sm:$0x1]
      %v4214 = vrot.slane %v4150, 1
      %v4215 = vrot.slane %v4152, 1
      %v4216 = vsel %vm606, %v4214, %v4215
      %v4217 = vrot.slane %v4151, 1
      %v4218 = vrot.slane %v4153, 1
      %v4219 = vsel %vm606, %v4217, %v4218
      %v4220 = vrot.slane %v4154, 1
      %v4221 = vrot.slane %v4156, 1
      %v4222 = vsel %vm606, %v4220, %v4221
      %v4223 = vrot.slane %v4155, 1
      %v4224 = vrot.slane %v4157, 1
      %v4225 = vsel %vm606, %v4223, %v4224
      %v4226 = vrot.slane %v4158, 1
      %v4227 = vrot.slane %v4160, 1
      %v4228 = vsel %vm606, %v4226, %v4227
      %v4229 = vrot.slane %v4159, 1
      %v4230 = vrot.slane %v4161, 1
      %v4231 = vsel %vm606, %v4229, %v4230
      %v4232 = vrot.slane %v4162, 1
      %v4233 = vrot.slane %v4164, 1
      %v4234 = vsel %vm606, %v4232, %v4233
      %v4235 = vrot.slane %v4163, 1
      %v4236 = vrot.slane %v4165, 1
      %v4237 = vsel %vm606, %v4235, %v4236
      %v4238 = vrot.slane %v4166, 1
      %v4239 = vrot.slane %v4168, 1
      %v4240 = vsel %vm606, %v4238, %v4239
      %v4241 = vrot.slane %v4167, 1
      %v4242 = vrot.slane %v4169, 1
      %v4243 = vsel %vm606, %v4241, %v4242
      %v4244 = vrot.slane %v4170, 1
      %v4245 = vrot.slane %v4172, 1
      %v4246 = vsel %vm606, %v4244, %v4245
      %v4247 = vrot.slane %v4171, 1
      %v4248 = vrot.slane %v4173, 1
      %v4249 = vsel %vm606, %v4247, %v4248
      %v4250 = vrot.slane %v4174, 1
      %v4251 = vrot.slane %v4176, 1
      %v4252 = vsel %vm606, %v4250, %v4251
      %v4253 = vrot.slane %v4175, 1
      %v4254 = vrot.slane %v4177, 1
      %v4255 = vsel %vm606, %v4253, %v4254
      %v4256 = vrot.slane %v4178, 1
      %v4257 = vrot.slane %v4180, 1
      %v4258 = vsel %vm606, %v4256, %v4257
      %v4259 = vrot.slane %v4179, 1
      %v4260 = vrot.slane %v4181, 1
      %v4261 = vsel %vm606, %v4259, %v4260
      %s4278 = scalar_lea.vmem %s2, 2048
      %v4279 = vld [vmem:[%s4278] sm:$0xff]
      %v4280 = vld [vmem:[%s4278 + $0x8] sm:$0xff]
      %v4281 = vld [vmem:[%s4278 + $0x10] sm:$0xff]
      %v4282 = vld [vmem:[%s4278 + $0x18] sm:$0xff]
      %v4283 = vld [vmem:[%s4278 + $0x20] sm:$0xff]
      %v4284 = vld [vmem:[%s4278 + $0x28] sm:$0xff]
      %v4285 = vld [vmem:[%s4278 + $0x30] sm:$0xff]
      %v4286 = vld [vmem:[%s4278 + $0x38] sm:$0xff]
      %v4287 = vld [vmem:[%s4278 + $0x40] sm:$0xff]
      %v4288 = vld [vmem:[%s4278 + $0x48] sm:$0xff]
      %v4289 = vld [vmem:[%s4278 + $0x50] sm:$0xff]
      %v4290 = vld [vmem:[%s4278 + $0x58] sm:$0xff]
      %v4291 = vld [vmem:[%s4278 + $0x60] sm:$0xff]
      %v4292 = vld [vmem:[%s4278 + $0x68] sm:$0xff]
      %v4293 = vld [vmem:[%s4278 + $0x70] sm:$0xff]
      %v4294 = vld [vmem:[%s4278 + $0x78] sm:$0xff]
      %v4295 = vld [vmem:[%s4278 + $0x80] sm:$0xff]
      %v4296 = vld [vmem:[%s4278 + $0x88] sm:$0xff]
      %v4297 = vld [vmem:[%s4278 + $0x90] sm:$0xff]
      %v4298 = vld [vmem:[%s4278 + $0x98] sm:$0xff]
      %v4299 = vld [vmem:[%s4278 + $0xa0] sm:$0xff]
      %v4300 = vld [vmem:[%s4278 + $0xa8] sm:$0xff]
      %v4301 = vld [vmem:[%s4278 + $0xb0] sm:$0xff]
      %v4302 = vld [vmem:[%s4278 + $0xb8] sm:$0xff]
      %v4303 = vld [vmem:[%s4278 + $0xc0] sm:$0xff]
      %v4304 = vld [vmem:[%s4278 + $0xc8] sm:$0xff]
      %v4305 = vld [vmem:[%s4278 + $0xd0] sm:$0xff]
      %v4306 = vld [vmem:[%s4278 + $0xd8] sm:$0xff]
      %v4307 = vld [vmem:[%s4278 + $0xe0] sm:$0xff]
      %v4308 = vld [vmem:[%s4278 + $0xe8] sm:$0xff]
      %v4309 = vld [vmem:[%s4278 + $0xf0] sm:$0xff]
      %v4310 = vld [vmem:[%s4278 + $0xf8] sm:$0xff]
      %v4311 = vld [vmem:[%s4278 + $0x100] sm:$0xff]
      %v4312 = vld [vmem:[%s4278 + $0x108] sm:$0xff]
      %v4313 = vld [vmem:[%s4278 + $0x110] sm:$0xff]
      %v4314 = vld [vmem:[%s4278 + $0x118] sm:$0xff]
      %v4315 = vld [vmem:[%s4278 + $0x120] sm:$0xff]
      %v4316 = vld [vmem:[%s4278 + $0x128] sm:$0xff]
      %v4317 = vld [vmem:[%s4278 + $0x130] sm:$0xff]
      %v4318 = vld [vmem:[%s4278 + $0x138] sm:$0xff]
      %v4319 = vld [vmem:[%s4278 + $0x140] sm:$0xff]
      %v4320 = vld [vmem:[%s4278 + $0x148] sm:$0xff]
      %v4321 = vld [vmem:[%s4278 + $0x150] sm:$0xff]
      %v4322 = vld [vmem:[%s4278 + $0x158] sm:$0xff]
      %v4323 = vld [vmem:[%s4278 + $0x160] sm:$0xff]
      %v4324 = vld [vmem:[%s4278 + $0x168] sm:$0xff]
      %v4325 = vld [vmem:[%s4278 + $0x170] sm:$0xff]
      %v4326 = vld [vmem:[%s4278 + $0x178] sm:$0xff]
      %v4327 = vld [vmem:[%s4278 + $0x180] sm:$0xff]
      %v4328 = vld [vmem:[%s4278 + $0x188] sm:$0xff]
      %v4329 = vld [vmem:[%s4278 + $0x190] sm:$0xff]
      %v4330 = vld [vmem:[%s4278 + $0x198] sm:$0xff]
      %v4331 = vld [vmem:[%s4278 + $0x1a0] sm:$0xff]
      %v4332 = vld [vmem:[%s4278 + $0x1a8] sm:$0xff]
      %v4333 = vld [vmem:[%s4278 + $0x1b0] sm:$0xff]
      %v4334 = vld [vmem:[%s4278 + $0x1b8] sm:$0xff]
      %v4335 = vld [vmem:[%s4278 + $0x1c0] sm:$0xff]
      %v4336 = vld [vmem:[%s4278 + $0x1c8] sm:$0xff]
      %v4337 = vld [vmem:[%s4278 + $0x1d0] sm:$0xff]
      %v4338 = vld [vmem:[%s4278 + $0x1d8] sm:$0xff]
      %v4339 = vld [vmem:[%s4278 + $0x1e0] sm:$0xff]
      %v4340 = vld [vmem:[%s4278 + $0x1e8] sm:$0xff]
      %v4341 = vld [vmem:[%s4278 + $0x1f0] sm:$0xff]
      %v4342 = vld [vmem:[%s4278 + $0x1f8] sm:$0xff]
      %4343 = vmatprep.subr.mxu0 %v4280
      %4344 = vmatpush1.msra.mxu0 %v4279
      %4345 = vmatprep.subr.mxu0 %v4282
      %4346 = vmatpush1.msra.mxu0 %v4281
      %4347 = vmatprep.subr.mxu0 %v4284
      %4348 = vmatpush1.msra.mxu0 %v4283
      %4349 = vmatprep.subr.mxu0 %v4286
      %4350 = vmatpush1.msra.mxu0 %v4285
      %4351 = vmatprep.subr.mxu0 %v4288
      %4352 = vmatpush1.msra.mxu0 %v4287
      %4353 = vmatprep.subr.mxu0 %v4290
      %4354 = vmatpush1.msra.mxu0 %v4289
      %4355 = vmatprep.subr.mxu0 %v4292
      %4356 = vmatpush1.msra.mxu0 %v4291
      %4357 = vmatprep.subr.mxu0 %v4294
      %4358 = vmatpush1.msra.mxu0 %v4293
      %4359 = vmatprep.subr.mxu0 %v4296
      %4360 = vmatpush1.msra.mxu0 %v4295
      %4361 = vmatprep.subr.mxu0 %v4298
      %4362 = vmatpush1.msra.mxu0 %v4297
      %4363 = vmatprep.subr.mxu0 %v4300
      %4364 = vmatpush1.msra.mxu0 %v4299
      %4365 = vmatprep.subr.mxu0 %v4302
      %4366 = vmatpush1.msra.mxu0 %v4301
      %4367 = vmatprep.subr.mxu0 %v4304
      %4368 = vmatpush1.msra.mxu0 %v4303
      %4369 = vmatprep.subr.mxu0 %v4306
      %4370 = vmatpush1.msra.mxu0 %v4305
      %4371 = vmatprep.subr.mxu0 %v4308
      %4372 = vmatpush1.msra.mxu0 %v4307
      %4373 = vmatprep.subr.mxu0 %v4310
      %4374 = vmatpush1.msra.mxu0 %v4309
      %4375 = vmatprep.subr.mxu0 %v4312
      %4376 = vmatpush1.msra.mxu0 %v4311
      %4377 = vmatprep.subr.mxu0 %v4314
      %4378 = vmatpush1.msra.mxu0 %v4313
      %4379 = vmatprep.subr.mxu0 %v4316
      %4380 = vmatpush1.msra.mxu0 %v4315
      %4381 = vmatprep.subr.mxu0 %v4318
      %4382 = vmatpush1.msra.mxu0 %v4317
      %4383 = vmatprep.subr.mxu0 %v4320
      %4384 = vmatpush1.msra.mxu0 %v4319
      %4385 = vmatprep.subr.mxu0 %v4322
      %4386 = vmatpush1.msra.mxu0 %v4321
      %4387 = vmatprep.subr.mxu0 %v4324
      %4388 = vmatpush1.msra.mxu0 %v4323
      %4389 = vmatprep.subr.mxu0 %v4326
      %4390 = vmatpush1.msra.mxu0 %v4325
      %4391 = vmatprep.subr.mxu0 %v4328
      %4392 = vmatpush1.msra.mxu0 %v4327
      %4393 = vmatprep.subr.mxu0 %v4330
      %4394 = vmatpush1.msra.mxu0 %v4329
      %4395 = vmatprep.subr.mxu0 %v4332
      %4396 = vmatpush1.msra.mxu0 %v4331
      %4397 = vmatprep.subr.mxu0 %v4334
      %4398 = vmatpush1.msra.mxu0 %v4333
      %4399 = vmatprep.subr.mxu0 %v4336
      %4400 = vmatpush1.msra.mxu0 %v4335
      %4401 = vmatprep.subr.mxu0 %v4338
      %4402 = vmatpush1.msra.mxu0 %v4337
      %4403 = vmatprep.subr.mxu0 %v4340
      %4404 = vmatpush1.msra.mxu0 %v4339
      %4405 = vmatprep.subr.mxu0 %v4342
      %4406 = vmatpush1.msra.mxu0 %v4341
      %4407 = vmatprep.mubr.f32.mxu0 %v4219
      %4408 = vmatmul.mubr.f32.gmra.mrb[0].mxu0 %v4216
      %v4409 = vpop.f32.mrb[0].mxu0
      %v4410 = vadd.f32 0.0, %v4409
      %v4411 = vpop.f32.mrb[0].mxu0
      %v4412 = vadd.f32 0.0, %v4411
      %4413 = vmatprep.mubr.f32.mxu0 %v4225
      %4414 = vmatmul.mubr.f32.gmra.mrb[0].mxu0 %v4222
      %v4415 = vpop.f32.mrb[0].mxu0
      %v4416 = vadd.f32 0.0, %v4415
      %v4417 = vpop.f32.mrb[0].mxu0
      %v4418 = vadd.f32 0.0, %v4417
      %4419 = vmatprep.mubr.f32.mxu0 %v4231
      %4420 = vmatmul.mubr.f32.gmra.mrb[0].mxu0 %v4228
      %v4421 = vpop.f32.mrb[0].mxu0
      %v4422 = vadd.f32 0.0, %v4421
      %v4423 = vpop.f32.mrb[0].mxu0
      %v4424 = vadd.f32 0.0, %v4423
      %4425 = vmatprep.mubr.f32.mxu0 %v4237
      %4426 = vmatmul.mubr.f32.gmra.mrb[0].mxu0 %v4234
      %v4427 = vpop.f32.mrb[0].mxu0
      %v4428 = vadd.f32 0.0, %v4427
      %v4429 = vpop.f32.mrb[0].mxu0
      %v4430 = vadd.f32 0.0, %v4429
      %4431 = vmatprep.mubr.f32.mxu0 %v4243
      %4432 = vmatmul.mubr.f32.gmra.mrb[0].mxu0 %v4240
      %v4433 = vpop.f32.mrb[0].mxu0
      %v4434 = vadd.f32 0.0, %v4433
      %v4435 = vpop.f32.mrb[0].mxu0
      %v4436 = vadd.f32 0.0, %v4435
      %4437 = vmatprep.mubr.f32.mxu0 %v4249
      %4438 = vmatmul.mubr.f32.gmra.mrb[0].mxu0 %v4246
      %v4439 = vpop.f32.mrb[0].mxu0
      %v4440 = vadd.f32 0.0, %v4439
      %v4441 = vpop.f32.mrb[0].mxu0
      %v4442 = vadd.f32 0.0, %v4441
      %4443 = vmatprep.mubr.f32.mxu0 %v4255
      %4444 = vmatmul.mubr.f32.gmra.mrb[0].mxu0 %v4252
      %v4445 = vpop.f32.mrb[0].mxu0
      %v4446 = vadd.f32 0.0, %v4445
      %v4447 = vpop.f32.mrb[0].mxu0
      %v4448 = vadd.f32 0.0, %v4447
      %4449 = vmatprep.mubr.f32.mxu0 %v4261
      %4450 = vmatmul.mubr.f32.gmra.mrb[0].mxu0 %v4258
      %v4451 = vpop.f32.mrb[0].mxu0
      %v4452 = vadd.f32 0.0, %v4451
      %v4453 = vpop.f32.mrb[0].mxu0
      %v4454 = vadd.f32 0.0, %v4453
      %4455 = vdwg.mxu0
      %v4456 = vadd.f32 %v4134, %v4410
      %v4457 = vadd.f32 %v4135, %v4412
      %v4458 = vadd.f32 %v4136, %v4416
      %v4459 = vadd.f32 %v4137, %v4418
      %v4460 = vadd.f32 %v4138, %v4422
      %v4461 = vadd.f32 %v4139, %v4424
      %v4462 = vadd.f32 %v4140, %v4428
      %v4463 = vadd.f32 %v4141, %v4430
      %v4464 = vadd.f32 %v4142, %v4434
      %v4465 = vadd.f32 %v4143, %v4436
      %v4466 = vadd.f32 %v4144, %v4440
      %v4467 = vadd.f32 %v4145, %v4442
      %v4468 = vadd.f32 %v4146, %v4446
      %v4469 = vadd.f32 %v4147, %v4448
      %v4470 = vadd.f32 %v4148, %v4452
      %v4471 = vadd.f32 %v4149, %v4454
      %v4472 = vld [vmem:[%s3086] sm:$0xfc]
      %v4473 = vld [vmem:[%s3086 + $0x8] sm:$0xfc]
      %v4474 = vld [vmem:[%s3086 + $0x10] sm:$0x3]
      %v4475 = vld [vmem:[%s3086 + $0x18] sm:$0x3]
      %v4476 = vld [vmem:[%s3086 + $0x20] sm:$0xfc]
      %v4477 = vld [vmem:[%s3086 + $0x28] sm:$0xfc]
      %v4478 = vld [vmem:[%s3086 + $0x30] sm:$0x3]
      %v4479 = vld [vmem:[%s3086 + $0x38] sm:$0x3]
      %v4480 = vld [vmem:[%s3086 + $0x40] sm:$0xfc]
      %v4481 = vld [vmem:[%s3086 + $0x48] sm:$0xfc]
      %v4482 = vld [vmem:[%s3086 + $0x50] sm:$0x3]
      %v4483 = vld [vmem:[%s3086 + $0x58] sm:$0x3]
      %v4484 = vld [vmem:[%s3086 + $0x60] sm:$0xfc]
      %v4485 = vld [vmem:[%s3086 + $0x68] sm:$0xfc]
      %v4486 = vld [vmem:[%s3086 + $0x70] sm:$0x3]
      %v4487 = vld [vmem:[%s3086 + $0x78] sm:$0x3]
      %v4488 = vld [vmem:[%s3086 + $0x80] sm:$0xfc]
      %v4489 = vld [vmem:[%s3086 + $0x88] sm:$0xfc]
      %v4490 = vld [vmem:[%s3086 + $0x90] sm:$0x3]
      %v4491 = vld [vmem:[%s3086 + $0x98] sm:$0x3]
      %v4492 = vld [vmem:[%s3086 + $0xa0] sm:$0xfc]
      %v4493 = vld [vmem:[%s3086 + $0xa8] sm:$0xfc]
      %v4494 = vld [vmem:[%s3086 + $0xb0] sm:$0x3]
      %v4495 = vld [vmem:[%s3086 + $0xb8] sm:$0x3]
      %v4496 = vld [vmem:[%s3086 + $0xc0] sm:$0xfc]
      %v4497 = vld [vmem:[%s3086 + $0xc8] sm:$0xfc]
      %v4498 = vld [vmem:[%s3086 + $0xd0] sm:$0x3]
      %v4499 = vld [vmem:[%s3086 + $0xd8] sm:$0x3]
      %v4500 = vld [vmem:[%s3086 + $0xe0] sm:$0xfc]
      %v4501 = vld [vmem:[%s3086 + $0xe8] sm:$0xfc]
      %v4502 = vld [vmem:[%s3086 + $0xf0] sm:$0x3]
      %v4503 = vld [vmem:[%s3086 + $0xf8] sm:$0x3]
      %v4536 = vrot.slane %v4472, 2
      %v4537 = vrot.slane %v4474, 2
      %v4538 = vsel %vm1026, %v4536, %v4537
      %v4539 = vrot.slane %v4473, 2
      %v4540 = vrot.slane %v4475, 2
      %v4541 = vsel %vm1026, %v4539, %v4540
      %v4542 = vrot.slane %v4476, 2
      %v4543 = vrot.slane %v4478, 2
      %v4544 = vsel %vm1026, %v4542, %v4543
      %v4545 = vrot.slane %v4477, 2
      %v4546 = vrot.slane %v4479, 2
      %v4547 = vsel %vm1026, %v4545, %v4546
      %v4548 = vrot.slane %v4480, 2
      %v4549 = vrot.slane %v4482, 2
      %v4550 = vsel %vm1026, %v4548, %v4549
      %v4551 = vrot.slane %v4481, 2
      %v4552 = vrot.slane %v4483, 2
      %v4553 = vsel %vm1026, %v4551, %v4552
      %v4554 = vrot.slane %v4484, 2
      %v4555 = vrot.slane %v4486, 2
      %v4556 = vsel %vm1026, %v4554, %v4555
      %v4557 = vrot.slane %v4485, 2
      %v4558 = vrot.slane %v4487, 2
      %v4559 = vsel %vm1026, %v4557, %v4558
      %v4560 = vrot.slane %v4488, 2
      %v4561 = vrot.slane %v4490, 2
      %v4562 = vsel %vm1026, %v4560, %v4561
      %v4563 = vrot.slane %v4489, 2
      %v4564 = vrot.slane %v4491, 2
      %v4565 = vsel %vm1026, %v4563, %v4564
      %v4566 = vrot.slane %v4492, 2
      %v4567 = vrot.slane %v4494, 2
      %v4568 = vsel %vm1026, %v4566, %v4567
      %v4569 = vrot.slane %v4493, 2
      %v4570 = vrot.slane %v4495, 2
      %v4571 = vsel %vm1026, %v4569, %v4570
      %v4572 = vrot.slane %v4496, 2
      %v4573 = vrot.slane %v4498, 2
      %v4574 = vsel %vm1026, %v4572, %v4573
      %v4575 = vrot.slane %v4497, 2
      %v4576 = vrot.slane %v4499, 2
      %v4577 = vsel %vm1026, %v4575, %v4576
      %v4578 = vrot.slane %v4500, 2
      %v4579 = vrot.slane %v4502, 2
      %v4580 = vsel %vm1026, %v4578, %v4579
      %v4581 = vrot.slane %v4501, 2
      %v4582 = vrot.slane %v4503, 2
      %v4583 = vsel %vm1026, %v4581, %v4582
      %s4600 = scalar_lea.vmem %s2, 2560
      %v4601 = vld [vmem:[%s4600] sm:$0xff]
      %v4602 = vld [vmem:[%s4600 + $0x8] sm:$0xff]
      %v4603 = vld [vmem:[%s4600 + $0x10] sm:$0xff]
      %v4604 = vld [vmem:[%s4600 + $0x18] sm:$0xff]
      %v4605 = vld [vmem:[%s4600 + $0x20] sm:$0xff]
      %v4606 = vld [vmem:[%s4600 + $0x28] sm:$0xff]
      %v4607 = vld [vmem:[%s4600 + $0x30] sm:$0xff]
      %v4608 = vld [vmem:[%s4600 + $0x38] sm:$0xff]
      %v4609 = vld [vmem:[%s4600 + $0x40] sm:$0xff]
      %v4610 = vld [vmem:[%s4600 + $0x48] sm:$0xff]
      %v4611 = vld [vmem:[%s4600 + $0x50] sm:$0xff]
      %v4612 = vld [vmem:[%s4600 + $0x58] sm:$0xff]
      %v4613 = vld [vmem:[%s4600 + $0x60] sm:$0xff]
      %v4614 = vld [vmem:[%s4600 + $0x68] sm:$0xff]
      %v4615 = vld [vmem:[%s4600 + $0x70] sm:$0xff]
      %v4616 = vld [vmem:[%s4600 + $0x78] sm:$0xff]
      %v4617 = vld [vmem:[%s4600 + $0x80] sm:$0xff]
      %v4618 = vld [vmem:[%s4600 + $0x88] sm:$0xff]
      %v4619 = vld [vmem:[%s4600 + $0x90] sm:$0xff]
      %v4620 = vld [vmem:[%s4600 + $0x98] sm:$0xff]
      %v4621 = vld [vmem:[%s4600 + $0xa0] sm:$0xff]
      %v4622 = vld [vmem:[%s4600 + $0xa8] sm:$0xff]
      %v4623 = vld [vmem:[%s4600 + $0xb0] sm:$0xff]
      %v4624 = vld [vmem:[%s4600 + $0xb8] sm:$0xff]
      %v4625 = vld [vmem:[%s4600 + $0xc0] sm:$0xff]
      %v4626 = vld [vmem:[%s4600 + $0xc8] sm:$0xff]
      %v4627 = vld [vmem:[%s4600 + $0xd0] sm:$0xff]
      %v4628 = vld [vmem:[%s4600 + $0xd8] sm:$0xff]
      %v4629 = vld [vmem:[%s4600 + $0xe0] sm:$0xff]
      %v4630 = vld [vmem:[%s4600 + $0xe8] sm:$0xff]
      %v4631 = vld [vmem:[%s4600 + $0xf0] sm:$0xff]
      %v4632 = vld [vmem:[%s4600 + $0xf8] sm:$0xff]
      %v4633 = vld [vmem:[%s4600 + $0x100] sm:$0xff]
      %v4634 = vld [vmem:[%s4600 + $0x108] sm:$0xff]
      %v4635 = vld [vmem:[%s4600 + $0x110] sm:$0xff]
      %v4636 = vld [vmem:[%s4600 + $0x118] sm:$0xff]
      %v4637 = vld [vmem:[%s4600 + $0x120] sm:$0xff]
      %v4638 = vld [vmem:[%s4600 + $0x128] sm:$0xff]
      %v4639 = vld [vmem:[%s4600 + $0x130] sm:$0xff]
      %v4640 = vld [vmem:[%s4600 + $0x138] sm:$0xff]
      %v4641 = vld [vmem:[%s4600 + $0x140] sm:$0xff]
      %v4642 = vld [vmem:[%s4600 + $0x148] sm:$0xff]
      %v4643 = vld [vmem:[%s4600 + $0x150] sm:$0xff]
      %v4644 = vld [vmem:[%s4600 + $0x158] sm:$0xff]
      %v4645 = vld [vmem:[%s4600 + $0x160] sm:$0xff]
      %v4646 = vld [vmem:[%s4600 + $0x168] sm:$0xff]
      %v4647 = vld [vmem:[%s4600 + $0x170] sm:$0xff]
      %v4648 = vld [vmem:[%s4600 + $0x178] sm:$0xff]
      %v4649 = vld [vmem:[%s4600 + $0x180] sm:$0xff]
      %v4650 = vld [vmem:[%s4600 + $0x188] sm:$0xff]
      %v4651 = vld [vmem:[%s4600 + $0x190] sm:$0xff]
      %v4652 = vld [vmem:[%s4600 + $0x198] sm:$0xff]
      %v4653 = vld [vmem:[%s4600 + $0x1a0] sm:$0xff]
      %v4654 = vld [vmem:[%s4600 + $0x1a8] sm:$0xff]
      %v4655 = vld [vmem:[%s4600 + $0x1b0] sm:$0xff]
      %v4656 = vld [vmem:[%s4600 + $0x1b8] sm:$0xff]
      %v4657 = vld [vmem:[%s4600 + $0x1c0] sm:$0xff]
      %v4658 = vld [vmem:[%s4600 + $0x1c8] sm:$0xff]
      %v4659 = vld [vmem:[%s4600 + $0x1d0] sm:$0xff]
      %v4660 = vld [vmem:[%s4600 + $0x1d8] sm:$0xff]
      %v4661 = vld [vmem:[%s4600 + $0x1e0] sm:$0xff]
      %v4662 = vld [vmem:[%s4600 + $0x1e8] sm:$0xff]
      %v4663 = vld [vmem:[%s4600 + $0x1f0] sm:$0xff]
      %v4664 = vld [vmem:[%s4600 + $0x1f8] sm:$0xff]
      %4665 = vmatprep.subr.mxu0 %v4602
      %4666 = vmatpush1.msra.mxu0 %v4601
      %4667 = vmatprep.subr.mxu0 %v4604
      %4668 = vmatpush1.msra.mxu0 %v4603
      %4669 = vmatprep.subr.mxu0 %v4606
      %4670 = vmatpush1.msra.mxu0 %v4605
      %4671 = vmatprep.subr.mxu0 %v4608
      %4672 = vmatpush1.msra.mxu0 %v4607
      %4673 = vmatprep.subr.mxu0 %v4610
      %4674 = vmatpush1.msra.mxu0 %v4609
      %4675 = vmatprep.subr.mxu0 %v4612
      %4676 = vmatpush1.msra.mxu0 %v4611
      %4677 = vmatprep.subr.mxu0 %v4614
      %4678 = vmatpush1.msra.mxu0 %v4613
      %4679 = vmatprep.subr.mxu0 %v4616
      %4680 = vmatpush1.msra.mxu0 %v4615
      %4681 = vmatprep.subr.mxu0 %v4618
      %4682 = vmatpush1.msra.mxu0 %v4617
      %4683 = vmatprep.subr.mxu0 %v4620
      %4684 = vmatpush1.msra.mxu0 %v4619
      %4685 = vmatprep.subr.mxu0 %v4622
      %4686 = vmatpush1.msra.mxu0 %v4621
      %4687 = vmatprep.subr.mxu0 %v4624
      %4688 = vmatpush1.msra.mxu0 %v4623
      %4689 = vmatprep.subr.mxu0 %v4626
      %4690 = vmatpush1.msra.mxu0 %v4625
      %4691 = vmatprep.subr.mxu0 %v4628
      %4692 = vmatpush1.msra.mxu0 %v4627
      %4693 = vmatprep.subr.mxu0 %v4630
      %4694 = vmatpush1.msra.mxu0 %v4629
      %4695 = vmatprep.subr.mxu0 %v4632
      %4696 = vmatpush1.msra.mxu0 %v4631
      %4697 = vmatprep.subr.mxu0 %v4634
      %4698 = vmatpush1.msra.mxu0 %v4633
      %4699 = vmatprep.subr.mxu0 %v4636
      %4700 = vmatpush1.msra.mxu0 %v4635
      %4701 = vmatprep.subr.mxu0 %v4638
      %4702 = vmatpush1.msra.mxu0 %v4637
      %4703 = vmatprep.subr.mxu0 %v4640
      %4704 = vmatpush1.msra.mxu0 %v4639
      %4705 = vmatprep.subr.mxu0 %v4642
      %4706 = vmatpush1.msra.mxu0 %v4641
      %4707 = vmatprep.subr.mxu0 %v4644
      %4708 = vmatpush1.msra.mxu0 %v4643
      %4709 = vmatprep.subr.mxu0 %v4646
      %4710 = vmatpush1.msra.mxu0 %v4645
      %4711 = vmatprep.subr.mxu0 %v4648
      %4712 = vmatpush1.msra.mxu0 %v4647
      %4713 = vmatprep.subr.mxu0 %v4650
      %4714 = vmatpush1.msra.mxu0 %v4649
      %4715 = vmatprep.subr.mxu0 %v4652
      %4716 = vmatpush1.msra.mxu0 %v4651
      %4717 = vmatprep.subr.mxu0 %v4654
      %4718 = vmatpush1.msra.mxu0 %v4653
      %4719 = vmatprep.subr.mxu0 %v4656
      %4720 = vmatpush1.msra.mxu0 %v4655
      %4721 = vmatprep.subr.mxu0 %v4658
      %4722 = vmatpush1.msra.mxu0 %v4657
      %4723 = vmatprep.subr.mxu0 %v4660
      %4724 = vmatpush1.msra.mxu0 %v4659
      %4725 = vmatprep.subr.mxu0 %v4662
      %4726 = vmatpush1.msra.mxu0 %v4661
      %4727 = vmatprep.subr.mxu0 %v4664
      %4728 = vmatpush1.msra.mxu0 %v4663
      %4729 = vmatprep.mubr.f32.mxu0 %v4541
      %4730 = vmatmul.mubr.f32.gmra.mrb[0].mxu0 %v4538
      %v4731 = vpop.f32.mrb[0].mxu0
      %v4732 = vadd.f32 0.0, %v4731
      %v4733 = vpop.f32.mrb[0].mxu0
      %v4734 = vadd.f32 0.0, %v4733
      %4735 = vmatprep.mubr.f32.mxu0 %v4547
      %4736 = vmatmul.mubr.f32.gmra.mrb[0].mxu0 %v4544
      %v4737 = vpop.f32.mrb[0].mxu0
      %v4738 = vadd.f32 0.0, %v4737
      %v4739 = vpop.f32.mrb[0].mxu0
      %v4740 = vadd.f32 0.0, %v4739
      %4741 = vmatprep.mubr.f32.mxu0 %v4553
      %4742 = vmatmul.mubr.f32.gmra.mrb[0].mxu0 %v4550
      %v4743 = vpop.f32.mrb[0].mxu0
      %v4744 = vadd.f32 0.0, %v4743
      %v4745 = vpop.f32.mrb[0].mxu0
      %v4746 = vadd.f32 0.0, %v4745
      %4747 = vmatprep.mubr.f32.mxu0 %v4559
      %4748 = vmatmul.mubr.f32.gmra.mrb[0].mxu0 %v4556
      %v4749 = vpop.f32.mrb[0].mxu0
      %v4750 = vadd.f32 0.0, %v4749
      %v4751 = vpop.f32.mrb[0].mxu0
      %v4752 = vadd.f32 0.0, %v4751
      %4753 = vmatprep.mubr.f32.mxu0 %v4565
      %4754 = vmatmul.mubr.f32.gmra.mrb[0].mxu0 %v4562
      %v4755 = vpop.f32.mrb[0].mxu0
      %v4756 = vadd.f32 0.0, %v4755
      %v4757 = vpop.f32.mrb[0].mxu0
      %v4758 = vadd.f32 0.0, %v4757
      %4759 = vmatprep.mubr.f32.mxu0 %v4571
      %4760 = vmatmul.mubr.f32.gmra.mrb[0].mxu0 %v4568
      %v4761 = vpop.f32.mrb[0].mxu0
      %v4762 = vadd.f32 0.0, %v4761
      %v4763 = vpop.f32.mrb[0].mxu0
      %v4764 = vadd.f32 0.0, %v4763
      %4765 = vmatprep.mubr.f32.mxu0 %v4577
      %4766 = vmatmul.mubr.f32.gmra.mrb[0].mxu0 %v4574
      %v4767 = vpop.f32.mrb[0].mxu0
      %v4768 = vadd.f32 0.0, %v4767
      %v4769 = vpop.f32.mrb[0].mxu0
      %v4770 = vadd.f32 0.0, %v4769
      %4771 = vmatprep.mubr.f32.mxu0 %v4583
      %4772 = vmatmul.mubr.f32.gmra.mrb[0].mxu0 %v4580
      %v4773 = vpop.f32.mrb[0].mxu0
      %v4774 = vadd.f32 0.0, %v4773
      %v4775 = vpop.f32.mrb[0].mxu0
      %v4776 = vadd.f32 0.0, %v4775
      %4777 = vdwg.mxu0
      %v4778 = vadd.f32 %v4456, %v4732
      %v4779 = vadd.f32 %v4457, %v4734
      %v4780 = vadd.f32 %v4458, %v4738
      %v4781 = vadd.f32 %v4459, %v4740
      %v4782 = vadd.f32 %v4460, %v4744
      %v4783 = vadd.f32 %v4461, %v4746
      %v4784 = vadd.f32 %v4462, %v4750
      %v4785 = vadd.f32 %v4463, %v4752
      %v4786 = vadd.f32 %v4464, %v4756
      %v4787 = vadd.f32 %v4465, %v4758
      %v4788 = vadd.f32 %v4466, %v4762
      %v4789 = vadd.f32 %v4467, %v4764
      %v4790 = vadd.f32 %v4468, %v4768
      %v4791 = vadd.f32 %v4469, %v4770
      %v4792 = vadd.f32 %v4470, %v4774
      %v4793 = vadd.f32 %v4471, %v4776
      %s4794 = scalar_lea.vmem [#allocation3], 64
      %v4795 = vld [vmem:[%s4794] sm:$0xff]
      %v4796 = vld [vmem:[%s4794 + $0x8] sm:$0xff]
      %v4797 = vld [vmem:[%s4794 + $0x20] sm:$0xff]
      %v4798 = vld [vmem:[%s4794 + $0x28] sm:$0xff]
      %v4799 = vld [vmem:[%s4794 + $0x40] sm:$0xff]
      %v4800 = vld [vmem:[%s4794 + $0x48] sm:$0xff]
      %v4801 = vld [vmem:[%s4794 + $0x60] sm:$0xff]
      %v4802 = vld [vmem:[%s4794 + $0x68] sm:$0xff]
      %v4803 = vld [vmem:[%s4794 + $0x80] sm:$0xff]
      %v4804 = vld [vmem:[%s4794 + $0x88] sm:$0xff]
      %v4805 = vld [vmem:[%s4794 + $0xa0] sm:$0xff]
      %v4806 = vld [vmem:[%s4794 + $0xa8] sm:$0xff]
      %v4807 = vld [vmem:[%s4794 + $0xc0] sm:$0xff]
      %v4808 = vld [vmem:[%s4794 + $0xc8] sm:$0xff]
      %v4809 = vld [vmem:[%s4794 + $0xe0] sm:$0xff]
      %v4810 = vld [vmem:[%s4794 + $0xe8] sm:$0xff]
      %s4811 = scalar_lea.vmem %s2, 3072
      %v4812 = vld [vmem:[%s4811] sm:$0xff]
      %v4813 = vld [vmem:[%s4811 + $0x8] sm:$0xff]
      %v4814 = vld [vmem:[%s4811 + $0x10] sm:$0xff]
      %v4815 = vld [vmem:[%s4811 + $0x18] sm:$0xff]
      %v4816 = vld [vmem:[%s4811 + $0x20] sm:$0xff]
      %v4817 = vld [vmem:[%s4811 + $0x28] sm:$0xff]
      %v4818 = vld [vmem:[%s4811 + $0x30] sm:$0xff]
      %v4819 = vld [vmem:[%s4811 + $0x38] sm:$0xff]
      %v4820 = vld [vmem:[%s4811 + $0x40] sm:$0xff]
      %v4821 = vld [vmem:[%s4811 + $0x48] sm:$0xff]
      %v4822 = vld [vmem:[%s4811 + $0x50] sm:$0xff]
      %v4823 = vld [vmem:[%s4811 + $0x58] sm:$0xff]
      %v4824 = vld [vmem:[%s4811 + $0x60] sm:$0xff]
      %v4825 = vld [vmem:[%s4811 + $0x68] sm:$0xff]
      %v4826 = vld [vmem:[%s4811 + $0x70] sm:$0xff]
      %v4827 = vld [vmem:[%s4811 + $0x78] sm:$0xff]
      %v4828 = vld [vmem:[%s4811 + $0x80] sm:$0xff]
      %v4829 = vld [vmem:[%s4811 + $0x88] sm:$0xff]
      %v4830 = vld [vmem:[%s4811 + $0x90] sm:$0xff]
      %v4831 = vld [vmem:[%s4811 + $0x98] sm:$0xff]
      %v4832 = vld [vmem:[%s4811 + $0xa0] sm:$0xff]
      %v4833 = vld [vmem:[%s4811 + $0xa8] sm:$0xff]
      %v4834 = vld [vmem:[%s4811 + $0xb0] sm:$0xff]
      %v4835 = vld [vmem:[%s4811 + $0xb8] sm:$0xff]
      %v4836 = vld [vmem:[%s4811 + $0xc0] sm:$0xff]
      %v4837 = vld [vmem:[%s4811 + $0xc8] sm:$0xff]
      %v4838 = vld [vmem:[%s4811 + $0xd0] sm:$0xff]
      %v4839 = vld [vmem:[%s4811 + $0xd8] sm:$0xff]
      %v4840 = vld [vmem:[%s4811 + $0xe0] sm:$0xff]
      %v4841 = vld [vmem:[%s4811 + $0xe8] sm:$0xff]
      %v4842 = vld [vmem:[%s4811 + $0xf0] sm:$0xff]
      %v4843 = vld [vmem:[%s4811 + $0xf8] sm:$0xff]
      %v4844 = vld [vmem:[%s4811 + $0x100] sm:$0xff]
      %v4845 = vld [vmem:[%s4811 + $0x108] sm:$0xff]
      %v4846 = vld [vmem:[%s4811 + $0x110] sm:$0xff]
      %v4847 = vld [vmem:[%s4811 + $0x118] sm:$0xff]
      %v4848 = vld [vmem:[%s4811 + $0x120] sm:$0xff]
      %v4849 = vld [vmem:[%s4811 + $0x128] sm:$0xff]
      %v4850 = vld [vmem:[%s4811 + $0x130] sm:$0xff]
      %v4851 = vld [vmem:[%s4811 + $0x138] sm:$0xff]
      %v4852 = vld [vmem:[%s4811 + $0x140] sm:$0xff]
      %v4853 = vld [vmem:[%s4811 + $0x148] sm:$0xff]
      %v4854 = vld [vmem:[%s4811 + $0x150] sm:$0xff]
      %v4855 = vld [vmem:[%s4811 + $0x158] sm:$0xff]
      %v4856 = vld [vmem:[%s4811 + $0x160] sm:$0xff]
      %v4857 = vld [vmem:[%s4811 + $0x168] sm:$0xff]
      %v4858 = vld [vmem:[%s4811 + $0x170] sm:$0xff]
      %v4859 = vld [vmem:[%s4811 + $0x178] sm:$0xff]
      %v4860 = vld [vmem:[%s4811 + $0x180] sm:$0xff]
      %v4861 = vld [vmem:[%s4811 + $0x188] sm:$0xff]
      %v4862 = vld [vmem:[%s4811 + $0x190] sm:$0xff]
      %v4863 = vld [vmem:[%s4811 + $0x198] sm:$0xff]
      %v4864 = vld [vmem:[%s4811 + $0x1a0] sm:$0xff]
      %v4865 = vld [vmem:[%s4811 + $0x1a8] sm:$0xff]
      %v4866 = vld [vmem:[%s4811 + $0x1b0] sm:$0xff]
      %v4867 = vld [vmem:[%s4811 + $0x1b8] sm:$0xff]
      %v4868 = vld [vmem:[%s4811 + $0x1c0] sm:$0xff]
      %v4869 = vld [vmem:[%s4811 + $0x1c8] sm:$0xff]
      %v4870 = vld [vmem:[%s4811 + $0x1d0] sm:$0xff]
      %v4871 = vld [vmem:[%s4811 + $0x1d8] sm:$0xff]
      %v4872 = vld [vmem:[%s4811 + $0x1e0] sm:$0xff]
      %v4873 = vld [vmem:[%s4811 + $0x1e8] sm:$0xff]
      %v4874 = vld [vmem:[%s4811 + $0x1f0] sm:$0xff]
      %v4875 = vld [vmem:[%s4811 + $0x1f8] sm:$0xff]
      %4876 = vmatprep.subr.mxu0 %v4813
      %4877 = vmatpush1.msra.mxu0 %v4812
      %4878 = vmatprep.subr.mxu0 %v4815
      %4879 = vmatpush1.msra.mxu0 %v4814
      %4880 = vmatprep.subr.mxu0 %v4817
      %4881 = vmatpush1.msra.mxu0 %v4816
      %4882 = vmatprep.subr.mxu0 %v4819
      %4883 = vmatpush1.msra.mxu0 %v4818
      %4884 = vmatprep.subr.mxu0 %v4821
      %4885 = vmatpush1.msra.mxu0 %v4820
      %4886 = vmatprep.subr.mxu0 %v4823
      %4887 = vmatpush1.msra.mxu0 %v4822
      %4888 = vmatprep.subr.mxu0 %v4825
      %4889 = vmatpush1.msra.mxu0 %v4824
      %4890 = vmatprep.subr.mxu0 %v4827
      %4891 = vmatpush1.msra.mxu0 %v4826
      %4892 = vmatprep.subr.mxu0 %v4829
      %4893 = vmatpush1.msra.mxu0 %v4828
      %4894 = vmatprep.subr.mxu0 %v4831
      %4895 = vmatpush1.msra.mxu0 %v4830
      %4896 = vmatprep.subr.mxu0 %v4833
      %4897 = vmatpush1.msra.mxu0 %v4832
      %4898 = vmatprep.subr.mxu0 %v4835
      %4899 = vmatpush1.msra.mxu0 %v4834
      %4900 = vmatprep.subr.mxu0 %v4837
      %4901 = vmatpush1.msra.mxu0 %v4836
      %4902 = vmatprep.subr.mxu0 %v4839
      %4903 = vmatpush1.msra.mxu0 %v4838
      %4904 = vmatprep.subr.mxu0 %v4841
      %4905 = vmatpush1.msra.mxu0 %v4840
      %4906 = vmatprep.subr.mxu0 %v4843
      %4907 = vmatpush1.msra.mxu0 %v4842
      %4908 = vmatprep.subr.mxu0 %v4845
      %4909 = vmatpush1.msra.mxu0 %v4844
      %4910 = vmatprep.subr.mxu0 %v4847
      %4911 = vmatpush1.msra.mxu0 %v4846
      %4912 = vmatprep.subr.mxu0 %v4849
      %4913 = vmatpush1.msra.mxu0 %v4848
      %4914 = vmatprep.subr.mxu0 %v4851
      %4915 = vmatpush1.msra.mxu0 %v4850
      %4916 = vmatprep.subr.mxu0 %v4853
      %4917 = vmatpush1.msra.mxu0 %v4852
      %4918 = vmatprep.subr.mxu0 %v4855
      %4919 = vmatpush1.msra.mxu0 %v4854
      %4920 = vmatprep.subr.mxu0 %v4857
      %4921 = vmatpush1.msra.mxu0 %v4856
      %4922 = vmatprep.subr.mxu0 %v4859
      %4923 = vmatpush1.msra.mxu0 %v4858
      %4924 = vmatprep.subr.mxu0 %v4861
      %4925 = vmatpush1.msra.mxu0 %v4860
      %4926 = vmatprep.subr.mxu0 %v4863
      %4927 = vmatpush1.msra.mxu0 %v4862
      %4928 = vmatprep.subr.mxu0 %v4865
      %4929 = vmatpush1.msra.mxu0 %v4864
      %4930 = vmatprep.subr.mxu0 %v4867
      %4931 = vmatpush1.msra.mxu0 %v4866
      %4932 = vmatprep.subr.mxu0 %v4869
      %4933 = vmatpush1.msra.mxu0 %v4868
      %4934 = vmatprep.subr.mxu0 %v4871
      %4935 = vmatpush1.msra.mxu0 %v4870
      %4936 = vmatprep.subr.mxu0 %v4873
      %4937 = vmatpush1.msra.mxu0 %v4872
      %4938 = vmatprep.subr.mxu0 %v4875
      %4939 = vmatpush1.msra.mxu0 %v4874
      %4940 = vmatprep.mubr.f32.mxu0 %v4796
      %4941 = vmatmul.mubr.f32.gmra.mrb[0].mxu0 %v4795
      %v4942 = vpop.f32.mrb[0].mxu0
      %v4943 = vadd.f32 0.0, %v4942
      %v4944 = vpop.f32.mrb[0].mxu0
      %v4945 = vadd.f32 0.0, %v4944
      %4946 = vmatprep.mubr.f32.mxu0 %v4798
      %4947 = vmatmul.mubr.f32.gmra.mrb[0].mxu0 %v4797
      %v4948 = vpop.f32.mrb[0].mxu0
      %v4949 = vadd.f32 0.0, %v4948
      %v4950 = vpop.f32.mrb[0].mxu0
      %v4951 = vadd.f32 0.0, %v4950
      %4952 = vmatprep.mubr.f32.mxu0 %v4800
      %4953 = vmatmul.mubr.f32.gmra.mrb[0].mxu0 %v4799
      %v4954 = vpop.f32.mrb[0].mxu0
      %v4955 = vadd.f32 0.0, %v4954
      %v4956 = vpop.f32.mrb[0].mxu0
      %v4957 = vadd.f32 0.0, %v4956
      %4958 = vmatprep.mubr.f32.mxu0 %v4802
      %4959 = vmatmul.mubr.f32.gmra.mrb[0].mxu0 %v4801
      %v4960 = vpop.f32.mrb[0].mxu0
      %v4961 = vadd.f32 0.0, %v4960
      %v4962 = vpop.f32.mrb[0].mxu0
      %v4963 = vadd.f32 0.0, %v4962
      %4964 = vmatprep.mubr.f32.mxu0 %v4804
      %4965 = vmatmul.mubr.f32.gmra.mrb[0].mxu0 %v4803
      %v4966 = vpop.f32.mrb[0].mxu0
      %v4967 = vadd.f32 0.0, %v4966
      %v4968 = vpop.f32.mrb[0].mxu0
      %v4969 = vadd.f32 0.0, %v4968
      %4970 = vmatprep.mubr.f32.mxu0 %v4806
      %4971 = vmatmul.mubr.f32.gmra.mrb[0].mxu0 %v4805
      %v4972 = vpop.f32.mrb[0].mxu0
      %v4973 = vadd.f32 0.0, %v4972
      %v4974 = vpop.f32.mrb[0].mxu0
      %v4975 = vadd.f32 0.0, %v4974
      %4976 = vmatprep.mubr.f32.mxu0 %v4808
      %4977 = vmatmul.mubr.f32.gmra.mrb[0].mxu0 %v4807
      %v4978 = vpop.f32.mrb[0].mxu0
      %v4979 = vadd.f32 0.0, %v4978
      %v4980 = vpop.f32.mrb[0].mxu0
      %v4981 = vadd.f32 0.0, %v4980
      %4982 = vmatprep.mubr.f32.mxu0 %v4810
      %4983 = vmatmul.mubr.f32.gmra.mrb[0].mxu0 %v4809
      %v4984 = vpop.f32.mrb[0].mxu0
      %v4985 = vadd.f32 0.0, %v4984
      %v4986 = vpop.f32.mrb[0].mxu0
      %v4987 = vadd.f32 0.0, %v4986
      %4988 = vdwg.mxu0
      %v4989 = vadd.f32 %v4778, %v4943
      %v4990 = vadd.f32 %v4779, %v4945
      %v4991 = vadd.f32 %v4780, %v4949
      %v4992 = vadd.f32 %v4781, %v4951
      %v4993 = vadd.f32 %v4782, %v4955
      %v4994 = vadd.f32 %v4783, %v4957
      %v4995 = vadd.f32 %v4784, %v4961
      %v4996 = vadd.f32 %v4785, %v4963
      %v4997 = vadd.f32 %v4786, %v4967
      %v4998 = vadd.f32 %v4787, %v4969
      %v4999 = vadd.f32 %v4788, %v4973
      %v5000 = vadd.f32 %v4789, %v4975
      %v5001 = vadd.f32 %v4790, %v4979
      %v5002 = vadd.f32 %v4791, %v4981
      %v5003 = vadd.f32 %v4792, %v4985
      %v5004 = vadd.f32 %v4793, %v4987
      %v5005 = vld [vmem:[%s4794] sm:$0xfe]
      %v5006 = vld [vmem:[%s4794 + $0x8] sm:$0xfe]
      %v5007 = vld [vmem:[%s4794 + $0x10] sm:$0x1]
      %v5008 = vld [vmem:[%s4794 + $0x18] sm:$0x1]
      %v5009 = vld [vmem:[%s4794 + $0x20] sm:$0xfe]
      %v5010 = vld [vmem:[%s4794 + $0x28] sm:$0xfe]
      %v5011 = vld [vmem:[%s4794 + $0x30] sm:$0x1]
      %v5012 = vld [vmem:[%s4794 + $0x38] sm:$0x1]
      %v5013 = vld [vmem:[%s4794 + $0x40] sm:$0xfe]
      %v5014 = vld [vmem:[%s4794 + $0x48] sm:$0xfe]
      %v5015 = vld [vmem:[%s4794 + $0x50] sm:$0x1]
      %v5016 = vld [vmem:[%s4794 + $0x58] sm:$0x1]
      %v5017 = vld [vmem:[%s4794 + $0x60] sm:$0xfe]
      %v5018 = vld [vmem:[%s4794 + $0x68] sm:$0xfe]
      %v5019 = vld [vmem:[%s4794 + $0x70] sm:$0x1]
      %v5020 = vld [vmem:[%s4794 + $0x78] sm:$0x1]
      %v5021 = vld [vmem:[%s4794 + $0x80] sm:$0xfe]
      %v5022 = vld [vmem:[%s4794 + $0x88] sm:$0xfe]
      %v5023 = vld [vmem:[%s4794 + $0x90] sm:$0x1]
      %v5024 = vld [vmem:[%s4794 + $0x98] sm:$0x1]
      %v5025 = vld [vmem:[%s4794 + $0xa0] sm:$0xfe]
      %v5026 = vld [vmem:[%s4794 + $0xa8] sm:$0xfe]
      %v5027 = vld [vmem:[%s4794 + $0xb0] sm:$0x1]
      %v5028 = vld [vmem:[%s4794 + $0xb8] sm:$0x1]
      %v5029 = vld [vmem:[%s4794 + $0xc0] sm:$0xfe]
      %v5030 = vld [vmem:[%s4794 + $0xc8] sm:$0xfe]
      %v5031 = vld [vmem:[%s4794 + $0xd0] sm:$0x1]
      %v5032 = vld [vmem:[%s4794 + $0xd8] sm:$0x1]
      %v5033 = vld [vmem:[%s4794 + $0xe0] sm:$0xfe]
      %v5034 = vld [vmem:[%s4794 + $0xe8] sm:$0xfe]
      %v5035 = vld [vmem:[%s4794 + $0xf0] sm:$0x1]
      %v5036 = vld [vmem:[%s4794 + $0xf8] sm:$0x1]
      %v5069 = vrot.slane %v5005, 1
      %v5070 = vrot.slane %v5007, 1
      %v5071 = vsel %vm606, %v5069, %v5070
      %v5072 = vrot.slane %v5006, 1
      %v5073 = vrot.slane %v5008, 1
      %v5074 = vsel %vm606, %v5072, %v5073
      %v5075 = vrot.slane %v5009, 1
      %v5076 = vrot.slane %v5011, 1
      %v5077 = vsel %vm606, %v5075, %v5076
      %v5078 = vrot.slane %v5010, 1
      %v5079 = vrot.slane %v5012, 1
      %v5080 = vsel %vm606, %v5078, %v5079
      %v5081 = vrot.slane %v5013, 1
      %v5082 = vrot.slane %v5015, 1
      %v5083 = vsel %vm606, %v5081, %v5082
      %v5084 = vrot.slane %v5014, 1
      %v5085 = vrot.slane %v5016, 1
      %v5086 = vsel %vm606, %v5084, %v5085
      %v5087 = vrot.slane %v5017, 1
      %v5088 = vrot.slane %v5019, 1
      %v5089 = vsel %vm606, %v5087, %v5088
      %v5090 = vrot.slane %v5018, 1
      %v5091 = vrot.slane %v5020, 1
      %v5092 = vsel %vm606, %v5090, %v5091
      %v5093 = vrot.slane %v5021, 1
      %v5094 = vrot.slane %v5023, 1
      %v5095 = vsel %vm606, %v5093, %v5094
      %v5096 = vrot.slane %v5022, 1
      %v5097 = vrot.slane %v5024, 1
      %v5098 = vsel %vm606, %v5096, %v5097
      %v5099 = vrot.slane %v5025, 1
      %v5100 = vrot.slane %v5027, 1
      %v5101 = vsel %vm606, %v5099, %v5100
      %v5102 = vrot.slane %v5026, 1
      %v5103 = vrot.slane %v5028, 1
      %v5104 = vsel %vm606, %v5102, %v5103
      %v5105 = vrot.slane %v5029, 1
      %v5106 = vrot.slane %v5031, 1
      %v5107 = vsel %vm606, %v5105, %v5106
      %v5108 = vrot.slane %v5030, 1
      %v5109 = vrot.slane %v5032, 1
      %v5110 = vsel %vm606, %v5108, %v5109
      %v5111 = vrot.slane %v5033, 1
      %v5112 = vrot.slane %v5035, 1
      %v5113 = vsel %vm606, %v5111, %v5112
      %v5114 = vrot.slane %v5034, 1
      %v5115 = vrot.slane %v5036, 1
      %v5116 = vsel %vm606, %v5114, %v5115
      %s5133 = scalar_lea.vmem %s2, 3584
      %v5134 = vld [vmem:[%s5133] sm:$0xff]
      %v5135 = vld [vmem:[%s5133 + $0x8] sm:$0xff]
      %v5136 = vld [vmem:[%s5133 + $0x10] sm:$0xff]
      %v5137 = vld [vmem:[%s5133 + $0x18] sm:$0xff]
      %v5138 = vld [vmem:[%s5133 + $0x20] sm:$0xff]
      %v5139 = vld [vmem:[%s5133 + $0x28] sm:$0xff]
      %v5140 = vld [vmem:[%s5133 + $0x30] sm:$0xff]
      %v5141 = vld [vmem:[%s5133 + $0x38] sm:$0xff]
      %v5142 = vld [vmem:[%s5133 + $0x40] sm:$0xff]
      %v5143 = vld [vmem:[%s5133 + $0x48] sm:$0xff]
      %v5144 = vld [vmem:[%s5133 + $0x50] sm:$0xff]
      %v5145 = vld [vmem:[%s5133 + $0x58] sm:$0xff]
      %v5146 = vld [vmem:[%s5133 + $0x60] sm:$0xff]
      %v5147 = vld [vmem:[%s5133 + $0x68] sm:$0xff]
      %v5148 = vld [vmem:[%s5133 + $0x70] sm:$0xff]
      %v5149 = vld [vmem:[%s5133 + $0x78] sm:$0xff]
      %v5150 = vld [vmem:[%s5133 + $0x80] sm:$0xff]
      %v5151 = vld [vmem:[%s5133 + $0x88] sm:$0xff]
      %v5152 = vld [vmem:[%s5133 + $0x90] sm:$0xff]
      %v5153 = vld [vmem:[%s5133 + $0x98] sm:$0xff]
      %v5154 = vld [vmem:[%s5133 + $0xa0] sm:$0xff]
      %v5155 = vld [vmem:[%s5133 + $0xa8] sm:$0xff]
      %v5156 = vld [vmem:[%s5133 + $0xb0] sm:$0xff]
      %v5157 = vld [vmem:[%s5133 + $0xb8] sm:$0xff]
      %v5158 = vld [vmem:[%s5133 + $0xc0] sm:$0xff]
      %v5159 = vld [vmem:[%s5133 + $0xc8] sm:$0xff]
      %v5160 = vld [vmem:[%s5133 + $0xd0] sm:$0xff]
      %v5161 = vld [vmem:[%s5133 + $0xd8] sm:$0xff]
      %v5162 = vld [vmem:[%s5133 + $0xe0] sm:$0xff]
      %v5163 = vld [vmem:[%s5133 + $0xe8] sm:$0xff]
      %v5164 = vld [vmem:[%s5133 + $0xf0] sm:$0xff]
      %v5165 = vld [vmem:[%s5133 + $0xf8] sm:$0xff]
      %v5166 = vld [vmem:[%s5133 + $0x100] sm:$0xff]
      %v5167 = vld [vmem:[%s5133 + $0x108] sm:$0xff]
      %v5168 = vld [vmem:[%s5133 + $0x110] sm:$0xff]
      %v5169 = vld [vmem:[%s5133 + $0x118] sm:$0xff]
      %v5170 = vld [vmem:[%s5133 + $0x120] sm:$0xff]
      %v5171 = vld [vmem:[%s5133 + $0x128] sm:$0xff]
      %v5172 = vld [vmem:[%s5133 + $0x130] sm:$0xff]
      %v5173 = vld [vmem:[%s5133 + $0x138] sm:$0xff]
      %v5174 = vld [vmem:[%s5133 + $0x140] sm:$0xff]
      %v5175 = vld [vmem:[%s5133 + $0x148] sm:$0xff]
      %v5176 = vld [vmem:[%s5133 + $0x150] sm:$0xff]
      %v5177 = vld [vmem:[%s5133 + $0x158] sm:$0xff]
      %v5178 = vld [vmem:[%s5133 + $0x160] sm:$0xff]
      %v5179 = vld [vmem:[%s5133 + $0x168] sm:$0xff]
      %v5180 = vld [vmem:[%s5133 + $0x170] sm:$0xff]
      %v5181 = vld [vmem:[%s5133 + $0x178] sm:$0xff]
      %v5182 = vld [vmem:[%s5133 + $0x180] sm:$0xff]
      %v5183 = vld [vmem:[%s5133 + $0x188] sm:$0xff]
      %v5184 = vld [vmem:[%s5133 + $0x190] sm:$0xff]
      %v5185 = vld [vmem:[%s5133 + $0x198] sm:$0xff]
      %v5186 = vld [vmem:[%s5133 + $0x1a0] sm:$0xff]
      %v5187 = vld [vmem:[%s5133 + $0x1a8] sm:$0xff]
      %v5188 = vld [vmem:[%s5133 + $0x1b0] sm:$0xff]
      %v5189 = vld [vmem:[%s5133 + $0x1b8] sm:$0xff]
      %v5190 = vld [vmem:[%s5133 + $0x1c0] sm:$0xff]
      %v5191 = vld [vmem:[%s5133 + $0x1c8] sm:$0xff]
      %v5192 = vld [vmem:[%s5133 + $0x1d0] sm:$0xff]
      %v5193 = vld [vmem:[%s5133 + $0x1d8] sm:$0xff]
      %v5194 = vld [vmem:[%s5133 + $0x1e0] sm:$0xff]
      %v5195 = vld [vmem:[%s5133 + $0x1e8] sm:$0xff]
      %v5196 = vld [vmem:[%s5133 + $0x1f0] sm:$0xff]
      %v5197 = vld [vmem:[%s5133 + $0x1f8] sm:$0xff]
      %5198 = vmatprep.subr.mxu0 %v5135
      %5199 = vmatpush1.msra.mxu0 %v5134
      %5200 = vmatprep.subr.mxu0 %v5137
      %5201 = vmatpush1.msra.mxu0 %v5136
      %5202 = vmatprep.subr.mxu0 %v5139
      %5203 = vmatpush1.msra.mxu0 %v5138
      %5204 = vmatprep.subr.mxu0 %v5141
      %5205 = vmatpush1.msra.mxu0 %v5140
      %5206 = vmatprep.subr.mxu0 %v5143
      %5207 = vmatpush1.msra.mxu0 %v5142
      %5208 = vmatprep.subr.mxu0 %v5145
      %5209 = vmatpush1.msra.mxu0 %v5144
      %5210 = vmatprep.subr.mxu0 %v5147
      %5211 = vmatpush1.msra.mxu0 %v5146
      %5212 = vmatprep.subr.mxu0 %v5149
      %5213 = vmatpush1.msra.mxu0 %v5148
      %5214 = vmatprep.subr.mxu0 %v5151
      %5215 = vmatpush1.msra.mxu0 %v5150
      %5216 = vmatprep.subr.mxu0 %v5153
      %5217 = vmatpush1.msra.mxu0 %v5152
      %5218 = vmatprep.subr.mxu0 %v5155
      %5219 = vmatpush1.msra.mxu0 %v5154
      %5220 = vmatprep.subr.mxu0 %v5157
      %5221 = vmatpush1.msra.mxu0 %v5156
      %5222 = vmatprep.subr.mxu0 %v5159
      %5223 = vmatpush1.msra.mxu0 %v5158
      %5224 = vmatprep.subr.mxu0 %v5161
      %5225 = vmatpush1.msra.mxu0 %v5160
      %5226 = vmatprep.subr.mxu0 %v5163
      %5227 = vmatpush1.msra.mxu0 %v5162
      %5228 = vmatprep.subr.mxu0 %v5165
      %5229 = vmatpush1.msra.mxu0 %v5164
      %5230 = vmatprep.subr.mxu0 %v5167
      %5231 = vmatpush1.msra.mxu0 %v5166
      %5232 = vmatprep.subr.mxu0 %v5169
      %5233 = vmatpush1.msra.mxu0 %v5168
      %5234 = vmatprep.subr.mxu0 %v5171
      %5235 = vmatpush1.msra.mxu0 %v5170
      %5236 = vmatprep.subr.mxu0 %v5173
      %5237 = vmatpush1.msra.mxu0 %v5172
      %5238 = vmatprep.subr.mxu0 %v5175
      %5239 = vmatpush1.msra.mxu0 %v5174
      %5240 = vmatprep.subr.mxu0 %v5177
      %5241 = vmatpush1.msra.mxu0 %v5176
      %5242 = vmatprep.subr.mxu0 %v5179
      %5243 = vmatpush1.msra.mxu0 %v5178
      %5244 = vmatprep.subr.mxu0 %v5181
      %5245 = vmatpush1.msra.mxu0 %v5180
      %5246 = vmatprep.subr.mxu0 %v5183
      %5247 = vmatpush1.msra.mxu0 %v5182
      %5248 = vmatprep.subr.mxu0 %v5185
      %5249 = vmatpush1.msra.mxu0 %v5184
      %5250 = vmatprep.subr.mxu0 %v5187
      %5251 = vmatpush1.msra.mxu0 %v5186
      %5252 = vmatprep.subr.mxu0 %v5189
      %5253 = vmatpush1.msra.mxu0 %v5188
      %5254 = vmatprep.subr.mxu0 %v5191
      %5255 = vmatpush1.msra.mxu0 %v5190
      %5256 = vmatprep.subr.mxu0 %v5193
      %5257 = vmatpush1.msra.mxu0 %v5192
      %5258 = vmatprep.subr.mxu0 %v5195
      %5259 = vmatpush1.msra.mxu0 %v5194
      %5260 = vmatprep.subr.mxu0 %v5197
      %5261 = vmatpush1.msra.mxu0 %v5196
      %5262 = vmatprep.mubr.f32.mxu0 %v5074
      %5263 = vmatmul.mubr.f32.gmra.mrb[0].mxu0 %v5071
      %v5264 = vpop.f32.mrb[0].mxu0
      %v5265 = vadd.f32 0.0, %v5264
      %v5266 = vpop.f32.mrb[0].mxu0
      %v5267 = vadd.f32 0.0, %v5266
      %5268 = vmatprep.mubr.f32.mxu0 %v5080
      %5269 = vmatmul.mubr.f32.gmra.mrb[0].mxu0 %v5077
      %v5270 = vpop.f32.mrb[0].mxu0
      %v5271 = vadd.f32 0.0, %v5270
      %v5272 = vpop.f32.mrb[0].mxu0
      %v5273 = vadd.f32 0.0, %v5272
      %5274 = vmatprep.mubr.f32.mxu0 %v5086
      %5275 = vmatmul.mubr.f32.gmra.mrb[0].mxu0 %v5083
      %v5276 = vpop.f32.mrb[0].mxu0
      %v5277 = vadd.f32 0.0, %v5276
      %v5278 = vpop.f32.mrb[0].mxu0
      %v5279 = vadd.f32 0.0, %v5278
      %5280 = vmatprep.mubr.f32.mxu0 %v5092
      %5281 = vmatmul.mubr.f32.gmra.mrb[0].mxu0 %v5089
      %v5282 = vpop.f32.mrb[0].mxu0
      %v5283 = vadd.f32 0.0, %v5282
      %v5284 = vpop.f32.mrb[0].mxu0
      %v5285 = vadd.f32 0.0, %v5284
      %5286 = vmatprep.mubr.f32.mxu0 %v5098
      %5287 = vmatmul.mubr.f32.gmra.mrb[0].mxu0 %v5095
      %v5288 = vpop.f32.mrb[0].mxu0
      %v5289 = vadd.f32 0.0, %v5288
      %v5290 = vpop.f32.mrb[0].mxu0
      %v5291 = vadd.f32 0.0, %v5290
      %5292 = vmatprep.mubr.f32.mxu0 %v5104
      %5293 = vmatmul.mubr.f32.gmra.mrb[0].mxu0 %v5101
      %v5294 = vpop.f32.mrb[0].mxu0
      %v5295 = vadd.f32 0.0, %v5294
      %v5296 = vpop.f32.mrb[0].mxu0
      %v5297 = vadd.f32 0.0, %v5296
      %5298 = vmatprep.mubr.f32.mxu0 %v5110
      %5299 = vmatmul.mubr.f32.gmra.mrb[0].mxu0 %v5107
      %v5300 = vpop.f32.mrb[0].mxu0
      %v5301 = vadd.f32 0.0, %v5300
      %v5302 = vpop.f32.mrb[0].mxu0
      %v5303 = vadd.f32 0.0, %v5302
      %5304 = vmatprep.mubr.f32.mxu0 %v5116
      %5305 = vmatmul.mubr.f32.gmra.mrb[0].mxu0 %v5113
      %v5306 = vpop.f32.mrb[0].mxu0
      %v5307 = vadd.f32 0.0, %v5306
      %v5308 = vpop.f32.mrb[0].mxu0
      %v5309 = vadd.f32 0.0, %v5308
      %5310 = vdwg.mxu0
      %v5311 = vadd.f32 %v4989, %v5265
      %v5312 = vadd.f32 %v4990, %v5267
      %v5313 = vadd.f32 %v4991, %v5271
      %v5314 = vadd.f32 %v4992, %v5273
      %v5315 = vadd.f32 %v4993, %v5277
      %v5316 = vadd.f32 %v4994, %v5279
      %v5317 = vadd.f32 %v4995, %v5283
      %v5318 = vadd.f32 %v4996, %v5285
      %v5319 = vadd.f32 %v4997, %v5289
      %v5320 = vadd.f32 %v4998, %v5291
      %v5321 = vadd.f32 %v4999, %v5295
      %v5322 = vadd.f32 %v5000, %v5297
      %v5323 = vadd.f32 %v5001, %v5301
      %v5324 = vadd.f32 %v5002, %v5303
      %v5325 = vadd.f32 %v5003, %v5307
      %v5326 = vadd.f32 %v5004, %v5309
      %v5327 = vld [vmem:[%s4794] sm:$0xfc]
      %v5328 = vld [vmem:[%s4794 + $0x8] sm:$0xfc]
      %v5329 = vld [vmem:[%s4794 + $0x10] sm:$0x3]
      %v5330 = vld [vmem:[%s4794 + $0x18] sm:$0x3]
      %v5331 = vld [vmem:[%s4794 + $0x20] sm:$0xfc]
      %v5332 = vld [vmem:[%s4794 + $0x28] sm:$0xfc]
      %v5333 = vld [vmem:[%s4794 + $0x30] sm:$0x3]
      %v5334 = vld [vmem:[%s4794 + $0x38] sm:$0x3]
      %v5335 = vld [vmem:[%s4794 + $0x40] sm:$0xfc]
      %v5336 = vld [vmem:[%s4794 + $0x48] sm:$0xfc]
      %v5337 = vld [vmem:[%s4794 + $0x50] sm:$0x3]
      %v5338 = vld [vmem:[%s4794 + $0x58] sm:$0x3]
      %v5339 = vld [vmem:[%s4794 + $0x60] sm:$0xfc]
      %v5340 = vld [vmem:[%s4794 + $0x68] sm:$0xfc]
      %v5341 = vld [vmem:[%s4794 + $0x70] sm:$0x3]
      %v5342 = vld [vmem:[%s4794 + $0x78] sm:$0x3]
      %v5343 = vld [vmem:[%s4794 + $0x80] sm:$0xfc]
      %v5344 = vld [vmem:[%s4794 + $0x88] sm:$0xfc]
      %v5345 = vld [vmem:[%s4794 + $0x90] sm:$0x3]
      %v5346 = vld [vmem:[%s4794 + $0x98] sm:$0x3]
      %v5347 = vld [vmem:[%s4794 + $0xa0] sm:$0xfc]
      %v5348 = vld [vmem:[%s4794 + $0xa8] sm:$0xfc]
      %v5349 = vld [vmem:[%s4794 + $0xb0] sm:$0x3]
      %v5350 = vld [vmem:[%s4794 + $0xb8] sm:$0x3]
      %v5351 = vld [vmem:[%s4794 + $0xc0] sm:$0xfc]
      %v5352 = vld [vmem:[%s4794 + $0xc8] sm:$0xfc]
      %v5353 = vld [vmem:[%s4794 + $0xd0] sm:$0x3]
      %v5354 = vld [vmem:[%s4794 + $0xd8] sm:$0x3]
      %v5355 = vld [vmem:[%s4794 + $0xe0] sm:$0xfc]
      %v5356 = vld [vmem:[%s4794 + $0xe8] sm:$0xfc]
      %v5357 = vld [vmem:[%s4794 + $0xf0] sm:$0x3]
      %v5358 = vld [vmem:[%s4794 + $0xf8] sm:$0x3]
      %v5391 = vrot.slane %v5327, 2
      %v5392 = vrot.slane %v5329, 2
      %v5393 = vsel %vm1026, %v5391, %v5392
      %v5394 = vrot.slane %v5328, 2
      %v5395 = vrot.slane %v5330, 2
      %v5396 = vsel %vm1026, %v5394, %v5395
      %v5397 = vrot.slane %v5331, 2
      %v5398 = vrot.slane %v5333, 2
      %v5399 = vsel %vm1026, %v5397, %v5398
      %v5400 = vrot.slane %v5332, 2
      %v5401 = vrot.slane %v5334, 2
      %v5402 = vsel %vm1026, %v5400, %v5401
      %v5403 = vrot.slane %v5335, 2
      %v5404 = vrot.slane %v5337, 2
      %v5405 = vsel %vm1026, %v5403, %v5404
      %v5406 = vrot.slane %v5336, 2
      %v5407 = vrot.slane %v5338, 2
      %v5408 = vsel %vm1026, %v5406, %v5407
      %v5409 = vrot.slane %v5339, 2
      %v5410 = vrot.slane %v5341, 2
      %v5411 = vsel %vm1026, %v5409, %v5410
      %v5412 = vrot.slane %v5340, 2
      %v5413 = vrot.slane %v5342, 2
      %v5414 = vsel %vm1026, %v5412, %v5413
      %v5415 = vrot.slane %v5343, 2
      %v5416 = vrot.slane %v5345, 2
      %v5417 = vsel %vm1026, %v5415, %v5416
      %v5418 = vrot.slane %v5344, 2
      %v5419 = vrot.slane %v5346, 2
      %v5420 = vsel %vm1026, %v5418, %v5419
      %v5421 = vrot.slane %v5347, 2
      %v5422 = vrot.slane %v5349, 2
      %v5423 = vsel %vm1026, %v5421, %v5422
      %v5424 = vrot.slane %v5348, 2
      %v5425 = vrot.slane %v5350, 2
      %v5426 = vsel %vm1026, %v5424, %v5425
      %v5427 = vrot.slane %v5351, 2
      %v5428 = vrot.slane %v5353, 2
      %v5429 = vsel %vm1026, %v5427, %v5428
      %v5430 = vrot.slane %v5352, 2
      %v5431 = vrot.slane %v5354, 2
      %v5432 = vsel %vm1026, %v5430, %v5431
      %v5433 = vrot.slane %v5355, 2
      %v5434 = vrot.slane %v5357, 2
      %v5435 = vsel %vm1026, %v5433, %v5434
      %v5436 = vrot.slane %v5356, 2
      %v5437 = vrot.slane %v5358, 2
      %v5438 = vsel %vm1026, %v5436, %v5437
      %s5455 = scalar_lea.vmem %s2, 4096
      %v5456 = vld [vmem:[%s5455] sm:$0xff]
      %v5457 = vld [vmem:[%s5455 + $0x8] sm:$0xff]
      %v5458 = vld [vmem:[%s5455 + $0x10] sm:$0xff]
      %v5459 = vld [vmem:[%s5455 + $0x18] sm:$0xff]
      %v5460 = vld [vmem:[%s5455 + $0x20] sm:$0xff]
      %v5461 = vld [vmem:[%s5455 + $0x28] sm:$0xff]
      %v5462 = vld [vmem:[%s5455 + $0x30] sm:$0xff]
      %v5463 = vld [vmem:[%s5455 + $0x38] sm:$0xff]
      %v5464 = vld [vmem:[%s5455 + $0x40] sm:$0xff]
      %v5465 = vld [vmem:[%s5455 + $0x48] sm:$0xff]
      %v5466 = vld [vmem:[%s5455 + $0x50] sm:$0xff]
      %v5467 = vld [vmem:[%s5455 + $0x58] sm:$0xff]
      %v5468 = vld [vmem:[%s5455 + $0x60] sm:$0xff]
      %v5469 = vld [vmem:[%s5455 + $0x68] sm:$0xff]
      %v5470 = vld [vmem:[%s5455 + $0x70] sm:$0xff]
      %v5471 = vld [vmem:[%s5455 + $0x78] sm:$0xff]
      %v5472 = vld [vmem:[%s5455 + $0x80] sm:$0xff]
      %v5473 = vld [vmem:[%s5455 + $0x88] sm:$0xff]
      %v5474 = vld [vmem:[%s5455 + $0x90] sm:$0xff]
      %v5475 = vld [vmem:[%s5455 + $0x98] sm:$0xff]
      %v5476 = vld [vmem:[%s5455 + $0xa0] sm:$0xff]
      %v5477 = vld [vmem:[%s5455 + $0xa8] sm:$0xff]
      %v5478 = vld [vmem:[%s5455 + $0xb0] sm:$0xff]
      %v5479 = vld [vmem:[%s5455 + $0xb8] sm:$0xff]
      %v5480 = vld [vmem:[%s5455 + $0xc0] sm:$0xff]
      %v5481 = vld [vmem:[%s5455 + $0xc8] sm:$0xff]
      %v5482 = vld [vmem:[%s5455 + $0xd0] sm:$0xff]
      %v5483 = vld [vmem:[%s5455 + $0xd8] sm:$0xff]
      %v5484 = vld [vmem:[%s5455 + $0xe0] sm:$0xff]
      %v5485 = vld [vmem:[%s5455 + $0xe8] sm:$0xff]
      %v5486 = vld [vmem:[%s5455 + $0xf0] sm:$0xff]
      %v5487 = vld [vmem:[%s5455 + $0xf8] sm:$0xff]
      %v5488 = vld [vmem:[%s5455 + $0x100] sm:$0xff]
      %v5489 = vld [vmem:[%s5455 + $0x108] sm:$0xff]
      %v5490 = vld [vmem:[%s5455 + $0x110] sm:$0xff]
      %v5491 = vld [vmem:[%s5455 + $0x118] sm:$0xff]
      %v5492 = vld [vmem:[%s5455 + $0x120] sm:$0xff]
      %v5493 = vld [vmem:[%s5455 + $0x128] sm:$0xff]
      %v5494 = vld [vmem:[%s5455 + $0x130] sm:$0xff]
      %v5495 = vld [vmem:[%s5455 + $0x138] sm:$0xff]
      %v5496 = vld [vmem:[%s5455 + $0x140] sm:$0xff]
      %v5497 = vld [vmem:[%s5455 + $0x148] sm:$0xff]
      %v5498 = vld [vmem:[%s5455 + $0x150] sm:$0xff]
      %v5499 = vld [vmem:[%s5455 + $0x158] sm:$0xff]
      %v5500 = vld [vmem:[%s5455 + $0x160] sm:$0xff]
      %v5501 = vld [vmem:[%s5455 + $0x168] sm:$0xff]
      %v5502 = vld [vmem:[%s5455 + $0x170] sm:$0xff]
      %v5503 = vld [vmem:[%s5455 + $0x178] sm:$0xff]
      %v5504 = vld [vmem:[%s5455 + $0x180] sm:$0xff]
      %v5505 = vld [vmem:[%s5455 + $0x188] sm:$0xff]
      %v5506 = vld [vmem:[%s5455 + $0x190] sm:$0xff]
      %v5507 = vld [vmem:[%s5455 + $0x198] sm:$0xff]
      %v5508 = vld [vmem:[%s5455 + $0x1a0] sm:$0xff]
      %v5509 = vld [vmem:[%s5455 + $0x1a8] sm:$0xff]
      %v5510 = vld [vmem:[%s5455 + $0x1b0] sm:$0xff]
      %v5511 = vld [vmem:[%s5455 + $0x1b8] sm:$0xff]
      %v5512 = vld [vmem:[%s5455 + $0x1c0] sm:$0xff]
      %v5513 = vld [vmem:[%s5455 + $0x1c8] sm:$0xff]
      %v5514 = vld [vmem:[%s5455 + $0x1d0] sm:$0xff]
      %v5515 = vld [vmem:[%s5455 + $0x1d8] sm:$0xff]
      %v5516 = vld [vmem:[%s5455 + $0x1e0] sm:$0xff]
      %v5517 = vld [vmem:[%s5455 + $0x1e8] sm:$0xff]
      %v5518 = vld [vmem:[%s5455 + $0x1f0] sm:$0xff]
      %v5519 = vld [vmem:[%s5455 + $0x1f8] sm:$0xff]
      %5520 = vmatprep.subr.mxu0 %v5457
      %5521 = vmatpush1.msra.mxu0 %v5456
      %5522 = vmatprep.subr.mxu0 %v5459
      %5523 = vmatpush1.msra.mxu0 %v5458
      %5524 = vmatprep.subr.mxu0 %v5461
      %5525 = vmatpush1.msra.mxu0 %v5460
      %5526 = vmatprep.subr.mxu0 %v5463
      %5527 = vmatpush1.msra.mxu0 %v5462
      %5528 = vmatprep.subr.mxu0 %v5465
      %5529 = vmatpush1.msra.mxu0 %v5464
      %5530 = vmatprep.subr.mxu0 %v5467
      %5531 = vmatpush1.msra.mxu0 %v5466
      %5532 = vmatprep.subr.mxu0 %v5469
      %5533 = vmatpush1.msra.mxu0 %v5468
      %5534 = vmatprep.subr.mxu0 %v5471
      %5535 = vmatpush1.msra.mxu0 %v5470
      %5536 = vmatprep.subr.mxu0 %v5473
      %5537 = vmatpush1.msra.mxu0 %v5472
      %5538 = vmatprep.subr.mxu0 %v5475
      %5539 = vmatpush1.msra.mxu0 %v5474
      %5540 = vmatprep.subr.mxu0 %v5477
      %5541 = vmatpush1.msra.mxu0 %v5476
      %5542 = vmatprep.subr.mxu0 %v5479
      %5543 = vmatpush1.msra.mxu0 %v5478
      %5544 = vmatprep.subr.mxu0 %v5481
      %5545 = vmatpush1.msra.mxu0 %v5480
      %5546 = vmatprep.subr.mxu0 %v5483
      %5547 = vmatpush1.msra.mxu0 %v5482
      %5548 = vmatprep.subr.mxu0 %v5485
      %5549 = vmatpush1.msra.mxu0 %v5484
      %5550 = vmatprep.subr.mxu0 %v5487
      %5551 = vmatpush1.msra.mxu0 %v5486
      %5552 = vmatprep.subr.mxu0 %v5489
      %5553 = vmatpush1.msra.mxu0 %v5488
      %5554 = vmatprep.subr.mxu0 %v5491
      %5555 = vmatpush1.msra.mxu0 %v5490
      %5556 = vmatprep.subr.mxu0 %v5493
      %5557 = vmatpush1.msra.mxu0 %v5492
      %5558 = vmatprep.subr.mxu0 %v5495
      %5559 = vmatpush1.msra.mxu0 %v5494
      %5560 = vmatprep.subr.mxu0 %v5497
      %5561 = vmatpush1.msra.mxu0 %v5496
      %5562 = vmatprep.subr.mxu0 %v5499
      %5563 = vmatpush1.msra.mxu0 %v5498
      %5564 = vmatprep.subr.mxu0 %v5501
      %5565 = vmatpush1.msra.mxu0 %v5500
      %5566 = vmatprep.subr.mxu0 %v5503
      %5567 = vmatpush1.msra.mxu0 %v5502
      %5568 = vmatprep.subr.mxu0 %v5505
      %5569 = vmatpush1.msra.mxu0 %v5504
      %5570 = vmatprep.subr.mxu0 %v5507
      %5571 = vmatpush1.msra.mxu0 %v5506
      %5572 = vmatprep.subr.mxu0 %v5509
      %5573 = vmatpush1.msra.mxu0 %v5508
      %5574 = vmatprep.subr.mxu0 %v5511
      %5575 = vmatpush1.msra.mxu0 %v5510
      %5576 = vmatprep.subr.mxu0 %v5513
      %5577 = vmatpush1.msra.mxu0 %v5512
      %5578 = vmatprep.subr.mxu0 %v5515
      %5579 = vmatpush1.msra.mxu0 %v5514
      %5580 = vmatprep.subr.mxu0 %v5517
      %5581 = vmatpush1.msra.mxu0 %v5516
      %5582 = vmatprep.subr.mxu0 %v5519
      %5583 = vmatpush1.msra.mxu0 %v5518
      %5584 = vmatprep.mubr.f32.mxu0 %v5396
      %5585 = vmatmul.mubr.f32.gmra.mrb[0].mxu0 %v5393
      %v5586 = vpop.f32.mrb[0].mxu0
      %v5587 = vadd.f32 0.0, %v5586
      %v5588 = vpop.f32.mrb[0].mxu0
      %v5589 = vadd.f32 0.0, %v5588
      %5590 = vmatprep.mubr.f32.mxu0 %v5402
      %5591 = vmatmul.mubr.f32.gmra.mrb[0].mxu0 %v5399
      %v5592 = vpop.f32.mrb[0].mxu0
      %v5593 = vadd.f32 0.0, %v5592
      %v5594 = vpop.f32.mrb[0].mxu0
      %v5595 = vadd.f32 0.0, %v5594
      %5596 = vmatprep.mubr.f32.mxu0 %v5408
      %5597 = vmatmul.mubr.f32.gmra.mrb[0].mxu0 %v5405
      %v5598 = vpop.f32.mrb[0].mxu0
      %v5599 = vadd.f32 0.0, %v5598
      %v5600 = vpop.f32.mrb[0].mxu0
      %v5601 = vadd.f32 0.0, %v5600
      %5602 = vmatprep.mubr.f32.mxu0 %v5414
      %5603 = vmatmul.mubr.f32.gmra.mrb[0].mxu0 %v5411
      %v5604 = vpop.f32.mrb[0].mxu0
      %v5605 = vadd.f32 0.0, %v5604
      %v5606 = vpop.f32.mrb[0].mxu0
      %v5607 = vadd.f32 0.0, %v5606
      %5608 = vmatprep.mubr.f32.mxu0 %v5420
      %5609 = vmatmul.mubr.f32.gmra.mrb[0].mxu0 %v5417
      %v5610 = vpop.f32.mrb[0].mxu0
      %v5611 = vadd.f32 0.0, %v5610
      %v5612 = vpop.f32.mrb[0].mxu0
      %v5613 = vadd.f32 0.0, %v5612
      %5614 = vmatprep.mubr.f32.mxu0 %v5426
      %5615 = vmatmul.mubr.f32.gmra.mrb[0].mxu0 %v5423
      %v5616 = vpop.f32.mrb[0].mxu0
      %v5617 = vadd.f32 0.0, %v5616
      %v5618 = vpop.f32.mrb[0].mxu0
      %v5619 = vadd.f32 0.0, %v5618
      %5620 = vmatprep.mubr.f32.mxu0 %v5432
      %5621 = vmatmul.mubr.f32.gmra.mrb[0].mxu0 %v5429
      %v5622 = vpop.f32.mrb[0].mxu0
      %v5623 = vadd.f32 0.0, %v5622
      %v5624 = vpop.f32.mrb[0].mxu0
      %v5625 = vadd.f32 0.0, %v5624
      %5626 = vmatprep.mubr.f32.mxu0 %v5438
      %5627 = vmatmul.mubr.f32.gmra.mrb[0].mxu0 %v5435
      %v5628 = vpop.f32.mrb[0].mxu0
      %v5629 = vadd.f32 0.0, %v5628
      %v5630 = vpop.f32.mrb[0].mxu0
      %v5631 = vadd.f32 0.0, %v5630
      %5632 = vdwg.mxu0
      %v5633 = vadd.f32 %v5311, %v5587
      %v5634 = vadd.f32 %v5312, %v5589
      %v5635 = vadd.f32 %v5313, %v5593
      %v5636 = vadd.f32 %v5314, %v5595
      %v5637 = vadd.f32 %v5315, %v5599
      %v5638 = vadd.f32 %v5316, %v5601
      %v5639 = vadd.f32 %v5317, %v5605
      %v5640 = vadd.f32 %v5318, %v5607
      %v5641 = vadd.f32 %v5319, %v5611
      %v5642 = vadd.f32 %v5320, %v5613
      %v5643 = vadd.f32 %v5321, %v5617
      %v5644 = vadd.f32 %v5322, %v5619
      %v5645 = vadd.f32 %v5323, %v5623
      %v5646 = vadd.f32 %v5324, %v5625
      %v5647 = vadd.f32 %v5325, %v5629
      %v5648 = vadd.f32 %v5326, %v5631
      %v5649 = vld [vmem:[%s4] sm:$0x3]
      %v5651 = vlaneseq
      %v5652 = vshrl.u32 %v5651, 7
      %v5653 = vsub.s32 0, %v5652
      %v5654 = vrot.slane %v5649, %v5653
      %v5655 = vlaneseq
      %v5656 = vshrl.u32 %v5655, 7
      %v5657 = vsub.s32 1, %v5656
      %v5658 = vrot.slane %v5649, %v5657
      %v5661 = vadd.f32 %v5633, %v5654
      %v5662 = vadd.f32 %v5634, %v5658
      %v5663 = vadd.f32 %v5635, %v5654
      %v5664 = vadd.f32 %v5636, %v5658
      %v5665 = vadd.f32 %v5637, %v5654
      %v5666 = vadd.f32 %v5638, %v5658
      %v5667 = vadd.f32 %v5639, %v5654
      %v5668 = vadd.f32 %v5640, %v5658
      %v5669 = vadd.f32 %v5641, %v5654
      %v5670 = vadd.f32 %v5642, %v5658
      %v5671 = vadd.f32 %v5643, %v5654
      %v5672 = vadd.f32 %v5644, %v5658
      %v5673 = vadd.f32 %v5645, %v5654
      %v5674 = vadd.f32 %v5646, %v5658
      %v5675 = vadd.f32 %v5647, %v5654
      %v5676 = vadd.f32 %v5648, %v5658
      %v5677 = vadd.f32 %v5661, %v365
      %v5678 = vadd.f32 %v5662, %v366
      %v5679 = vadd.f32 %v5663, %v367
      %v5680 = vadd.f32 %v5664, %v368
      %v5681 = vadd.f32 %v5665, %v369
      %v5682 = vadd.f32 %v5666, %v370
      %v5683 = vadd.f32 %v5667, %v371
      %v5684 = vadd.f32 %v5668, %v372
      %v5685 = vadd.f32 %v5669, %v373
      %v5686 = vadd.f32 %v5670, %v374
      %v5687 = vadd.f32 %v5671, %v375
      %v5688 = vadd.f32 %v5672, %v376
      %v5689 = vadd.f32 %v5673, %v377
      %v5690 = vadd.f32 %v5674, %v378
      %v5691 = vadd.f32 %v5675, %v379
      %v5692 = vadd.f32 %v5676, %v380
      %v5693 = vmax.f32 %v5677, 0.0
      %v5694 = vmax.f32 %v5678, 0.0
      %v5695 = vmax.f32 %v5679, 0.0
      %v5696 = vmax.f32 %v5680, 0.0
      %v5697 = vmax.f32 %v5681, 0.0
      %v5698 = vmax.f32 %v5682, 0.0
      %v5699 = vmax.f32 %v5683, 0.0
      %v5700 = vmax.f32 %v5684, 0.0
      %v5701 = vmax.f32 %v5685, 0.0
      %v5702 = vmax.f32 %v5686, 0.0
      %v5703 = vmax.f32 %v5687, 0.0
      %v5704 = vmax.f32 %v5688, 0.0
      %v5705 = vmax.f32 %v5689, 0.0
      %v5706 = vmax.f32 %v5690, 0.0
      %v5707 = vmax.f32 %v5691, 0.0
      %v5708 = vmax.f32 %v5692, 0.0
      %5709 = vst [vmem:[%s224] sm:$0xff] %v5693
      %5710 = vst [vmem:[%s224 + $0x8] sm:$0xff] %v5694
      %5711 = vst [vmem:[%s224 + $0x10] sm:$0xff] %v5695
      %5712 = vst [vmem:[%s224 + $0x18] sm:$0xff] %v5696
      %5713 = vst [vmem:[%s224 + $0x20] sm:$0xff] %v5697
      %5714 = vst [vmem:[%s224 + $0x28] sm:$0xff] %v5698
      %5715 = vst [vmem:[%s224 + $0x30] sm:$0xff] %v5699
      %5716 = vst [vmem:[%s224 + $0x38] sm:$0xff] %v5700
      %5717 = vst [vmem:[%s224 + $0x40] sm:$0xff] %v5701
      %5718 = vst [vmem:[%s224 + $0x48] sm:$0xff] %v5702
      %5719 = vst [vmem:[%s224 + $0x50] sm:$0xff] %v5703
      %5720 = vst [vmem:[%s224 + $0x58] sm:$0xff] %v5704
      %5721 = vst [vmem:[%s224 + $0x60] sm:$0xff] %v5705
      %5722 = vst [vmem:[%s224 + $0x68] sm:$0xff] %v5706
      %5723 = vst [vmem:[%s224 + $0x70] sm:$0xff] %v5707
      %5724 = vst [vmem:[%s224 + $0x78] sm:$0xff] %v5708
      %p5725 = scmp.lt.s32.totalorder %s16, 1
      %s5726 = scalar_select %p5725, %s16, 1
      %s5727 = smul.addr %s5726, 16
      %s5728 = smul.addr %s5727, 8
      %s5729 = scalar_lea.vmem %s5, %s5728
      // Predicated region
      $region41: #{_lambda_.1} parent=39 // pred_check
        %p5730 = pneg %p144
      $region42: #{_lambda_.1} parent=39 // pred_check_branch
        %5732 = sbr.rel (%p5730) target = $region44
      $region43: #{_lambda_.1} parent=39 // pred_region
        _
      $region44: #{_lambda_.1} parent=39 // pred_fallthru
        _
    $region40: #{_lambda_.1} parent=5 // pred_fallthru
      _
    %p5733 = scmp.le.s32.totalorder 2, %s11
    // Predicated region
    $region45: #{_lambda_.1} parent=5 // pred_check
      %p5734 = pneg %p5733
    $region46: #{_lambda_.1} parent=5 // pred_check_branch
      %5736 = sbr.rel (%p5734) target = $region48
    $region47: #{_lambda_.1} parent=5 // pred_region
      %s5737 = ssub.s32 %s11, 2
      // Predicated region
      $region49: #{_lambda_.1} parent=47 // pred_check
        %p5738 = pneg %p150
      $region50: #{_lambda_.1} parent=47 // pred_check_branch
        %5740 = sbr.rel (%p5738) target = $region52
      $region51: #{_lambda_.1} parent=47 // pred_region
        %p5741 = scmp.lt.s32.totalorder %s17, 1
        %s5742 = scalar_select %p5741, %s17, 1
        %s5743 = smul.addr %s5742, 16
        %s5744 = smul.addr %s5743, 8
        %s5745 = scalar_lea.vmem %s5, %s5744
      $region52: #{_lambda_.1} parent=47 // pred_fallthru
        _
    $region48: #{_lambda_.1} parent=5 // pred_fallthru
      _
  $region6: #{_lambda_.1} parent=0 // loop_footer
    %s15 = sadd.s32 1, %s11
  $region7: #{_lambda_.1} parent=0 // loop_footer_branch
    %10 = sbr.rel target = $region3
  $region8: #{_lambda_.1} parent=0 // loop_exit
    _

</llo_original>
